<compile_context>
chip_gen: v7x
topology: tpu7x:2x2x1
jax: 0.10.0
libtpu: 0.0.40
codegen_flags: <defaults>
</compile_context>

<pallas_src>
import jax
import jax.numpy as jnp
from jax.experimental import pallas as pl
from jax.experimental.pallas import tpu as pltpu


def _canine_embed_kernel(hashes_ref,   # SMEM (n_hash,) int32   (scalar prefetch)
                         tok_ref,      # VMEM (TILE, 1) int32   token ids
                         pos_ref,      # VMEM (TILE, 1) int32   position ids
                         emb_ref,      # VMEM (n_hash, n_bucket, d_sub) f32 (resident)
                         ptab_ref,     # VMEM (max_pos, hidden) f32        (resident)
                         out_ref):     # VMEM (TILE, hidden)
    tile = tok_ref.shape[0]
    n_hash, n_bucket, d_sub = emb_ref.shape
    max_pos = ptab_ref.shape[0]

    # (a*b) % m == ((a%m)*(b%m)) % m : reduce first so the int32 product cannot
    # overflow even for real unicode code points and 16k buckets (ids >= 0).
    tok_mod = tok_ref[...] % n_bucket                                 # (TILE, 1)
    bucket_iota = jax.lax.broadcasted_iota(jnp.int32, (tile, n_bucket), 1)

    pos_iota = jax.lax.broadcasted_iota(jnp.int32, (tile, max_pos), 1)
    pos_onehot = jnp.where(pos_ref[...] == pos_iota, 1.0, 0.0
                           ).astype(ptab_ref.dtype)                   # (TILE, max_pos)

    for h in range(n_hash):                                           # static unroll
        mult = hashes_ref[h] % n_bucket                               # scalar int32
        idx = (tok_mod * mult) % n_bucket                             # (TILE, 1)
        onehot = jnp.where(idx == bucket_iota, 1.0, 0.0
                           ).astype(emb_ref.dtype)                    # (TILE, n_bucket)
        # Exact on-chip gather via MXU (one-hot matmul).
        piece = jnp.dot(onehot, emb_ref[h],
                        preferred_element_type=jnp.float32)           # (TILE, d_sub)
        pos_piece = jnp.dot(pos_onehot, ptab_ref[:, h * d_sub:(h + 1) * d_sub],
                            preferred_element_type=jnp.float32)       # (TILE, d_sub)
        out_ref[:, h * d_sub:(h + 1) * d_sub] = (
            piece + pos_piece).astype(out_ref.dtype)


def canine_embedding(input_ids, emb_tables, hashes, pos_table,
                     position_ids=None, *, tile=256):
    """Pallas equivalent of CanineEmbedding.forward."""
    batch, seq = input_ids.shape
    n_hash, n_bucket, d_sub = emb_tables.shape
    max_pos, hidden = pos_table.shape
    assert n_hash * d_sub == hidden

    if position_ids is None:
        position_ids = jnp.arange(seq, dtype=jnp.int32)[None, :]
    position_ids = jnp.broadcast_to(position_ids, (batch, seq))
    # Safety clamp: an out-of-range position id would be a silent wrong gather
    # here rather than PyTorch's IndexError.
    position_ids = jnp.clip(position_ids.astype(jnp.int32), 0, max_pos - 1)

    n = batch * seq
    n_pad = pl.cdiv(n, tile) * tile
    tok_flat = jnp.zeros((n_pad, 1), jnp.int32).at[:n, 0].set(
        input_ids.reshape(-1).astype(jnp.int32))
    pos_flat = jnp.zeros((n_pad, 1), jnp.int32).at[:n, 0].set(
        position_ids.reshape(-1))

    itemsize = jnp.dtype(pos_table.dtype).itemsize
    cost = pl.CostEstimate(
        flops=2 * n_pad * (n_hash * n_bucket * d_sub + max_pos * hidden),
        transcendentals=0,
        bytes_accessed=(int(emb_tables.size) + int(pos_table.size)) * itemsize
                       + 2 * n_pad * 4 + n_pad * hidden * itemsize,
    )

    out_flat = pl.pallas_call(
        _canine_embed_kernel,
        out_shape=jax.ShapeDtypeStruct((n_pad, hidden), pos_table.dtype),
        grid_spec=pltpu.PrefetchScalarGridSpec(
            num_scalar_prefetch=1,                 # hashes land in SMEM
            grid=(n_pad // tile,),
            in_specs=[
                pl.BlockSpec((tile, 1), lambda i, hashes: (i, 0)),      # token ids
                pl.BlockSpec((tile, 1), lambda i, hashes: (i, 0)),      # position ids
                # Tables: whole array, constant block index -> VMEM resident.
                pl.BlockSpec((n_hash, n_bucket, d_sub),
                             lambda i, hashes: (0, 0, 0)),
                pl.BlockSpec((max_pos, hidden), lambda i, hashes: (0, 0)),
            ],
            out_specs=pl.BlockSpec((tile, hidden), lambda i, hashes: (i, 0)),
        ),
        compiler_params=pltpu.CompilerParams(
            dimension_semantics=("parallel",),     # disjoint output tiles (v7x 2-TC)
        ),
        cost_estimate=cost,
    )(hashes.astype(jnp.int32), tok_flat, pos_flat, emb_tables, pos_table)

    return out_flat[:n].reshape(batch, seq, hidden)


def init_canine_params(key, *, n_hash, n_bucket, hidden, max_pos, pad_token_id):
    """Parameter/buffer setup (the nn.Module __init__), in plain JAX."""
    d_sub = hidden // n_hash
    k1, k2, k3 = jax.random.split(key, 3)
    emb_tables = 0.02 * jax.random.normal(k1, (n_hash, n_bucket, d_sub), jnp.float32)
    # nn.Embedding(padding_idx=pad_token_id) zero-initializes that row.
    emb_tables = emb_tables.at[:, pad_token_id, :].set(0.0)
    pos_table = 0.02 * jax.random.normal(k2, (max_pos, hidden), jnp.float32)
    hashes = jax.random.randint(k3, (n_hash,), 0, n_bucket, dtype=jnp.int32)
    return emb_tables, hashes, pos_table


if __name__ == "__main__":
    # Small config consistent with the module: hidden divisible by n_hash.
    n_hash, n_bucket, hidden = 4, 128, 128
    max_pos, pad_token_id = 16, 0
    batch, seq = 2, 8

    key = jax.random.PRNGKey(0)
    k_param, k_ids = jax.random.split(key)
    emb_tables, hashes, pos_table = init_canine_params(
        k_param, n_hash=n_hash, n_bucket=n_bucket, hidden=hidden,
        max_pos=max_pos, pad_token_id=pad_token_id)
    input_ids = jax.random.randint(k_ids, (batch, seq), 0, 997, dtype=jnp.int32)

    out = canine_embedding(input_ids, emb_tables, hashes, pos_table)
    out = jax.block_until_ready(out)

    # Pure-JAX reference: the literal PyTorch forward.
    pieces = []
    for h in range(n_hash):
        idx = (input_ids * hashes[h]) % n_bucket
        pieces.append(emb_tables[h][idx])
    ref = jnp.concatenate(pieces, axis=-1)
    ref = ref + pos_table[jnp.arange(seq)[None, :]]

    assert out.shape == (batch, seq, hidden), out.shape
    assert out.dtype == jnp.float32
    assert jnp.allclose(out, ref, atol=1e-6), float(jnp.abs(out - ref).max())

    print("KERNEL_OK")
</pallas_src>

<mosaic_0001>
module attributes {stable_mosaic.version = 11 : i64} {
  func.func @_canine_embed_kernel(%arg0: i32, %arg1: memref<4xi32, #tpu.memory_space<smem>>, %arg2: memref<256x1xi32, #tpu.memory_space<vmem>>, %arg3: memref<256x1xi32, #tpu.memory_space<vmem>>, %arg4: memref<4x128x32xf32, #tpu.memory_space<vmem>>, %arg5: memref<16x128xf32, #tpu.memory_space<vmem>>, %arg6: memref<256x128xf32, #tpu.memory_space<vmem>>) attributes {dimension_semantics = [#tpu.dimension_semantics<parallel>], iteration_bounds = array<i64: 1>, scalar_prefetch = 1 : i64, scratch_operands = 0 : i64, tpu.core_type = #tpu.core_type<tc>, window_params = [{transform_indices = @transform_0, window_bounds = array<i64: 256, 1>}, {transform_indices = @transform_1, window_bounds = array<i64: 256, 1>}, {pipeline_mode = #tpu.pipeline_mode<synchronous>, transform_indices = @transform_2, window_bounds = array<i64: 4, 128, 32>}, {pipeline_mode = #tpu.pipeline_mode<synchronous>, transform_indices = @transform_3, window_bounds = array<i64: 16, 128>}, {transform_indices = @transform_4, window_bounds = array<i64: 256, 128>}]} {
    %c0 = arith.constant 0 : index
    %c0_0 = arith.constant 0 : index
    %0 = vector.load %arg2[%c0, %c0_0] : memref<256x1xi32, #tpu.memory_space<vmem>>, vector<256x1xi32>
    %c128_i32 = arith.constant 128 : i32
    %c0_i32 = arith.constant 0 : i32
    %1 = arith.cmpi eq, %c128_i32, %c0_i32 : i32
    %c1_i32 = arith.constant 1 : i32
    %2 = arith.select %1, %c1_i32, %c128_i32 : i32
    %3 = vector.broadcast %2 : i32 to vector<256x1xi32>
    %4 = arith.remsi %0, %3 : vector<256x1xi32>
    %c0_i32_1 = arith.constant 0 : i32
    %5 = vector.broadcast %c0_i32_1 : i32 to vector<256x1xi32>
    %6 = arith.cmpi ne, %4, %5 : vector<256x1xi32>
    %c0_i32_2 = arith.constant 0 : i32
    %7 = vector.broadcast %c0_i32_2 : i32 to vector<256x1xi32>
    %8 = arith.cmpi slt, %4, %7 : vector<256x1xi32>
    %c0_i32_3 = arith.constant 0 : i32
    %9 = arith.cmpi slt, %2, %c0_i32_3 : i32
    %10 = vector.broadcast %9 : i1 to vector<256x1xi1>
    %11 = vector.broadcast %10 : vector<256x1xi1> to vector<256x1xi1>
    %12 = arith.xori %8, %11 : vector<256x1xi1>
    %13 = arith.andi %12, %6 : vector<256x1xi1>
    %14 = vector.broadcast %2 : i32 to vector<256x1xi32>
    %15 = arith.addi %4, %14 : vector<256x1xi32>
    %16 = arith.select %13, %15, %4 : vector<256x1xi1>, vector<256x1xi32>
    %17 = tpu.iota {dimensions = array<i32: 1>} : vector<256x128xi32>
    %18 = tpu.iota {dimensions = array<i32: 1>} : vector<256x16xi32>
    %c0_4 = arith.constant 0 : index
    %c0_5 = arith.constant 0 : index
    %19 = vector.load %arg3[%c0_4, %c0_5] : memref<256x1xi32, #tpu.memory_space<vmem>>, vector<256x1xi32>
    %20 = vector.broadcast %19 : vector<256x1xi32> to vector<256x16xi32>
    %21 = arith.cmpi eq, %20, %18 : vector<256x16xi32>
    %cst = arith.constant 1.000000e+00 : f32
    %cst_6 = arith.constant 0.000000e+00 : f32
    %22 = vector.broadcast %cst : f32 to vector<256x16xf32>
    %23 = vector.broadcast %cst_6 : f32 to vector<256x16xf32>
    %24 = arith.select %21, %22, %23 : vector<256x16xi1>, vector<256x16xf32>
    %c0_7 = arith.constant 0 : index
    %25 = memref.load %arg1[%c0_7] : memref<4xi32, #tpu.memory_space<smem>>
    %c128_i32_8 = arith.constant 128 : i32
    %c0_i32_9 = arith.constant 0 : i32
    %26 = arith.cmpi eq, %c128_i32_8, %c0_i32_9 : i32
    %c1_i32_10 = arith.constant 1 : i32
    %27 = arith.select %26, %c1_i32_10, %c128_i32_8 : i32
    %28 = arith.remsi %25, %27 : i32
    %c0_i32_11 = arith.constant 0 : i32
    %29 = arith.cmpi ne, %28, %c0_i32_11 : i32
    %c0_i32_12 = arith.constant 0 : i32
    %30 = arith.cmpi slt, %28, %c0_i32_12 : i32
    %c0_i32_13 = arith.constant 0 : i32
    %31 = arith.cmpi slt, %27, %c0_i32_13 : i32
    %32 = arith.xori %30, %31 : i1
    %33 = arith.andi %32, %29 : i1
    %34 = arith.addi %28, %27 : i32
    %35 = arith.select %33, %34, %28 : i32
    %36 = vector.broadcast %35 : i32 to vector<256x1xi32>
    %37 = arith.muli %16, %36 : vector<256x1xi32>
    %c128_i32_14 = arith.constant 128 : i32
    %c0_i32_15 = arith.constant 0 : i32
    %38 = arith.cmpi eq, %c128_i32_14, %c0_i32_15 : i32
    %c1_i32_16 = arith.constant 1 : i32
    %39 = arith.select %38, %c1_i32_16, %c128_i32_14 : i32
    %40 = vector.broadcast %39 : i32 to vector<256x1xi32>
    %41 = arith.remsi %37, %40 : vector<256x1xi32>
    %c0_i32_17 = arith.constant 0 : i32
    %42 = vector.broadcast %c0_i32_17 : i32 to vector<256x1xi32>
    %43 = arith.cmpi ne, %41, %42 : vector<256x1xi32>
    %c0_i32_18 = arith.constant 0 : i32
    %44 = vector.broadcast %c0_i32_18 : i32 to vector<256x1xi32>
    %45 = arith.cmpi slt, %41, %44 : vector<256x1xi32>
    %c0_i32_19 = arith.constant 0 : i32
    %46 = arith.cmpi slt, %39, %c0_i32_19 : i32
    %47 = vector.broadcast %46 : i1 to vector<256x1xi1>
    %48 = vector.broadcast %47 : vector<256x1xi1> to vector<256x1xi1>
    %49 = arith.xori %45, %48 : vector<256x1xi1>
    %50 = arith.andi %49, %43 : vector<256x1xi1>
    %51 = vector.broadcast %39 : i32 to vector<256x1xi32>
    %52 = arith.addi %41, %51 : vector<256x1xi32>
    %53 = arith.select %50, %52, %41 : vector<256x1xi1>, vector<256x1xi32>
    %54 = vector.broadcast %53 : vector<256x1xi32> to vector<256x128xi32>
    %55 = arith.cmpi eq, %54, %17 : vector<256x128xi32>
    %cst_20 = arith.constant 1.000000e+00 : f32
    %cst_21 = arith.constant 0.000000e+00 : f32
    %56 = vector.broadcast %cst_20 : f32 to vector<256x128xf32>
    %57 = vector.broadcast %cst_21 : f32 to vector<256x128xf32>
    %58 = arith.select %55, %56, %57 : vector<256x128xi1>, vector<256x128xf32>
    %c0_22 = arith.constant 0 : index
    %c0_23 = arith.constant 0 : index
    %c0_24 = arith.constant 0 : index
    %59 = vector.load %arg4[%c0_22, %c0_23, %c0_24] : memref<4x128x32xf32, #tpu.memory_space<vmem>>, vector<1x128x32xf32>
    %60 = vector.shape_cast %59 : vector<1x128x32xf32> to vector<128x32xf32>
    %cst_25 = arith.constant dense<0.000000e+00> : vector<256x32xf32>
    %61 = tpu.matmul %58, %60, %cst_25 {dimension_numbers = #tpu.dot_dimension_numbers<[1], [0], [0], [1], [0, 0, 1, 1], [], []>} : vector<256x128xf32>, vector<128x32xf32>, vector<256x32xf32> -> vector<256x32xf32>
    %c0_26 = arith.constant 0 : index
    %c0_27 = arith.constant 0 : index
    %62 = vector.load %arg5[%c0_26, %c0_27] : memref<16x128xf32, #tpu.memory_space<vmem>>, vector<16x32xf32>
    %cst_28 = arith.constant dense<0.000000e+00> : vector<256x32xf32>
    %63 = tpu.matmul %24, %62, %cst_28 {dimension_numbers = #tpu.dot_dimension_numbers<[1], [0], [0], [1], [0, 0, 1, 1], [], []>} : vector<256x16xf32>, vector<16x32xf32>, vector<256x32xf32> -> vector<256x32xf32>
    %64 = arith.addf %61, %63 : vector<256x32xf32>
    %c0_29 = arith.constant 0 : index
    %c0_30 = arith.constant 0 : index
    %65 = vector.load %arg6[%c0_29, %c0_30] : memref<256x128xf32, #tpu.memory_space<vmem>>, vector<256x32xf32>
    tpu.vector_store %arg6[%c0_29, %c0_30], %64 {strides = array<i32>} : memref<256x128xf32, #tpu.memory_space<vmem>>, vector<256x32xf32>,
    %c1 = arith.constant 1 : index
    %66 = memref.load %arg1[%c1] : memref<4xi32, #tpu.memory_space<smem>>
    %c128_i32_31 = arith.constant 128 : i32
    %c0_i32_32 = arith.constant 0 : i32
    %67 = arith.cmpi eq, %c128_i32_31, %c0_i32_32 : i32
    %c1_i32_33 = arith.constant 1 : i32
    %68 = arith.select %67, %c1_i32_33, %c128_i32_31 : i32
    %69 = arith.remsi %66, %68 : i32
    %c0_i32_34 = arith.constant 0 : i32
    %70 = arith.cmpi ne, %69, %c0_i32_34 : i32
    %c0_i32_35 = arith.constant 0 : i32
    %71 = arith.cmpi slt, %69, %c0_i32_35 : i32
    %c0_i32_36 = arith.constant 0 : i32
    %72 = arith.cmpi slt, %68, %c0_i32_36 : i32
    %73 = arith.xori %71, %72 : i1
    %74 = arith.andi %73, %70 : i1
    %75 = arith.addi %69, %68 : i32
    %76 = arith.select %74, %75, %69 : i32
    %77 = vector.broadcast %76 : i32 to vector<256x1xi32>
    %78 = arith.muli %16, %77 : vector<256x1xi32>
    %c128_i32_37 = arith.constant 128 : i32
    %c0_i32_38 = arith.constant 0 : i32
    %79 = arith.cmpi eq, %c128_i32_37, %c0_i32_38 : i32
    %c1_i32_39 = arith.constant 1 : i32
    %80 = arith.select %79, %c1_i32_39, %c128_i32_37 : i32
    %81 = vector.broadcast %80 : i32 to vector<256x1xi32>
    %82 = arith.remsi %78, %81 : vector<256x1xi32>
    %c0_i32_40 = arith.constant 0 : i32
    %83 = vector.broadcast %c0_i32_40 : i32 to vector<256x1xi32>
    %84 = arith.cmpi ne, %82, %83 : vector<256x1xi32>
    %c0_i32_41 = arith.constant 0 : i32
    %85 = vector.broadcast %c0_i32_41 : i32 to vector<256x1xi32>
    %86 = arith.cmpi slt, %82, %85 : vector<256x1xi32>
    %c0_i32_42 = arith.constant 0 : i32
    %87 = arith.cmpi slt, %80, %c0_i32_42 : i32
    %88 = vector.broadcast %87 : i1 to vector<256x1xi1>
    %89 = vector.broadcast %88 : vector<256x1xi1> to vector<256x1xi1>
    %90 = arith.xori %86, %89 : vector<256x1xi1>
    %91 = arith.andi %90, %84 : vector<256x1xi1>
    %92 = vector.broadcast %80 : i32 to vector<256x1xi32>
    %93 = arith.addi %82, %92 : vector<256x1xi32>
    %94 = arith.select %91, %93, %82 : vector<256x1xi1>, vector<256x1xi32>
    %95 = vector.broadcast %94 : vector<256x1xi32> to vector<256x128xi32>
    %96 = arith.cmpi eq, %95, %17 : vector<256x128xi32>
    %cst_43 = arith.constant 1.000000e+00 : f32
    %cst_44 = arith.constant 0.000000e+00 : f32
    %97 = vector.broadcast %cst_43 : f32 to vector<256x128xf32>
    %98 = vector.broadcast %cst_44 : f32 to vector<256x128xf32>
    %99 = arith.select %96, %97, %98 : vector<256x128xi1>, vector<256x128xf32>
    %c1_45 = arith.constant 1 : index
    %c0_46 = arith.constant 0 : index
    %c0_47 = arith.constant 0 : index
    %100 = vector.load %arg4[%c1_45, %c0_46, %c0_47] : memref<4x128x32xf32, #tpu.memory_space<vmem>>, vector<1x128x32xf32>
    %101 = vector.shape_cast %100 : vector<1x128x32xf32> to vector<128x32xf32>
    %cst_48 = arith.constant dense<0.000000e+00> : vector<256x32xf32>
    %102 = tpu.matmul %99, %101, %cst_48 {dimension_numbers = #tpu.dot_dimension_numbers<[1], [0], [0], [1], [0, 0, 1, 1], [], []>} : vector<256x128xf32>, vector<128x32xf32>, vector<256x32xf32> -> vector<256x32xf32>
    %c0_49 = arith.constant 0 : index
    %c32 = arith.constant 32 : index
    %103 = vector.load %arg5[%c0_49, %c32] : memref<16x128xf32, #tpu.memory_space<vmem>>, vector<16x32xf32>
    %cst_50 = arith.constant dense<0.000000e+00> : vector<256x32xf32>
    %104 = tpu.matmul %24, %103, %cst_50 {dimension_numbers = #tpu.dot_dimension_numbers<[1], [0], [0], [1], [0, 0, 1, 1], [], []>} : vector<256x16xf32>, vector<16x32xf32>, vector<256x32xf32> -> vector<256x32xf32>
    %105 = arith.addf %102, %104 : vector<256x32xf32>
    %c0_51 = arith.constant 0 : index
    %c32_52 = arith.constant 32 : index
    %106 = vector.load %arg6[%c0_51, %c32_52] : memref<256x128xf32, #tpu.memory_space<vmem>>, vector<256x32xf32>
    tpu.vector_store %arg6[%c0_51, %c32_52], %105 {strides = array<i32>} : memref<256x128xf32, #tpu.memory_space<vmem>>, vector<256x32xf32>,
    %c2 = arith.constant 2 : index
    %107 = memref.load %arg1[%c2] : memref<4xi32, #tpu.memory_space<smem>>
    %c128_i32_53 = arith.constant 128 : i32
    %c0_i32_54 = arith.constant 0 : i32
    %108 = arith.cmpi eq, %c128_i32_53, %c0_i32_54 : i32
    %c1_i32_55 = arith.constant 1 : i32
    %109 = arith.select %108, %c1_i32_55, %c128_i32_53 : i32
    %110 = arith.remsi %107, %109 : i32
    %c0_i32_56 = arith.constant 0 : i32
    %111 = arith.cmpi ne, %110, %c0_i32_56 : i32
    %c0_i32_57 = arith.constant 0 : i32
    %112 = arith.cmpi slt, %110, %c0_i32_57 : i32
    %c0_i32_58 = arith.constant 0 : i32
    %113 = arith.cmpi slt, %109, %c0_i32_58 : i32
    %114 = arith.xori %112, %113 : i1
    %115 = arith.andi %114, %111 : i1
    %116 = arith.addi %110, %109 : i32
    %117 = arith.select %115, %116, %110 : i32
    %118 = vector.broadcast %117 : i32 to vector<256x1xi32>
    %119 = arith.muli %16, %118 : vector<256x1xi32>
    %c128_i32_59 = arith.constant 128 : i32
    %c0_i32_60 = arith.constant 0 : i32
    %120 = arith.cmpi eq, %c128_i32_59, %c0_i32_60 : i32
    %c1_i32_61 = arith.constant 1 : i32
    %121 = arith.select %120, %c1_i32_61, %c128_i32_59 : i32
    %122 = vector.broadcast %121 : i32 to vector<256x1xi32>
    %123 = arith.remsi %119, %122 : vector<256x1xi32>
    %c0_i32_62 = arith.constant 0 : i32
    %124 = vector.broadcast %c0_i32_62 : i32 to vector<256x1xi32>
    %125 = arith.cmpi ne, %123, %124 : vector<256x1xi32>
    %c0_i32_63 = arith.constant 0 : i32
    %126 = vector.broadcast %c0_i32_63 : i32 to vector<256x1xi32>
    %127 = arith.cmpi slt, %123, %126 : vector<256x1xi32>
    %c0_i32_64 = arith.constant 0 : i32
    %128 = arith.cmpi slt, %121, %c0_i32_64 : i32
    %129 = vector.broadcast %128 : i1 to vector<256x1xi1>
    %130 = vector.broadcast %129 : vector<256x1xi1> to vector<256x1xi1>
    %131 = arith.xori %127, %130 : vector<256x1xi1>
    %132 = arith.andi %131, %125 : vector<256x1xi1>
    %133 = vector.broadcast %121 : i32 to vector<256x1xi32>
    %134 = arith.addi %123, %133 : vector<256x1xi32>
    %135 = arith.select %132, %134, %123 : vector<256x1xi1>, vector<256x1xi32>
    %136 = vector.broadcast %135 : vector<256x1xi32> to vector<256x128xi32>
    %137 = arith.cmpi eq, %136, %17 : vector<256x128xi32>
    %cst_65 = arith.constant 1.000000e+00 : f32
    %cst_66 = arith.constant 0.000000e+00 : f32
    %138 = vector.broadcast %cst_65 : f32 to vector<256x128xf32>
    %139 = vector.broadcast %cst_66 : f32 to vector<256x128xf32>
    %140 = arith.select %137, %138, %139 : vector<256x128xi1>, vector<256x128xf32>
    %c2_67 = arith.constant 2 : index
    %c0_68 = arith.constant 0 : index
    %c0_69 = arith.constant 0 : index
    %141 = vector.load %arg4[%c2_67, %c0_68, %c0_69] : memref<4x128x32xf32, #tpu.memory_space<vmem>>, vector<1x128x32xf32>
    %142 = vector.shape_cast %141 : vector<1x128x32xf32> to vector<128x32xf32>
    %cst_70 = arith.constant dense<0.000000e+00> : vector<256x32xf32>
    %143 = tpu.matmul %140, %142, %cst_70 {dimension_numbers = #tpu.dot_dimension_numbers<[1], [0], [0], [1], [0, 0, 1, 1], [], []>} : vector<256x128xf32>, vector<128x32xf32>, vector<256x32xf32> -> vector<256x32xf32>
    %c0_71 = arith.constant 0 : index
    %c64 = arith.constant 64 : index
    %144 = vector.load %arg5[%c0_71, %c64] : memref<16x128xf32, #tpu.memory_space<vmem>>, vector<16x32xf32>
    %cst_72 = arith.constant dense<0.000000e+00> : vector<256x32xf32>
    %145 = tpu.matmul %24, %144, %cst_72 {dimension_numbers = #tpu.dot_dimension_numbers<[1], [0], [0], [1], [0, 0, 1, 1], [], []>} : vector<256x16xf32>, vector<16x32xf32>, vector<256x32xf32> -> vector<256x32xf32>
    %146 = arith.addf %143, %145 : vector<256x32xf32>
    %c0_73 = arith.constant 0 : index
    %c64_74 = arith.constant 64 : index
    %147 = vector.load %arg6[%c0_73, %c64_74] : memref<256x128xf32, #tpu.memory_space<vmem>>, vector<256x32xf32>
    tpu.vector_store %arg6[%c0_73, %c64_74], %146 {strides = array<i32>} : memref<256x128xf32, #tpu.memory_space<vmem>>, vector<256x32xf32>,
    %c3 = arith.constant 3 : index
    %148 = memref.load %arg1[%c3] : memref<4xi32, #tpu.memory_space<smem>>
    %c128_i32_75 = arith.constant 128 : i32
    %c0_i32_76 = arith.constant 0 : i32
    %149 = arith.cmpi eq, %c128_i32_75, %c0_i32_76 : i32
    %c1_i32_77 = arith.constant 1 : i32
    %150 = arith.select %149, %c1_i32_77, %c128_i32_75 : i32
    %151 = arith.remsi %148, %150 : i32
    %c0_i32_78 = arith.constant 0 : i32
    %152 = arith.cmpi ne, %151, %c0_i32_78 : i32
    %c0_i32_79 = arith.constant 0 : i32
    %153 = arith.cmpi slt, %151, %c0_i32_79 : i32
    %c0_i32_80 = arith.constant 0 : i32
    %154 = arith.cmpi slt, %150, %c0_i32_80 : i32
    %155 = arith.xori %153, %154 : i1
    %156 = arith.andi %155, %152 : i1
    %157 = arith.addi %151, %150 : i32
    %158 = arith.select %156, %157, %151 : i32
    %159 = vector.broadcast %158 : i32 to vector<256x1xi32>
    %160 = arith.muli %16, %159 : vector<256x1xi32>
    %c128_i32_81 = arith.constant 128 : i32
    %c0_i32_82 = arith.constant 0 : i32
    %161 = arith.cmpi eq, %c128_i32_81, %c0_i32_82 : i32
    %c1_i32_83 = arith.constant 1 : i32
    %162 = arith.select %161, %c1_i32_83, %c128_i32_81 : i32
    %163 = vector.broadcast %162 : i32 to vector<256x1xi32>
    %164 = arith.remsi %160, %163 : vector<256x1xi32>
    %c0_i32_84 = arith.constant 0 : i32
    %165 = vector.broadcast %c0_i32_84 : i32 to vector<256x1xi32>
    %166 = arith.cmpi ne, %164, %165 : vector<256x1xi32>
    %c0_i32_85 = arith.constant 0 : i32
    %167 = vector.broadcast %c0_i32_85 : i32 to vector<256x1xi32>
    %168 = arith.cmpi slt, %164, %167 : vector<256x1xi32>
    %c0_i32_86 = arith.constant 0 : i32
    %169 = arith.cmpi slt, %162, %c0_i32_86 : i32
    %170 = vector.broadcast %169 : i1 to vector<256x1xi1>
    %171 = vector.broadcast %170 : vector<256x1xi1> to vector<256x1xi1>
    %172 = arith.xori %168, %171 : vector<256x1xi1>
    %173 = arith.andi %172, %166 : vector<256x1xi1>
    %174 = vector.broadcast %162 : i32 to vector<256x1xi32>
    %175 = arith.addi %164, %174 : vector<256x1xi32>
    %176 = arith.select %173, %175, %164 : vector<256x1xi1>, vector<256x1xi32>
    %177 = vector.broadcast %176 : vector<256x1xi32> to vector<256x128xi32>
    %178 = arith.cmpi eq, %177, %17 : vector<256x128xi32>
    %cst_87 = arith.constant 1.000000e+00 : f32
    %cst_88 = arith.constant 0.000000e+00 : f32
    %179 = vector.broadcast %cst_87 : f32 to vector<256x128xf32>
    %180 = vector.broadcast %cst_88 : f32 to vector<256x128xf32>
    %181 = arith.select %178, %179, %180 : vector<256x128xi1>, vector<256x128xf32>
    %c3_89 = arith.constant 3 : index
    %c0_90 = arith.constant 0 : index
    %c0_91 = arith.constant 0 : index
    %182 = vector.load %arg4[%c3_89, %c0_90, %c0_91] : memref<4x128x32xf32, #tpu.memory_space<vmem>>, vector<1x128x32xf32>
    %183 = vector.shape_cast %182 : vector<1x128x32xf32> to vector<128x32xf32>
    %cst_92 = arith.constant dense<0.000000e+00> : vector<256x32xf32>
    %184 = tpu.matmul %181, %183, %cst_92 {dimension_numbers = #tpu.dot_dimension_numbers<[1], [0], [0], [1], [0, 0, 1, 1], [], []>} : vector<256x128xf32>, vector<128x32xf32>, vector<256x32xf32> -> vector<256x32xf32>
    %c0_93 = arith.constant 0 : index
    %c96 = arith.constant 96 : index
    %185 = vector.load %arg5[%c0_93, %c96] : memref<16x128xf32, #tpu.memory_space<vmem>>, vector<16x32xf32>
    %cst_94 = arith.constant dense<0.000000e+00> : vector<256x32xf32>
    %186 = tpu.matmul %24, %185, %cst_94 {dimension_numbers = #tpu.dot_dimension_numbers<[1], [0], [0], [1], [0, 0, 1, 1], [], []>} : vector<256x16xf32>, vector<16x32xf32>, vector<256x32xf32> -> vector<256x32xf32>
    %187 = arith.addf %184, %186 : vector<256x32xf32>
    %c0_95 = arith.constant 0 : index
    %c96_96 = arith.constant 96 : index
    %188 = vector.load %arg6[%c0_95, %c96_96] : memref<256x128xf32, #tpu.memory_space<vmem>>, vector<256x32xf32>
    tpu.vector_store %arg6[%c0_95, %c96_96], %187 {strides = array<i32>} : memref<256x128xf32, #tpu.memory_space<vmem>>, vector<256x32xf32>,
    return
  }
  func.func @transform_0(%arg0: i32, %arg1: memref<4xi32, #tpu.memory_space<smem>>) -> (i32, i32) {
    %c0_i32 = arith.constant 0 : i32
    %c0_i32_0 = arith.constant 0 : i32
    return %arg0, %c0_i32 : i32, i32
  }
  func.func @transform_1(%arg0: i32, %arg1: memref<4xi32, #tpu.memory_space<smem>>) -> (i32, i32) {
    %c0_i32 = arith.constant 0 : i32
    %c0_i32_0 = arith.constant 0 : i32
    return %arg0, %c0_i32 : i32, i32
  }
  func.func @transform_2(%arg0: i32, %arg1: memref<4xi32, #tpu.memory_space<smem>>) -> (i32, i32, i32) {
    %c0_i32 = arith.constant 0 : i32
    %c0_i32_0 = arith.constant 0 : i32
    %c0_i32_1 = arith.constant 0 : i32
    %c0_i32_2 = arith.constant 0 : i32
    return %c0_i32, %c0_i32_0, %c0_i32_1 : i32, i32, i32
  }
  func.func @transform_3(%arg0: i32, %arg1: memref<4xi32, #tpu.memory_space<smem>>) -> (i32, i32) {
    %c0_i32 = arith.constant 0 : i32
    %c0_i32_0 = arith.constant 0 : i32
    %c0_i32_1 = arith.constant 0 : i32
    return %c0_i32, %c0_i32_0 : i32, i32
  }
  func.func @transform_4(%arg0: i32, %arg1: memref<4xi32, #tpu.memory_space<smem>>) -> (i32, i32) {
    %c0_i32 = arith.constant 0 : i32
    %c0_i32_0 = arith.constant 0 : i32
    return %arg0, %c0_i32 : i32, i32
  }
}

</mosaic_0001>

<llo_original>
// kernel: tpu_custom_call.1
$region0: #{tpu_custom_call.1}
  #allocation0 [shape = 'u32[]', space=smem, size = 0x4, offset = 0x4, fixed_abs, tag = 'smem constant byte address 0x4 - core index']
  #allocation1 [shape = 'u32[144,128]{1,0:T(1,128)}', space=vmem, size = 0x12000, scoped, tag = 'internal scratch']
  #allocation2 [shape = 's32[1]{0}', space=sflag, size = 0x4, scoped, tag = 'scoped memory for tpu_custom_call.1']
  #allocation3 [shape = 'u8[512]{0}', space=smem, size = 0x200, scoped, tag = 'prefetched SMEM operand 0']
  %s0 = inlined_call_operand.vmem [shape: s32[4], index: 0, kind: input, shape index: {}]
  %s1 = inlined_call_operand.vmem [shape: s32[256,1], index: 1, kind: input, shape index: {}]
  %s2 = inlined_call_operand.vmem [shape: s32[256,1], index: 2, kind: input, shape index: {}]
  %s3 = inlined_call_operand.vmem [shape: f32[4,128,32], index: 3, kind: input, shape index: {}]
  %s4 = inlined_call_operand.vmem [shape: f32[16,128], index: 4, kind: input, shape index: {}]
  %s5 = inlined_call_operand.hbm [shape: f32[256,128], index: 5, kind: output, shape index: {}]
  %s6 = sld [smem:[#allocation0]]
  $region26: #{tpu_custom_call.1} parent=0
    _
  %s8 = ssub.s32 1, %s6
  %s9 = scalar_select 0, %s8, %s6
  %s10 = sshll.u32 %s0, 4
  %s11 = int_to_ptr.vmem [resolvable:$true] %s10
  %13 = dma.vmem_to_smem %s11, 16, [#allocation3], [#allocation2]
  %14 = dma.done [#allocation2], 16
  %15 = sfence
  $region1: #{tpu_custom_call.1} parent=0
    #allocation4 [shape = 'u8[131072]{0}', space=vmem, size = 0x20000, scoped, tag = 'output window, operand 0, single buffered']
    #allocation5 [shape = 's32[1]{0}', space=sflag, size = 0x4, scoped, tag = 'scoped memory for tpu_custom_call.1']
    %16 = vsyncpa [#allocation5], 0
    // Predicated region
    $region2: #{tpu_custom_call.1} parent=1 // pred_check
      _
    $region3: #{tpu_custom_call.1} parent=1 // pred_check_branch
      %18 = sbr.rel (0) target = $region5
    $region4: #{tpu_custom_call.1} parent=1 // pred_region
      _
    $region5: #{tpu_custom_call.1} parent=1 // pred_fallthru
      _
    // Predicated region
    $region6: #{tpu_custom_call.1} parent=1 // pred_check
      _
    $region7: #{tpu_custom_call.1} parent=1 // pred_check_branch
      %20 = sbr.rel (0) target = $region9
    $region8: #{tpu_custom_call.1} parent=1 // pred_region
      _
    $region9: #{tpu_custom_call.1} parent=1 // pred_fallthru
      _
    // Predicated region
    $region10: #{tpu_custom_call.1} parent=1 // pred_check
      _
    $region11: #{tpu_custom_call.1} parent=1 // pred_check_branch
      %22 = sbr.rel (0) target = $region13
    $region12: #{tpu_custom_call.1} parent=1 // pred_region
      _
    $region13: #{tpu_custom_call.1} parent=1 // pred_fallthru
      _
    // Predicated region
    $region14: #{tpu_custom_call.1} parent=1 // pred_check
      _
    $region15: #{tpu_custom_call.1} parent=1 // pred_check_branch
      %24 = sbr.rel (0) target = $region17
    $region16: #{tpu_custom_call.1} parent=1 // pred_region
      _
    $region17: #{tpu_custom_call.1} parent=1 // pred_fallthru
      _
    %v25 = vld [vmem:[%s1] sm:$0xff]
    %v26 = vld [vmem:[%s1 + $0x8] sm:$0xff]
    %v27 = vld [vmem:[%s1 + $0x10] sm:$0xff]
    %v28 = vld [vmem:[%s1 + $0x18] sm:$0xff]
    %v29 = vld [vmem:[%s1 + $0x20] sm:$0xff]
    %v30 = vld [vmem:[%s1 + $0x28] sm:$0xff]
    %v31 = vld [vmem:[%s1 + $0x30] sm:$0xff]
    %v32 = vld [vmem:[%s1 + $0x38] sm:$0xff]
    %v33 = vld [vmem:[%s1 + $0x40] sm:$0xff]
    %v34 = vld [vmem:[%s1 + $0x48] sm:$0xff]
    %v35 = vld [vmem:[%s1 + $0x50] sm:$0xff]
    %v36 = vld [vmem:[%s1 + $0x58] sm:$0xff]
    %v37 = vld [vmem:[%s1 + $0x60] sm:$0xff]
    %v38 = vld [vmem:[%s1 + $0x68] sm:$0xff]
    %v39 = vld [vmem:[%s1 + $0x70] sm:$0xff]
    %v40 = vld [vmem:[%s1 + $0x78] sm:$0xff]
    %v41 = vld [vmem:[%s1 + $0x80] sm:$0xff]
    %v42 = vld [vmem:[%s1 + $0x88] sm:$0xff]
    %v43 = vld [vmem:[%s1 + $0x90] sm:$0xff]
    %v44 = vld [vmem:[%s1 + $0x98] sm:$0xff]
    %v45 = vld [vmem:[%s1 + $0xa0] sm:$0xff]
    %v46 = vld [vmem:[%s1 + $0xa8] sm:$0xff]
    %v47 = vld [vmem:[%s1 + $0xb0] sm:$0xff]
    %v48 = vld [vmem:[%s1 + $0xb8] sm:$0xff]
    %v49 = vld [vmem:[%s1 + $0xc0] sm:$0xff]
    %v50 = vld [vmem:[%s1 + $0xc8] sm:$0xff]
    %v51 = vld [vmem:[%s1 + $0xd0] sm:$0xff]
    %v52 = vld [vmem:[%s1 + $0xd8] sm:$0xff]
    %v53 = vld [vmem:[%s1 + $0xe0] sm:$0xff]
    %v54 = vld [vmem:[%s1 + $0xe8] sm:$0xff]
    %v55 = vld [vmem:[%s1 + $0xf0] sm:$0xff]
    %v56 = vld [vmem:[%s1 + $0xf8] sm:$0xff]
    %vm57 = vcmp.lt.s32.totalorder %v25, 0
    %v58 = vsub.s32 0, %v25
    %v59 = vsel %vm57, %v58, %v25
    %v60 = vshrl.u32 %v59, 7
    %v61 = vand.u32 %v59, 127
    %v62 = vsub.s32 0, %v61
    %v63 = vsel %vm57, %v62, %v61
    %vm64 = vcmp.lt.s32.totalorder %v26, 0
    %v65 = vsub.s32 0, %v26
    %v66 = vsel %vm64, %v65, %v26
    %v67 = vshrl.u32 %v66, 7
    %v68 = vand.u32 %v66, 127
    %v69 = vsub.s32 0, %v68
    %v70 = vsel %vm64, %v69, %v68
    %vm71 = vcmp.lt.s32.totalorder %v27, 0
    %v72 = vsub.s32 0, %v27
    %v73 = vsel %vm71, %v72, %v27
    %v74 = vshrl.u32 %v73, 7
    %v75 = vand.u32 %v73, 127
    %v76 = vsub.s32 0, %v75
    %v77 = vsel %vm71, %v76, %v75
    %vm78 = vcmp.lt.s32.totalorder %v28, 0
    %v79 = vsub.s32 0, %v28
    %v80 = vsel %vm78, %v79, %v28
    %v81 = vshrl.u32 %v80, 7
    %v82 = vand.u32 %v80, 127
    %v83 = vsub.s32 0, %v82
    %v84 = vsel %vm78, %v83, %v82
    %vm85 = vcmp.lt.s32.totalorder %v29, 0
    %v86 = vsub.s32 0, %v29
    %v87 = vsel %vm85, %v86, %v29
    %v88 = vshrl.u32 %v87, 7
    %v89 = vand.u32 %v87, 127
    %v90 = vsub.s32 0, %v89
    %v91 = vsel %vm85, %v90, %v89
    %vm92 = vcmp.lt.s32.totalorder %v30, 0
    %v93 = vsub.s32 0, %v30
    %v94 = vsel %vm92, %v93, %v30
    %v95 = vshrl.u32 %v94, 7
    %v96 = vand.u32 %v94, 127
    %v97 = vsub.s32 0, %v96
    %v98 = vsel %vm92, %v97, %v96
    %vm99 = vcmp.lt.s32.totalorder %v31, 0
    %v100 = vsub.s32 0, %v31
    %v101 = vsel %vm99, %v100, %v31
    %v102 = vshrl.u32 %v101, 7
    %v103 = vand.u32 %v101, 127
    %v104 = vsub.s32 0, %v103
    %v105 = vsel %vm99, %v104, %v103
    %vm106 = vcmp.lt.s32.totalorder %v32, 0
    %v107 = vsub.s32 0, %v32
    %v108 = vsel %vm106, %v107, %v32
    %v109 = vshrl.u32 %v108, 7
    %v110 = vand.u32 %v108, 127
    %v111 = vsub.s32 0, %v110
    %v112 = vsel %vm106, %v111, %v110
    %vm113 = vcmp.lt.s32.totalorder %v33, 0
    %v114 = vsub.s32 0, %v33
    %v115 = vsel %vm113, %v114, %v33
    %v116 = vshrl.u32 %v115, 7
    %v117 = vand.u32 %v115, 127
    %v118 = vsub.s32 0, %v117
    %v119 = vsel %vm113, %v118, %v117
    %vm120 = vcmp.lt.s32.totalorder %v34, 0
    %v121 = vsub.s32 0, %v34
    %v122 = vsel %vm120, %v121, %v34
    %v123 = vshrl.u32 %v122, 7
    %v124 = vand.u32 %v122, 127
    %v125 = vsub.s32 0, %v124
    %v126 = vsel %vm120, %v125, %v124
    %vm127 = vcmp.lt.s32.totalorder %v35, 0
    %v128 = vsub.s32 0, %v35
    %v129 = vsel %vm127, %v128, %v35
    %v130 = vshrl.u32 %v129, 7
    %v131 = vand.u32 %v129, 127
    %v132 = vsub.s32 0, %v131
    %v133 = vsel %vm127, %v132, %v131
    %vm134 = vcmp.lt.s32.totalorder %v36, 0
    %v135 = vsub.s32 0, %v36
    %v136 = vsel %vm134, %v135, %v36
    %v137 = vshrl.u32 %v136, 7
    %v138 = vand.u32 %v136, 127
    %v139 = vsub.s32 0, %v138
    %v140 = vsel %vm134, %v139, %v138
    %vm141 = vcmp.lt.s32.totalorder %v37, 0
    %v142 = vsub.s32 0, %v37
    %v143 = vsel %vm141, %v142, %v37
    %v144 = vshrl.u32 %v143, 7
    %v145 = vand.u32 %v143, 127
    %v146 = vsub.s32 0, %v145
    %v147 = vsel %vm141, %v146, %v145
    %vm148 = vcmp.lt.s32.totalorder %v38, 0
    %v149 = vsub.s32 0, %v38
    %v150 = vsel %vm148, %v149, %v38
    %v151 = vshrl.u32 %v150, 7
    %v152 = vand.u32 %v150, 127
    %v153 = vsub.s32 0, %v152
    %v154 = vsel %vm148, %v153, %v152
    %vm155 = vcmp.lt.s32.totalorder %v39, 0
    %v156 = vsub.s32 0, %v39
    %v157 = vsel %vm155, %v156, %v39
    %v158 = vshrl.u32 %v157, 7
    %v159 = vand.u32 %v157, 127
    %v160 = vsub.s32 0, %v159
    %v161 = vsel %vm155, %v160, %v159
    %vm162 = vcmp.lt.s32.totalorder %v40, 0
    %v163 = vsub.s32 0, %v40
    %v164 = vsel %vm162, %v163, %v40
    %v165 = vshrl.u32 %v164, 7
    %v166 = vand.u32 %v164, 127
    %v167 = vsub.s32 0, %v166
    %v168 = vsel %vm162, %v167, %v166
    %vm169 = vcmp.lt.s32.totalorder %v41, 0
    %v170 = vsub.s32 0, %v41
    %v171 = vsel %vm169, %v170, %v41
    %v172 = vshrl.u32 %v171, 7
    %v173 = vand.u32 %v171, 127
    %v174 = vsub.s32 0, %v173
    %v175 = vsel %vm169, %v174, %v173
    %vm176 = vcmp.lt.s32.totalorder %v42, 0
    %v177 = vsub.s32 0, %v42
    %v178 = vsel %vm176, %v177, %v42
    %v179 = vshrl.u32 %v178, 7
    %v180 = vand.u32 %v178, 127
    %v181 = vsub.s32 0, %v180
    %v182 = vsel %vm176, %v181, %v180
    %vm183 = vcmp.lt.s32.totalorder %v43, 0
    %v184 = vsub.s32 0, %v43
    %v185 = vsel %vm183, %v184, %v43
    %v186 = vshrl.u32 %v185, 7
    %v187 = vand.u32 %v185, 127
    %v188 = vsub.s32 0, %v187
    %v189 = vsel %vm183, %v188, %v187
    %vm190 = vcmp.lt.s32.totalorder %v44, 0
    %v191 = vsub.s32 0, %v44
    %v192 = vsel %vm190, %v191, %v44
    %v193 = vshrl.u32 %v192, 7
    %v194 = vand.u32 %v192, 127
    %v195 = vsub.s32 0, %v194
    %v196 = vsel %vm190, %v195, %v194
    %vm197 = vcmp.lt.s32.totalorder %v45, 0
    %v198 = vsub.s32 0, %v45
    %v199 = vsel %vm197, %v198, %v45
    %v200 = vshrl.u32 %v199, 7
    %v201 = vand.u32 %v199, 127
    %v202 = vsub.s32 0, %v201
    %v203 = vsel %vm197, %v202, %v201
    %vm204 = vcmp.lt.s32.totalorder %v46, 0
    %v205 = vsub.s32 0, %v46
    %v206 = vsel %vm204, %v205, %v46
    %v207 = vshrl.u32 %v206, 7
    %v208 = vand.u32 %v206, 127
    %v209 = vsub.s32 0, %v208
    %v210 = vsel %vm204, %v209, %v208
    %vm211 = vcmp.lt.s32.totalorder %v47, 0
    %v212 = vsub.s32 0, %v47
    %v213 = vsel %vm211, %v212, %v47
    %v214 = vshrl.u32 %v213, 7
    %v215 = vand.u32 %v213, 127
    %v216 = vsub.s32 0, %v215
    %v217 = vsel %vm211, %v216, %v215
    %vm218 = vcmp.lt.s32.totalorder %v48, 0
    %v219 = vsub.s32 0, %v48
    %v220 = vsel %vm218, %v219, %v48
    %v221 = vshrl.u32 %v220, 7
    %v222 = vand.u32 %v220, 127
    %v223 = vsub.s32 0, %v222
    %v224 = vsel %vm218, %v223, %v222
    %vm225 = vcmp.lt.s32.totalorder %v49, 0
    %v226 = vsub.s32 0, %v49
    %v227 = vsel %vm225, %v226, %v49
    %v228 = vshrl.u32 %v227, 7
    %v229 = vand.u32 %v227, 127
    %v230 = vsub.s32 0, %v229
    %v231 = vsel %vm225, %v230, %v229
    %vm232 = vcmp.lt.s32.totalorder %v50, 0
    %v233 = vsub.s32 0, %v50
    %v234 = vsel %vm232, %v233, %v50
    %v235 = vshrl.u32 %v234, 7
    %v236 = vand.u32 %v234, 127
    %v237 = vsub.s32 0, %v236
    %v238 = vsel %vm232, %v237, %v236
    %vm239 = vcmp.lt.s32.totalorder %v51, 0
    %v240 = vsub.s32 0, %v51
    %v241 = vsel %vm239, %v240, %v51
    %v242 = vshrl.u32 %v241, 7
    %v243 = vand.u32 %v241, 127
    %v244 = vsub.s32 0, %v243
    %v245 = vsel %vm239, %v244, %v243
    %vm246 = vcmp.lt.s32.totalorder %v52, 0
    %v247 = vsub.s32 0, %v52
    %v248 = vsel %vm246, %v247, %v52
    %v249 = vshrl.u32 %v248, 7
    %v250 = vand.u32 %v248, 127
    %v251 = vsub.s32 0, %v250
    %v252 = vsel %vm246, %v251, %v250
    %vm253 = vcmp.lt.s32.totalorder %v53, 0
    %v254 = vsub.s32 0, %v53
    %v255 = vsel %vm253, %v254, %v53
    %v256 = vshrl.u32 %v255, 7
    %v257 = vand.u32 %v255, 127
    %v258 = vsub.s32 0, %v257
    %v259 = vsel %vm253, %v258, %v257
    %vm260 = vcmp.lt.s32.totalorder %v54, 0
    %v261 = vsub.s32 0, %v54
    %v262 = vsel %vm260, %v261, %v54
    %v263 = vshrl.u32 %v262, 7
    %v264 = vand.u32 %v262, 127
    %v265 = vsub.s32 0, %v264
    %v266 = vsel %vm260, %v265, %v264
    %vm267 = vcmp.lt.s32.totalorder %v55, 0
    %v268 = vsub.s32 0, %v55
    %v269 = vsel %vm267, %v268, %v55
    %v270 = vshrl.u32 %v269, 7
    %v271 = vand.u32 %v269, 127
    %v272 = vsub.s32 0, %v271
    %v273 = vsel %vm267, %v272, %v271
    %vm274 = vcmp.lt.s32.totalorder %v56, 0
    %v275 = vsub.s32 0, %v56
    %v276 = vsel %vm274, %v275, %v56
    %v277 = vshrl.u32 %v276, 7
    %v278 = vand.u32 %v276, 127
    %v279 = vsub.s32 0, %v278
    %v280 = vsel %vm274, %v279, %v278
    %vm281 = vcmp.ne.s32.totalorder %v63, 0
    %vm282 = vcmp.ne.s32.totalorder %v70, 0
    %vm283 = vcmp.ne.s32.totalorder %v77, 0
    %vm284 = vcmp.ne.s32.totalorder %v84, 0
    %vm285 = vcmp.ne.s32.totalorder %v91, 0
    %vm286 = vcmp.ne.s32.totalorder %v98, 0
    %vm287 = vcmp.ne.s32.totalorder %v105, 0
    %vm288 = vcmp.ne.s32.totalorder %v112, 0
    %vm289 = vcmp.ne.s32.totalorder %v119, 0
    %vm290 = vcmp.ne.s32.totalorder %v126, 0
    %vm291 = vcmp.ne.s32.totalorder %v133, 0
    %vm292 = vcmp.ne.s32.totalorder %v140, 0
    %vm293 = vcmp.ne.s32.totalorder %v147, 0
    %vm294 = vcmp.ne.s32.totalorder %v154, 0
    %vm295 = vcmp.ne.s32.totalorder %v161, 0
    %vm296 = vcmp.ne.s32.totalorder %v168, 0
    %vm297 = vcmp.ne.s32.totalorder %v175, 0
    %vm298 = vcmp.ne.s32.totalorder %v182, 0
    %vm299 = vcmp.ne.s32.totalorder %v189, 0
    %vm300 = vcmp.ne.s32.totalorder %v196, 0
    %vm301 = vcmp.ne.s32.totalorder %v203, 0
    %vm302 = vcmp.ne.s32.totalorder %v210, 0
    %vm303 = vcmp.ne.s32.totalorder %v217, 0
    %vm304 = vcmp.ne.s32.totalorder %v224, 0
    %vm305 = vcmp.ne.s32.totalorder %v231, 0
    %vm306 = vcmp.ne.s32.totalorder %v238, 0
    %vm307 = vcmp.ne.s32.totalorder %v245, 0
    %vm308 = vcmp.ne.s32.totalorder %v252, 0
    %vm309 = vcmp.ne.s32.totalorder %v259, 0
    %vm310 = vcmp.ne.s32.totalorder %v266, 0
    %vm311 = vcmp.ne.s32.totalorder %v273, 0
    %vm312 = vcmp.ne.s32.totalorder %v280, 0
    %vm313 = vcmp.lt.s32.totalorder %v63, 0
    %vm314 = vcmp.lt.s32.totalorder %v70, 0
    %vm315 = vcmp.lt.s32.totalorder %v77, 0
    %vm316 = vcmp.lt.s32.totalorder %v84, 0
    %vm317 = vcmp.lt.s32.totalorder %v91, 0
    %vm318 = vcmp.lt.s32.totalorder %v98, 0
    %vm319 = vcmp.lt.s32.totalorder %v105, 0
    %vm320 = vcmp.lt.s32.totalorder %v112, 0
    %vm321 = vcmp.lt.s32.totalorder %v119, 0
    %vm322 = vcmp.lt.s32.totalorder %v126, 0
    %vm323 = vcmp.lt.s32.totalorder %v133, 0
    %vm324 = vcmp.lt.s32.totalorder %v140, 0
    %vm325 = vcmp.lt.s32.totalorder %v147, 0
    %vm326 = vcmp.lt.s32.totalorder %v154, 0
    %vm327 = vcmp.lt.s32.totalorder %v161, 0
    %vm328 = vcmp.lt.s32.totalorder %v168, 0
    %vm329 = vcmp.lt.s32.totalorder %v175, 0
    %vm330 = vcmp.lt.s32.totalorder %v182, 0
    %vm331 = vcmp.lt.s32.totalorder %v189, 0
    %vm332 = vcmp.lt.s32.totalorder %v196, 0
    %vm333 = vcmp.lt.s32.totalorder %v203, 0
    %vm334 = vcmp.lt.s32.totalorder %v210, 0
    %vm335 = vcmp.lt.s32.totalorder %v217, 0
    %vm336 = vcmp.lt.s32.totalorder %v224, 0
    %vm337 = vcmp.lt.s32.totalorder %v231, 0
    %vm338 = vcmp.lt.s32.totalorder %v238, 0
    %vm339 = vcmp.lt.s32.totalorder %v245, 0
    %vm340 = vcmp.lt.s32.totalorder %v252, 0
    %vm341 = vcmp.lt.s32.totalorder %v259, 0
    %vm342 = vcmp.lt.s32.totalorder %v266, 0
    %vm343 = vcmp.lt.s32.totalorder %v273, 0
    %vm344 = vcmp.lt.s32.totalorder %v280, 0
    %vm345 = vmand %vm313, %vm281
    %vm346 = vmand %vm314, %vm282
    %vm347 = vmand %vm315, %vm283
    %vm348 = vmand %vm316, %vm284
    %vm349 = vmand %vm317, %vm285
    %vm350 = vmand %vm318, %vm286
    %vm351 = vmand %vm319, %vm287
    %vm352 = vmand %vm320, %vm288
    %vm353 = vmand %vm321, %vm289
    %vm354 = vmand %vm322, %vm290
    %vm355 = vmand %vm323, %vm291
    %vm356 = vmand %vm324, %vm292
    %vm357 = vmand %vm325, %vm293
    %vm358 = vmand %vm326, %vm294
    %vm359 = vmand %vm327, %vm295
    %vm360 = vmand %vm328, %vm296
    %vm361 = vmand %vm329, %vm297
    %vm362 = vmand %vm330, %vm298
    %vm363 = vmand %vm331, %vm299
    %vm364 = vmand %vm332, %vm300
    %vm365 = vmand %vm333, %vm301
    %vm366 = vmand %vm334, %vm302
    %vm367 = vmand %vm335, %vm303
    %vm368 = vmand %vm336, %vm304
    %vm369 = vmand %vm337, %vm305
    %vm370 = vmand %vm338, %vm306
    %vm371 = vmand %vm339, %vm307
    %vm372 = vmand %vm340, %vm308
    %vm373 = vmand %vm341, %vm309
    %vm374 = vmand %vm342, %vm310
    %vm375 = vmand %vm343, %vm311
    %vm376 = vmand %vm344, %vm312
    %v377 = vadd.s32 %v63, 128
    %v378 = vadd.s32 %v70, 128
    %v379 = vadd.s32 %v77, 128
    %v380 = vadd.s32 %v84, 128
    %v381 = vadd.s32 %v91, 128
    %v382 = vadd.s32 %v98, 128
    %v383 = vadd.s32 %v105, 128
    %v384 = vadd.s32 %v112, 128
    %v385 = vadd.s32 %v119, 128
    %v386 = vadd.s32 %v126, 128
    %v387 = vadd.s32 %v133, 128
    %v388 = vadd.s32 %v140, 128
    %v389 = vadd.s32 %v147, 128
    %v390 = vadd.s32 %v154, 128
    %v391 = vadd.s32 %v161, 128
    %v392 = vadd.s32 %v168, 128
    %v393 = vadd.s32 %v175, 128
    %v394 = vadd.s32 %v182, 128
    %v395 = vadd.s32 %v189, 128
    %v396 = vadd.s32 %v196, 128
    %v397 = vadd.s32 %v203, 128
    %v398 = vadd.s32 %v210, 128
    %v399 = vadd.s32 %v217, 128
    %v400 = vadd.s32 %v224, 128
    %v401 = vadd.s32 %v231, 128
    %v402 = vadd.s32 %v238, 128
    %v403 = vadd.s32 %v245, 128
    %v404 = vadd.s32 %v252, 128
    %v405 = vadd.s32 %v259, 128
    %v406 = vadd.s32 %v266, 128
    %v407 = vadd.s32 %v273, 128
    %v408 = vadd.s32 %v280, 128
    %v409 = vsel %vm345, %v377, %v63
    %v410 = vsel %vm346, %v378, %v70
    %v411 = vsel %vm347, %v379, %v77
    %v412 = vsel %vm348, %v380, %v84
    %v413 = vsel %vm349, %v381, %v91
    %v414 = vsel %vm350, %v382, %v98
    %v415 = vsel %vm351, %v383, %v105
    %v416 = vsel %vm352, %v384, %v112
    %v417 = vsel %vm353, %v385, %v119
    %v418 = vsel %vm354, %v386, %v126
    %v419 = vsel %vm355, %v387, %v133
    %v420 = vsel %vm356, %v388, %v140
    %v421 = vsel %vm357, %v389, %v147
    %v422 = vsel %vm358, %v390, %v154
    %v423 = vsel %vm359, %v391, %v161
    %v424 = vsel %vm360, %v392, %v168
    %v425 = vsel %vm361, %v393, %v175
    %v426 = vsel %vm362, %v394, %v182
    %v427 = vsel %vm363, %v395, %v189
    %v428 = vsel %vm364, %v396, %v196
    %v429 = vsel %vm365, %v397, %v203
    %v430 = vsel %vm366, %v398, %v210
    %v431 = vsel %vm367, %v399, %v217
    %v432 = vsel %vm368, %v400, %v224
    %v433 = vsel %vm369, %v401, %v231
    %v434 = vsel %vm370, %v402, %v238
    %v435 = vsel %vm371, %v403, %v245
    %v436 = vsel %vm372, %v404, %v252
    %v437 = vsel %vm373, %v405, %v259
    %v438 = vsel %vm374, %v406, %v266
    %v439 = vsel %vm375, %v407, %v273
    %v440 = vsel %vm376, %v408, %v280
    %v441 = vlaneseq
    %v442 = vand.u32 %v441, 127
    %v443 = vld [vmem:[%s2] sm:$0xff]
    %v444 = vld [vmem:[%s2 + $0x8] sm:$0xff]
    %v445 = vld [vmem:[%s2 + $0x10] sm:$0xff]
    %v446 = vld [vmem:[%s2 + $0x18] sm:$0xff]
    %v447 = vld [vmem:[%s2 + $0x20] sm:$0xff]
    %v448 = vld [vmem:[%s2 + $0x28] sm:$0xff]
    %v449 = vld [vmem:[%s2 + $0x30] sm:$0xff]
    %v450 = vld [vmem:[%s2 + $0x38] sm:$0xff]
    %v451 = vld [vmem:[%s2 + $0x40] sm:$0xff]
    %v452 = vld [vmem:[%s2 + $0x48] sm:$0xff]
    %v453 = vld [vmem:[%s2 + $0x50] sm:$0xff]
    %v454 = vld [vmem:[%s2 + $0x58] sm:$0xff]
    %v455 = vld [vmem:[%s2 + $0x60] sm:$0xff]
    %v456 = vld [vmem:[%s2 + $0x68] sm:$0xff]
    %v457 = vld [vmem:[%s2 + $0x70] sm:$0xff]
    %v458 = vld [vmem:[%s2 + $0x78] sm:$0xff]
    %v459 = vld [vmem:[%s2 + $0x80] sm:$0xff]
    %v460 = vld [vmem:[%s2 + $0x88] sm:$0xff]
    %v461 = vld [vmem:[%s2 + $0x90] sm:$0xff]
    %v462 = vld [vmem:[%s2 + $0x98] sm:$0xff]
    %v463 = vld [vmem:[%s2 + $0xa0] sm:$0xff]
    %v464 = vld [vmem:[%s2 + $0xa8] sm:$0xff]
    %v465 = vld [vmem:[%s2 + $0xb0] sm:$0xff]
    %v466 = vld [vmem:[%s2 + $0xb8] sm:$0xff]
    %v467 = vld [vmem:[%s2 + $0xc0] sm:$0xff]
    %v468 = vld [vmem:[%s2 + $0xc8] sm:$0xff]
    %v469 = vld [vmem:[%s2 + $0xd0] sm:$0xff]
    %v470 = vld [vmem:[%s2 + $0xd8] sm:$0xff]
    %v471 = vld [vmem:[%s2 + $0xe0] sm:$0xff]
    %v472 = vld [vmem:[%s2 + $0xe8] sm:$0xff]
    %v473 = vld [vmem:[%s2 + $0xf0] sm:$0xff]
    %v474 = vld [vmem:[%s2 + $0xf8] sm:$0xff]
    %475 = vset.pattern.permute.xlu0 0
    %476 = vperm.xlu0 %475, %v443
    %v477 = vpop.permute.xlu0 %476
    %478 = vset.pattern.permute.xlu0 0
    %479 = vperm.xlu0 %478, %v444
    %v480 = vpop.permute.xlu0 %479
    %481 = vset.pattern.permute.xlu0 0
    %482 = vperm.xlu0 %481, %v445
    %v483 = vpop.permute.xlu0 %482
    %484 = vset.pattern.permute.xlu0 0
    %485 = vperm.xlu0 %484, %v446
    %v486 = vpop.permute.xlu0 %485
    %487 = vset.pattern.permute.xlu0 0
    %488 = vperm.xlu0 %487, %v447
    %v489 = vpop.permute.xlu0 %488
    %490 = vset.pattern.permute.xlu0 0
    %491 = vperm.xlu0 %490, %v448
    %v492 = vpop.permute.xlu0 %491
    %493 = vset.pattern.permute.xlu0 0
    %494 = vperm.xlu0 %493, %v449
    %v495 = vpop.permute.xlu0 %494
    %496 = vset.pattern.permute.xlu0 0
    %497 = vperm.xlu0 %496, %v450
    %v498 = vpop.permute.xlu0 %497
    %499 = vset.pattern.permute.xlu0 0
    %500 = vperm.xlu0 %499, %v451
    %v501 = vpop.permute.xlu0 %500
    %502 = vset.pattern.permute.xlu0 0
    %503 = vperm.xlu0 %502, %v452
    %v504 = vpop.permute.xlu0 %503
    %505 = vset.pattern.permute.xlu0 0
    %506 = vperm.xlu0 %505, %v453
    %v507 = vpop.permute.xlu0 %506
    %508 = vset.pattern.permute.xlu0 0
    %509 = vperm.xlu0 %508, %v454
    %v510 = vpop.permute.xlu0 %509
    %511 = vset.pattern.permute.xlu0 0
    %512 = vperm.xlu0 %511, %v455
    %v513 = vpop.permute.xlu0 %512
    %514 = vset.pattern.permute.xlu0 0
    %515 = vperm.xlu0 %514, %v456
    %v516 = vpop.permute.xlu0 %515
    %517 = vset.pattern.permute.xlu0 0
    %518 = vperm.xlu0 %517, %v457
    %v519 = vpop.permute.xlu0 %518
    %520 = vset.pattern.permute.xlu0 0
    %521 = vperm.xlu0 %520, %v458
    %v522 = vpop.permute.xlu0 %521
    %523 = vset.pattern.permute.xlu0 0
    %524 = vperm.xlu0 %523, %v459
    %v525 = vpop.permute.xlu0 %524
    %526 = vset.pattern.permute.xlu0 0
    %527 = vperm.xlu0 %526, %v460
    %v528 = vpop.permute.xlu0 %527
    %529 = vset.pattern.permute.xlu0 0
    %530 = vperm.xlu0 %529, %v461
    %v531 = vpop.permute.xlu0 %530
    %532 = vset.pattern.permute.xlu0 0
    %533 = vperm.xlu0 %532, %v462
    %v534 = vpop.permute.xlu0 %533
    %535 = vset.pattern.permute.xlu0 0
    %536 = vperm.xlu0 %535, %v463
    %v537 = vpop.permute.xlu0 %536
    %538 = vset.pattern.permute.xlu0 0
    %539 = vperm.xlu0 %538, %v464
    %v540 = vpop.permute.xlu0 %539
    %541 = vset.pattern.permute.xlu0 0
    %542 = vperm.xlu0 %541, %v465
    %v543 = vpop.permute.xlu0 %542
    %544 = vset.pattern.permute.xlu0 0
    %545 = vperm.xlu0 %544, %v466
    %v546 = vpop.permute.xlu0 %545
    %547 = vset.pattern.permute.xlu0 0
    %548 = vperm.xlu0 %547, %v467
    %v549 = vpop.permute.xlu0 %548
    %550 = vset.pattern.permute.xlu0 0
    %551 = vperm.xlu0 %550, %v468
    %v552 = vpop.permute.xlu0 %551
    %553 = vset.pattern.permute.xlu0 0
    %554 = vperm.xlu0 %553, %v469
    %v555 = vpop.permute.xlu0 %554
    %556 = vset.pattern.permute.xlu0 0
    %557 = vperm.xlu0 %556, %v470
    %v558 = vpop.permute.xlu0 %557
    %559 = vset.pattern.permute.xlu0 0
    %560 = vperm.xlu0 %559, %v471
    %v561 = vpop.permute.xlu0 %560
    %562 = vset.pattern.permute.xlu0 0
    %563 = vperm.xlu0 %562, %v472
    %v564 = vpop.permute.xlu0 %563
    %565 = vset.pattern.permute.xlu0 0
    %566 = vperm.xlu0 %565, %v473
    %v567 = vpop.permute.xlu0 %566
    %568 = vset.pattern.permute.xlu0 0
    %569 = vperm.xlu0 %568, %v474
    %v570 = vpop.permute.xlu0 %569
    %vm571 = vcmp.eq.s32.totalorder %v477, %v442
    %vm572 = vcmp.eq.s32.totalorder %v480, %v442
    %vm573 = vcmp.eq.s32.totalorder %v483, %v442
    %vm574 = vcmp.eq.s32.totalorder %v486, %v442
    %vm575 = vcmp.eq.s32.totalorder %v489, %v442
    %vm576 = vcmp.eq.s32.totalorder %v492, %v442
    %vm577 = vcmp.eq.s32.totalorder %v495, %v442
    %vm578 = vcmp.eq.s32.totalorder %v498, %v442
    %vm579 = vcmp.eq.s32.totalorder %v501, %v442
    %vm580 = vcmp.eq.s32.totalorder %v504, %v442
    %vm581 = vcmp.eq.s32.totalorder %v507, %v442
    %vm582 = vcmp.eq.s32.totalorder %v510, %v442
    %vm583 = vcmp.eq.s32.totalorder %v513, %v442
    %vm584 = vcmp.eq.s32.totalorder %v516, %v442
    %vm585 = vcmp.eq.s32.totalorder %v519, %v442
    %vm586 = vcmp.eq.s32.totalorder %v522, %v442
    %vm587 = vcmp.eq.s32.totalorder %v525, %v442
    %vm588 = vcmp.eq.s32.totalorder %v528, %v442
    %vm589 = vcmp.eq.s32.totalorder %v531, %v442
    %vm590 = vcmp.eq.s32.totalorder %v534, %v442
    %vm591 = vcmp.eq.s32.totalorder %v537, %v442
    %vm592 = vcmp.eq.s32.totalorder %v540, %v442
    %vm593 = vcmp.eq.s32.totalorder %v543, %v442
    %vm594 = vcmp.eq.s32.totalorder %v546, %v442
    %vm595 = vcmp.eq.s32.totalorder %v549, %v442
    %vm596 = vcmp.eq.s32.totalorder %v552, %v442
    %vm597 = vcmp.eq.s32.totalorder %v555, %v442
    %vm598 = vcmp.eq.s32.totalorder %v558, %v442
    %vm599 = vcmp.eq.s32.totalorder %v561, %v442
    %vm600 = vcmp.eq.s32.totalorder %v564, %v442
    %vm601 = vcmp.eq.s32.totalorder %v567, %v442
    %vm602 = vcmp.eq.s32.totalorder %v570, %v442
    %v603 = vsel %vm571, 1.0, 0.0
    %v604 = vsel %vm572, 1.0, 0.0
    %v605 = vsel %vm573, 1.0, 0.0
    %v606 = vsel %vm574, 1.0, 0.0
    %v607 = vsel %vm575, 1.0, 0.0
    %v608 = vsel %vm576, 1.0, 0.0
    %v609 = vsel %vm577, 1.0, 0.0
    %v610 = vsel %vm578, 1.0, 0.0
    %v611 = vsel %vm579, 1.0, 0.0
    %v612 = vsel %vm580, 1.0, 0.0
    %v613 = vsel %vm581, 1.0, 0.0
    %v614 = vsel %vm582, 1.0, 0.0
    %v615 = vsel %vm583, 1.0, 0.0
    %v616 = vsel %vm584, 1.0, 0.0
    %v617 = vsel %vm585, 1.0, 0.0
    %v618 = vsel %vm586, 1.0, 0.0
    %v619 = vsel %vm587, 1.0, 0.0
    %v620 = vsel %vm588, 1.0, 0.0
    %v621 = vsel %vm589, 1.0, 0.0
    %v622 = vsel %vm590, 1.0, 0.0
    %v623 = vsel %vm591, 1.0, 0.0
    %v624 = vsel %vm592, 1.0, 0.0
    %v625 = vsel %vm593, 1.0, 0.0
    %v626 = vsel %vm594, 1.0, 0.0
    %v627 = vsel %vm595, 1.0, 0.0
    %v628 = vsel %vm596, 1.0, 0.0
    %v629 = vsel %vm597, 1.0, 0.0
    %v630 = vsel %vm598, 1.0, 0.0
    %v631 = vsel %vm599, 1.0, 0.0
    %v632 = vsel %vm600, 1.0, 0.0
    %v633 = vsel %vm601, 1.0, 0.0
    %v634 = vsel %vm602, 1.0, 0.0
    %s635 = sld [smem:[#allocation3]]
    %p636 = scmp.lt.s32.totalorder %s635, 0
    %s637 = ssub.s32 0, %s635
    %s638 = scalar_select %p636, %s637, %s635
    %s639 = sand.u32 %s638, 127
    %s640 = ssub.s32 0, %s639
    %s641 = scalar_select %p636, %s640, %s639
    %p642 = scmp.ne.s32.totalorder %s641, 0
    %p643 = scmp.lt.s32.totalorder %s641, 0
    %p644 = pnand %p643, %p642
    %p645 = pneg %p644
    %s646 = sadd.s32 %s641, 128
    %s647 = scalar_select %p645, %s646, %s641
    %v648 = vstv %s647
    %v649 = vmul.u32 %v409, %v648
    %v650 = vmul.u32 %v410, %v648
    %v651 = vmul.u32 %v411, %v648
    %v652 = vmul.u32 %v412, %v648
    %v653 = vmul.u32 %v413, %v648
    %v654 = vmul.u32 %v414, %v648
    %v655 = vmul.u32 %v415, %v648
    %v656 = vmul.u32 %v416, %v648
    %v657 = vmul.u32 %v417, %v648
    %v658 = vmul.u32 %v418, %v648
    %v659 = vmul.u32 %v419, %v648
    %v660 = vmul.u32 %v420, %v648
    %v661 = vmul.u32 %v421, %v648
    %v662 = vmul.u32 %v422, %v648
    %v663 = vmul.u32 %v423, %v648
    %v664 = vmul.u32 %v424, %v648
    %v665 = vmul.u32 %v425, %v648
    %v666 = vmul.u32 %v426, %v648
    %v667 = vmul.u32 %v427, %v648
    %v668 = vmul.u32 %v428, %v648
    %v669 = vmul.u32 %v429, %v648
    %v670 = vmul.u32 %v430, %v648
    %v671 = vmul.u32 %v431, %v648
    %v672 = vmul.u32 %v432, %v648
    %v673 = vmul.u32 %v433, %v648
    %v674 = vmul.u32 %v434, %v648
    %v675 = vmul.u32 %v435, %v648
    %v676 = vmul.u32 %v436, %v648
    %v677 = vmul.u32 %v437, %v648
    %v678 = vmul.u32 %v438, %v648
    %v679 = vmul.u32 %v439, %v648
    %v680 = vmul.u32 %v440, %v648
    %vm681 = vcmp.lt.s32.totalorder %v649, 0
    %v682 = vsub.s32 0, %v649
    %v683 = vsel %vm681, %v682, %v649
    %v684 = vshrl.u32 %v683, 7
    %v685 = vand.u32 %v683, 127
    %v686 = vsub.s32 0, %v685
    %v687 = vsel %vm681, %v686, %v685
    %vm688 = vcmp.lt.s32.totalorder %v650, 0
    %v689 = vsub.s32 0, %v650
    %v690 = vsel %vm688, %v689, %v650
    %v691 = vshrl.u32 %v690, 7
    %v692 = vand.u32 %v690, 127
    %v693 = vsub.s32 0, %v692
    %v694 = vsel %vm688, %v693, %v692
    %vm695 = vcmp.lt.s32.totalorder %v651, 0
    %v696 = vsub.s32 0, %v651
    %v697 = vsel %vm695, %v696, %v651
    %v698 = vshrl.u32 %v697, 7
    %v699 = vand.u32 %v697, 127
    %v700 = vsub.s32 0, %v699
    %v701 = vsel %vm695, %v700, %v699
    %vm702 = vcmp.lt.s32.totalorder %v652, 0
    %v703 = vsub.s32 0, %v652
    %v704 = vsel %vm702, %v703, %v652
    %v705 = vshrl.u32 %v704, 7
    %v706 = vand.u32 %v704, 127
    %v707 = vsub.s32 0, %v706
    %v708 = vsel %vm702, %v707, %v706
    %vm709 = vcmp.lt.s32.totalorder %v653, 0
    %v710 = vsub.s32 0, %v653
    %v711 = vsel %vm709, %v710, %v653
    %v712 = vshrl.u32 %v711, 7
    %v713 = vand.u32 %v711, 127
    %v714 = vsub.s32 0, %v713
    %v715 = vsel %vm709, %v714, %v713
    %vm716 = vcmp.lt.s32.totalorder %v654, 0
    %v717 = vsub.s32 0, %v654
    %v718 = vsel %vm716, %v717, %v654
    %v719 = vshrl.u32 %v718, 7
    %v720 = vand.u32 %v718, 127
    %v721 = vsub.s32 0, %v720
    %v722 = vsel %vm716, %v721, %v720
    %vm723 = vcmp.lt.s32.totalorder %v655, 0
    %v724 = vsub.s32 0, %v655
    %v725 = vsel %vm723, %v724, %v655
    %v726 = vshrl.u32 %v725, 7
    %v727 = vand.u32 %v725, 127
    %v728 = vsub.s32 0, %v727
    %v729 = vsel %vm723, %v728, %v727
    %vm730 = vcmp.lt.s32.totalorder %v656, 0
    %v731 = vsub.s32 0, %v656
    %v732 = vsel %vm730, %v731, %v656
    %v733 = vshrl.u32 %v732, 7
    %v734 = vand.u32 %v732, 127
    %v735 = vsub.s32 0, %v734
    %v736 = vsel %vm730, %v735, %v734
    %vm737 = vcmp.lt.s32.totalorder %v657, 0
    %v738 = vsub.s32 0, %v657
    %v739 = vsel %vm737, %v738, %v657
    %v740 = vshrl.u32 %v739, 7
    %v741 = vand.u32 %v739, 127
    %v742 = vsub.s32 0, %v741
    %v743 = vsel %vm737, %v742, %v741
    %vm744 = vcmp.lt.s32.totalorder %v658, 0
    %v745 = vsub.s32 0, %v658
    %v746 = vsel %vm744, %v745, %v658
    %v747 = vshrl.u32 %v746, 7
    %v748 = vand.u32 %v746, 127
    %v749 = vsub.s32 0, %v748
    %v750 = vsel %vm744, %v749, %v748
    %vm751 = vcmp.lt.s32.totalorder %v659, 0
    %v752 = vsub.s32 0, %v659
    %v753 = vsel %vm751, %v752, %v659
    %v754 = vshrl.u32 %v753, 7
    %v755 = vand.u32 %v753, 127
    %v756 = vsub.s32 0, %v755
    %v757 = vsel %vm751, %v756, %v755
    %vm758 = vcmp.lt.s32.totalorder %v660, 0
    %v759 = vsub.s32 0, %v660
    %v760 = vsel %vm758, %v759, %v660
    %v761 = vshrl.u32 %v760, 7
    %v762 = vand.u32 %v760, 127
    %v763 = vsub.s32 0, %v762
    %v764 = vsel %vm758, %v763, %v762
    %vm765 = vcmp.lt.s32.totalorder %v661, 0
    %v766 = vsub.s32 0, %v661
    %v767 = vsel %vm765, %v766, %v661
    %v768 = vshrl.u32 %v767, 7
    %v769 = vand.u32 %v767, 127
    %v770 = vsub.s32 0, %v769
    %v771 = vsel %vm765, %v770, %v769
    %vm772 = vcmp.lt.s32.totalorder %v662, 0
    %v773 = vsub.s32 0, %v662
    %v774 = vsel %vm772, %v773, %v662
    %v775 = vshrl.u32 %v774, 7
    %v776 = vand.u32 %v774, 127
    %v777 = vsub.s32 0, %v776
    %v778 = vsel %vm772, %v777, %v776
    %vm779 = vcmp.lt.s32.totalorder %v663, 0
    %v780 = vsub.s32 0, %v663
    %v781 = vsel %vm779, %v780, %v663
    %v782 = vshrl.u32 %v781, 7
    %v783 = vand.u32 %v781, 127
    %v784 = vsub.s32 0, %v783
    %v785 = vsel %vm779, %v784, %v783
    %vm786 = vcmp.lt.s32.totalorder %v664, 0
    %v787 = vsub.s32 0, %v664
    %v788 = vsel %vm786, %v787, %v664
    %v789 = vshrl.u32 %v788, 7
    %v790 = vand.u32 %v788, 127
    %v791 = vsub.s32 0, %v790
    %v792 = vsel %vm786, %v791, %v790
    %vm793 = vcmp.lt.s32.totalorder %v665, 0
    %v794 = vsub.s32 0, %v665
    %v795 = vsel %vm793, %v794, %v665
    %v796 = vshrl.u32 %v795, 7
    %v797 = vand.u32 %v795, 127
    %v798 = vsub.s32 0, %v797
    %v799 = vsel %vm793, %v798, %v797
    %vm800 = vcmp.lt.s32.totalorder %v666, 0
    %v801 = vsub.s32 0, %v666
    %v802 = vsel %vm800, %v801, %v666
    %v803 = vshrl.u32 %v802, 7
    %v804 = vand.u32 %v802, 127
    %v805 = vsub.s32 0, %v804
    %v806 = vsel %vm800, %v805, %v804
    %vm807 = vcmp.lt.s32.totalorder %v667, 0
    %v808 = vsub.s32 0, %v667
    %v809 = vsel %vm807, %v808, %v667
    %v810 = vshrl.u32 %v809, 7
    %v811 = vand.u32 %v809, 127
    %v812 = vsub.s32 0, %v811
    %v813 = vsel %vm807, %v812, %v811
    %vm814 = vcmp.lt.s32.totalorder %v668, 0
    %v815 = vsub.s32 0, %v668
    %v816 = vsel %vm814, %v815, %v668
    %v817 = vshrl.u32 %v816, 7
    %v818 = vand.u32 %v816, 127
    %v819 = vsub.s32 0, %v818
    %v820 = vsel %vm814, %v819, %v818
    %vm821 = vcmp.lt.s32.totalorder %v669, 0
    %v822 = vsub.s32 0, %v669
    %v823 = vsel %vm821, %v822, %v669
    %v824 = vshrl.u32 %v823, 7
    %v825 = vand.u32 %v823, 127
    %v826 = vsub.s32 0, %v825
    %v827 = vsel %vm821, %v826, %v825
    %vm828 = vcmp.lt.s32.totalorder %v670, 0
    %v829 = vsub.s32 0, %v670
    %v830 = vsel %vm828, %v829, %v670
    %v831 = vshrl.u32 %v830, 7
    %v832 = vand.u32 %v830, 127
    %v833 = vsub.s32 0, %v832
    %v834 = vsel %vm828, %v833, %v832
    %vm835 = vcmp.lt.s32.totalorder %v671, 0
    %v836 = vsub.s32 0, %v671
    %v837 = vsel %vm835, %v836, %v671
    %v838 = vshrl.u32 %v837, 7
    %v839 = vand.u32 %v837, 127
    %v840 = vsub.s32 0, %v839
    %v841 = vsel %vm835, %v840, %v839
    %vm842 = vcmp.lt.s32.totalorder %v672, 0
    %v843 = vsub.s32 0, %v672
    %v844 = vsel %vm842, %v843, %v672
    %v845 = vshrl.u32 %v844, 7
    %v846 = vand.u32 %v844, 127
    %v847 = vsub.s32 0, %v846
    %v848 = vsel %vm842, %v847, %v846
    %vm849 = vcmp.lt.s32.totalorder %v673, 0
    %v850 = vsub.s32 0, %v673
    %v851 = vsel %vm849, %v850, %v673
    %v852 = vshrl.u32 %v851, 7
    %v853 = vand.u32 %v851, 127
    %v854 = vsub.s32 0, %v853
    %v855 = vsel %vm849, %v854, %v853
    %vm856 = vcmp.lt.s32.totalorder %v674, 0
    %v857 = vsub.s32 0, %v674
    %v858 = vsel %vm856, %v857, %v674
    %v859 = vshrl.u32 %v858, 7
    %v860 = vand.u32 %v858, 127
    %v861 = vsub.s32 0, %v860
    %v862 = vsel %vm856, %v861, %v860
    %vm863 = vcmp.lt.s32.totalorder %v675, 0
    %v864 = vsub.s32 0, %v675
    %v865 = vsel %vm863, %v864, %v675
    %v866 = vshrl.u32 %v865, 7
    %v867 = vand.u32 %v865, 127
    %v868 = vsub.s32 0, %v867
    %v869 = vsel %vm863, %v868, %v867
    %vm870 = vcmp.lt.s32.totalorder %v676, 0
    %v871 = vsub.s32 0, %v676
    %v872 = vsel %vm870, %v871, %v676
    %v873 = vshrl.u32 %v872, 7
    %v874 = vand.u32 %v872, 127
    %v875 = vsub.s32 0, %v874
    %v876 = vsel %vm870, %v875, %v874
    %vm877 = vcmp.lt.s32.totalorder %v677, 0
    %v878 = vsub.s32 0, %v677
    %v879 = vsel %vm877, %v878, %v677
    %v880 = vshrl.u32 %v879, 7
    %v881 = vand.u32 %v879, 127
    %v882 = vsub.s32 0, %v881
    %v883 = vsel %vm877, %v882, %v881
    %vm884 = vcmp.lt.s32.totalorder %v678, 0
    %v885 = vsub.s32 0, %v678
    %v886 = vsel %vm884, %v885, %v678
    %v887 = vshrl.u32 %v886, 7
    %v888 = vand.u32 %v886, 127
    %v889 = vsub.s32 0, %v888
    %v890 = vsel %vm884, %v889, %v888
    %vm891 = vcmp.lt.s32.totalorder %v679, 0
    %v892 = vsub.s32 0, %v679
    %v893 = vsel %vm891, %v892, %v679
    %v894 = vshrl.u32 %v893, 7
    %v895 = vand.u32 %v893, 127
    %v896 = vsub.s32 0, %v895
    %v897 = vsel %vm891, %v896, %v895
    %vm898 = vcmp.lt.s32.totalorder %v680, 0
    %v899 = vsub.s32 0, %v680
    %v900 = vsel %vm898, %v899, %v680
    %v901 = vshrl.u32 %v900, 7
    %v902 = vand.u32 %v900, 127
    %v903 = vsub.s32 0, %v902
    %v904 = vsel %vm898, %v903, %v902
    %vm905 = vcmp.ne.s32.totalorder %v687, 0
    %vm906 = vcmp.ne.s32.totalorder %v694, 0
    %vm907 = vcmp.ne.s32.totalorder %v701, 0
    %vm908 = vcmp.ne.s32.totalorder %v708, 0
    %vm909 = vcmp.ne.s32.totalorder %v715, 0
    %vm910 = vcmp.ne.s32.totalorder %v722, 0
    %vm911 = vcmp.ne.s32.totalorder %v729, 0
    %vm912 = vcmp.ne.s32.totalorder %v736, 0
    %vm913 = vcmp.ne.s32.totalorder %v743, 0
    %vm914 = vcmp.ne.s32.totalorder %v750, 0
    %vm915 = vcmp.ne.s32.totalorder %v757, 0
    %vm916 = vcmp.ne.s32.totalorder %v764, 0
    %vm917 = vcmp.ne.s32.totalorder %v771, 0
    %vm918 = vcmp.ne.s32.totalorder %v778, 0
    %vm919 = vcmp.ne.s32.totalorder %v785, 0
    %vm920 = vcmp.ne.s32.totalorder %v792, 0
    %vm921 = vcmp.ne.s32.totalorder %v799, 0
    %vm922 = vcmp.ne.s32.totalorder %v806, 0
    %vm923 = vcmp.ne.s32.totalorder %v813, 0
    %vm924 = vcmp.ne.s32.totalorder %v820, 0
    %vm925 = vcmp.ne.s32.totalorder %v827, 0
    %vm926 = vcmp.ne.s32.totalorder %v834, 0
    %vm927 = vcmp.ne.s32.totalorder %v841, 0
    %vm928 = vcmp.ne.s32.totalorder %v848, 0
    %vm929 = vcmp.ne.s32.totalorder %v855, 0
    %vm930 = vcmp.ne.s32.totalorder %v862, 0
    %vm931 = vcmp.ne.s32.totalorder %v869, 0
    %vm932 = vcmp.ne.s32.totalorder %v876, 0
    %vm933 = vcmp.ne.s32.totalorder %v883, 0
    %vm934 = vcmp.ne.s32.totalorder %v890, 0
    %vm935 = vcmp.ne.s32.totalorder %v897, 0
    %vm936 = vcmp.ne.s32.totalorder %v904, 0
    %vm937 = vcmp.lt.s32.totalorder %v687, 0
    %vm938 = vcmp.lt.s32.totalorder %v694, 0
    %vm939 = vcmp.lt.s32.totalorder %v701, 0
    %vm940 = vcmp.lt.s32.totalorder %v708, 0
    %vm941 = vcmp.lt.s32.totalorder %v715, 0
    %vm942 = vcmp.lt.s32.totalorder %v722, 0
    %vm943 = vcmp.lt.s32.totalorder %v729, 0
    %vm944 = vcmp.lt.s32.totalorder %v736, 0
    %vm945 = vcmp.lt.s32.totalorder %v743, 0
    %vm946 = vcmp.lt.s32.totalorder %v750, 0
    %vm947 = vcmp.lt.s32.totalorder %v757, 0
    %vm948 = vcmp.lt.s32.totalorder %v764, 0
    %vm949 = vcmp.lt.s32.totalorder %v771, 0
    %vm950 = vcmp.lt.s32.totalorder %v778, 0
    %vm951 = vcmp.lt.s32.totalorder %v785, 0
    %vm952 = vcmp.lt.s32.totalorder %v792, 0
    %vm953 = vcmp.lt.s32.totalorder %v799, 0
    %vm954 = vcmp.lt.s32.totalorder %v806, 0
    %vm955 = vcmp.lt.s32.totalorder %v813, 0
    %vm956 = vcmp.lt.s32.totalorder %v820, 0
    %vm957 = vcmp.lt.s32.totalorder %v827, 0
    %vm958 = vcmp.lt.s32.totalorder %v834, 0
    %vm959 = vcmp.lt.s32.totalorder %v841, 0
    %vm960 = vcmp.lt.s32.totalorder %v848, 0
    %vm961 = vcmp.lt.s32.totalorder %v855, 0
    %vm962 = vcmp.lt.s32.totalorder %v862, 0
    %vm963 = vcmp.lt.s32.totalorder %v869, 0
    %vm964 = vcmp.lt.s32.totalorder %v876, 0
    %vm965 = vcmp.lt.s32.totalorder %v883, 0
    %vm966 = vcmp.lt.s32.totalorder %v890, 0
    %vm967 = vcmp.lt.s32.totalorder %v897, 0
    %vm968 = vcmp.lt.s32.totalorder %v904, 0
    %vm969 = vmand %vm937, %vm905
    %vm970 = vmand %vm938, %vm906
    %vm971 = vmand %vm939, %vm907
    %vm972 = vmand %vm940, %vm908
    %vm973 = vmand %vm941, %vm909
    %vm974 = vmand %vm942, %vm910
    %vm975 = vmand %vm943, %vm911
    %vm976 = vmand %vm944, %vm912
    %vm977 = vmand %vm945, %vm913
    %vm978 = vmand %vm946, %vm914
    %vm979 = vmand %vm947, %vm915
    %vm980 = vmand %vm948, %vm916
    %vm981 = vmand %vm949, %vm917
    %vm982 = vmand %vm950, %vm918
    %vm983 = vmand %vm951, %vm919
    %vm984 = vmand %vm952, %vm920
    %vm985 = vmand %vm953, %vm921
    %vm986 = vmand %vm954, %vm922
    %vm987 = vmand %vm955, %vm923
    %vm988 = vmand %vm956, %vm924
    %vm989 = vmand %vm957, %vm925
    %vm990 = vmand %vm958, %vm926
    %vm991 = vmand %vm959, %vm927
    %vm992 = vmand %vm960, %vm928
    %vm993 = vmand %vm961, %vm929
    %vm994 = vmand %vm962, %vm930
    %vm995 = vmand %vm963, %vm931
    %vm996 = vmand %vm964, %vm932
    %vm997 = vmand %vm965, %vm933
    %vm998 = vmand %vm966, %vm934
    %vm999 = vmand %vm967, %vm935
    %vm1000 = vmand %vm968, %vm936
    %v1001 = vadd.s32 %v687, 128
    %v1002 = vadd.s32 %v694, 128
    %v1003 = vadd.s32 %v701, 128
    %v1004 = vadd.s32 %v708, 128
    %v1005 = vadd.s32 %v715, 128
    %v1006 = vadd.s32 %v722, 128
    %v1007 = vadd.s32 %v729, 128
    %v1008 = vadd.s32 %v736, 128
    %v1009 = vadd.s32 %v743, 128
    %v1010 = vadd.s32 %v750, 128
    %v1011 = vadd.s32 %v757, 128
    %v1012 = vadd.s32 %v764, 128
    %v1013 = vadd.s32 %v771, 128
    %v1014 = vadd.s32 %v778, 128
    %v1015 = vadd.s32 %v785, 128
    %v1016 = vadd.s32 %v792, 128
    %v1017 = vadd.s32 %v799, 128
    %v1018 = vadd.s32 %v806, 128
    %v1019 = vadd.s32 %v813, 128
    %v1020 = vadd.s32 %v820, 128
    %v1021 = vadd.s32 %v827, 128
    %v1022 = vadd.s32 %v834, 128
    %v1023 = vadd.s32 %v841, 128
    %v1024 = vadd.s32 %v848, 128
    %v1025 = vadd.s32 %v855, 128
    %v1026 = vadd.s32 %v862, 128
    %v1027 = vadd.s32 %v869, 128
    %v1028 = vadd.s32 %v876, 128
    %v1029 = vadd.s32 %v883, 128
    %v1030 = vadd.s32 %v890, 128
    %v1031 = vadd.s32 %v897, 128
    %v1032 = vadd.s32 %v904, 128
    %v1033 = vsel %vm969, %v1001, %v687
    %v1034 = vsel %vm970, %v1002, %v694
    %v1035 = vsel %vm971, %v1003, %v701
    %v1036 = vsel %vm972, %v1004, %v708
    %v1037 = vsel %vm973, %v1005, %v715
    %v1038 = vsel %vm974, %v1006, %v722
    %v1039 = vsel %vm975, %v1007, %v729
    %v1040 = vsel %vm976, %v1008, %v736
    %v1041 = vsel %vm977, %v1009, %v743
    %v1042 = vsel %vm978, %v1010, %v750
    %v1043 = vsel %vm979, %v1011, %v757
    %v1044 = vsel %vm980, %v1012, %v764
    %v1045 = vsel %vm981, %v1013, %v771
    %v1046 = vsel %vm982, %v1014, %v778
    %v1047 = vsel %vm983, %v1015, %v785
    %v1048 = vsel %vm984, %v1016, %v792
    %v1049 = vsel %vm985, %v1017, %v799
    %v1050 = vsel %vm986, %v1018, %v806
    %v1051 = vsel %vm987, %v1019, %v813
    %v1052 = vsel %vm988, %v1020, %v820
    %v1053 = vsel %vm989, %v1021, %v827
    %v1054 = vsel %vm990, %v1022, %v834
    %v1055 = vsel %vm991, %v1023, %v841
    %v1056 = vsel %vm992, %v1024, %v848
    %v1057 = vsel %vm993, %v1025, %v855
    %v1058 = vsel %vm994, %v1026, %v862
    %v1059 = vsel %vm995, %v1027, %v869
    %v1060 = vsel %vm996, %v1028, %v876
    %v1061 = vsel %vm997, %v1029, %v883
    %v1062 = vsel %vm998, %v1030, %v890
    %v1063 = vsel %vm999, %v1031, %v897
    %v1064 = vsel %vm1000, %v1032, %v904
    %1065 = vset.pattern.permute.xlu0 0
    %1066 = vperm.xlu0 %1065, %v1033
    %v1067 = vpop.permute.xlu0 %1066
    %1068 = vset.pattern.permute.xlu0 0
    %1069 = vperm.xlu0 %1068, %v1034
    %v1070 = vpop.permute.xlu0 %1069
    %1071 = vset.pattern.permute.xlu0 0
    %1072 = vperm.xlu0 %1071, %v1035
    %v1073 = vpop.permute.xlu0 %1072
    %1074 = vset.pattern.permute.xlu0 0
    %1075 = vperm.xlu0 %1074, %v1036
    %v1076 = vpop.permute.xlu0 %1075
    %1077 = vset.pattern.permute.xlu0 0
    %1078 = vperm.xlu0 %1077, %v1037
    %v1079 = vpop.permute.xlu0 %1078
    %1080 = vset.pattern.permute.xlu0 0
    %1081 = vperm.xlu0 %1080, %v1038
    %v1082 = vpop.permute.xlu0 %1081
    %1083 = vset.pattern.permute.xlu0 0
    %1084 = vperm.xlu0 %1083, %v1039
    %v1085 = vpop.permute.xlu0 %1084
    %1086 = vset.pattern.permute.xlu0 0
    %1087 = vperm.xlu0 %1086, %v1040
    %v1088 = vpop.permute.xlu0 %1087
    %1089 = vset.pattern.permute.xlu0 0
    %1090 = vperm.xlu0 %1089, %v1041
    %v1091 = vpop.permute.xlu0 %1090
    %1092 = vset.pattern.permute.xlu0 0
    %1093 = vperm.xlu0 %1092, %v1042
    %v1094 = vpop.permute.xlu0 %1093
    %1095 = vset.pattern.permute.xlu0 0
    %1096 = vperm.xlu0 %1095, %v1043
    %v1097 = vpop.permute.xlu0 %1096
    %1098 = vset.pattern.permute.xlu0 0
    %1099 = vperm.xlu0 %1098, %v1044
    %v1100 = vpop.permute.xlu0 %1099
    %1101 = vset.pattern.permute.xlu0 0
    %1102 = vperm.xlu0 %1101, %v1045
    %v1103 = vpop.permute.xlu0 %1102
    %1104 = vset.pattern.permute.xlu0 0
    %1105 = vperm.xlu0 %1104, %v1046
    %v1106 = vpop.permute.xlu0 %1105
    %1107 = vset.pattern.permute.xlu0 0
    %1108 = vperm.xlu0 %1107, %v1047
    %v1109 = vpop.permute.xlu0 %1108
    %1110 = vset.pattern.permute.xlu0 0
    %1111 = vperm.xlu0 %1110, %v1048
    %v1112 = vpop.permute.xlu0 %1111
    %1113 = vset.pattern.permute.xlu0 0
    %1114 = vperm.xlu0 %1113, %v1049
    %v1115 = vpop.permute.xlu0 %1114
    %1116 = vset.pattern.permute.xlu0 0
    %1117 = vperm.xlu0 %1116, %v1050
    %v1118 = vpop.permute.xlu0 %1117
    %1119 = vset.pattern.permute.xlu0 0
    %1120 = vperm.xlu0 %1119, %v1051
    %v1121 = vpop.permute.xlu0 %1120
    %1122 = vset.pattern.permute.xlu0 0
    %1123 = vperm.xlu0 %1122, %v1052
    %v1124 = vpop.permute.xlu0 %1123
    %1125 = vset.pattern.permute.xlu0 0
    %1126 = vperm.xlu0 %1125, %v1053
    %v1127 = vpop.permute.xlu0 %1126
    %1128 = vset.pattern.permute.xlu0 0
    %1129 = vperm.xlu0 %1128, %v1054
    %v1130 = vpop.permute.xlu0 %1129
    %1131 = vset.pattern.permute.xlu0 0
    %1132 = vperm.xlu0 %1131, %v1055
    %v1133 = vpop.permute.xlu0 %1132
    %1134 = vset.pattern.permute.xlu0 0
    %1135 = vperm.xlu0 %1134, %v1056
    %v1136 = vpop.permute.xlu0 %1135
    %1137 = vset.pattern.permute.xlu0 0
    %1138 = vperm.xlu0 %1137, %v1057
    %v1139 = vpop.permute.xlu0 %1138
    %1140 = vset.pattern.permute.xlu0 0
    %1141 = vperm.xlu0 %1140, %v1058
    %v1142 = vpop.permute.xlu0 %1141
    %1143 = vset.pattern.permute.xlu0 0
    %1144 = vperm.xlu0 %1143, %v1059
    %v1145 = vpop.permute.xlu0 %1144
    %1146 = vset.pattern.permute.xlu0 0
    %1147 = vperm.xlu0 %1146, %v1060
    %v1148 = vpop.permute.xlu0 %1147
    %1149 = vset.pattern.permute.xlu0 0
    %1150 = vperm.xlu0 %1149, %v1061
    %v1151 = vpop.permute.xlu0 %1150
    %1152 = vset.pattern.permute.xlu0 0
    %1153 = vperm.xlu0 %1152, %v1062
    %v1154 = vpop.permute.xlu0 %1153
    %1155 = vset.pattern.permute.xlu0 0
    %1156 = vperm.xlu0 %1155, %v1063
    %v1157 = vpop.permute.xlu0 %1156
    %1158 = vset.pattern.permute.xlu0 0
    %1159 = vperm.xlu0 %1158, %v1064
    %v1160 = vpop.permute.xlu0 %1159
    %vm1161 = vcmp.eq.s32.totalorder %v1067, %v442
    %vm1162 = vcmp.eq.s32.totalorder %v1070, %v442
    %vm1163 = vcmp.eq.s32.totalorder %v1073, %v442
    %vm1164 = vcmp.eq.s32.totalorder %v1076, %v442
    %vm1165 = vcmp.eq.s32.totalorder %v1079, %v442
    %vm1166 = vcmp.eq.s32.totalorder %v1082, %v442
    %vm1167 = vcmp.eq.s32.totalorder %v1085, %v442
    %vm1168 = vcmp.eq.s32.totalorder %v1088, %v442
    %vm1169 = vcmp.eq.s32.totalorder %v1091, %v442
    %vm1170 = vcmp.eq.s32.totalorder %v1094, %v442
    %vm1171 = vcmp.eq.s32.totalorder %v1097, %v442
    %vm1172 = vcmp.eq.s32.totalorder %v1100, %v442
    %vm1173 = vcmp.eq.s32.totalorder %v1103, %v442
    %vm1174 = vcmp.eq.s32.totalorder %v1106, %v442
    %vm1175 = vcmp.eq.s32.totalorder %v1109, %v442
    %vm1176 = vcmp.eq.s32.totalorder %v1112, %v442
    %vm1177 = vcmp.eq.s32.totalorder %v1115, %v442
    %vm1178 = vcmp.eq.s32.totalorder %v1118, %v442
    %vm1179 = vcmp.eq.s32.totalorder %v1121, %v442
    %vm1180 = vcmp.eq.s32.totalorder %v1124, %v442
    %vm1181 = vcmp.eq.s32.totalorder %v1127, %v442
    %vm1182 = vcmp.eq.s32.totalorder %v1130, %v442
    %vm1183 = vcmp.eq.s32.totalorder %v1133, %v442
    %vm1184 = vcmp.eq.s32.totalorder %v1136, %v442
    %vm1185 = vcmp.eq.s32.totalorder %v1139, %v442
    %vm1186 = vcmp.eq.s32.totalorder %v1142, %v442
    %vm1187 = vcmp.eq.s32.totalorder %v1145, %v442
    %vm1188 = vcmp.eq.s32.totalorder %v1148, %v442
    %vm1189 = vcmp.eq.s32.totalorder %v1151, %v442
    %vm1190 = vcmp.eq.s32.totalorder %v1154, %v442
    %vm1191 = vcmp.eq.s32.totalorder %v1157, %v442
    %vm1192 = vcmp.eq.s32.totalorder %v1160, %v442
    %v1193 = vsel %vm1161, 1.0, 0.0
    %v1194 = vsel %vm1162, 1.0, 0.0
    %v1195 = vsel %vm1163, 1.0, 0.0
    %v1196 = vsel %vm1164, 1.0, 0.0
    %v1197 = vsel %vm1165, 1.0, 0.0
    %v1198 = vsel %vm1166, 1.0, 0.0
    %v1199 = vsel %vm1167, 1.0, 0.0
    %v1200 = vsel %vm1168, 1.0, 0.0
    %v1201 = vsel %vm1169, 1.0, 0.0
    %v1202 = vsel %vm1170, 1.0, 0.0
    %v1203 = vsel %vm1171, 1.0, 0.0
    %v1204 = vsel %vm1172, 1.0, 0.0
    %v1205 = vsel %vm1173, 1.0, 0.0
    %v1206 = vsel %vm1174, 1.0, 0.0
    %v1207 = vsel %vm1175, 1.0, 0.0
    %v1208 = vsel %vm1176, 1.0, 0.0
    %v1209 = vsel %vm1177, 1.0, 0.0
    %v1210 = vsel %vm1178, 1.0, 0.0
    %v1211 = vsel %vm1179, 1.0, 0.0
    %v1212 = vsel %vm1180, 1.0, 0.0
    %v1213 = vsel %vm1181, 1.0, 0.0
    %v1214 = vsel %vm1182, 1.0, 0.0
    %v1215 = vsel %vm1183, 1.0, 0.0
    %v1216 = vsel %vm1184, 1.0, 0.0
    %v1217 = vsel %vm1185, 1.0, 0.0
    %v1218 = vsel %vm1186, 1.0, 0.0
    %v1219 = vsel %vm1187, 1.0, 0.0
    %v1220 = vsel %vm1188, 1.0, 0.0
    %v1221 = vsel %vm1189, 1.0, 0.0
    %v1222 = vsel %vm1190, 1.0, 0.0
    %v1223 = vsel %vm1191, 1.0, 0.0
    %v1224 = vsel %vm1192, 1.0, 0.0
    %v1225 = vld [vmem:[%s3] sm:$0xff]
    %v1226 = vld [vmem:[%s3 + $0x8] sm:$0xff]
    %v1227 = vld [vmem:[%s3 + $0x10] sm:$0xff]
    %v1228 = vld [vmem:[%s3 + $0x18] sm:$0xff]
    %v1229 = vld [vmem:[%s3 + $0x20] sm:$0xff]
    %v1230 = vld [vmem:[%s3 + $0x28] sm:$0xff]
    %v1231 = vld [vmem:[%s3 + $0x30] sm:$0xff]
    %v1232 = vld [vmem:[%s3 + $0x38] sm:$0xff]
    %v1233 = vld [vmem:[%s3 + $0x40] sm:$0xff]
    %v1234 = vld [vmem:[%s3 + $0x48] sm:$0xff]
    %v1235 = vld [vmem:[%s3 + $0x50] sm:$0xff]
    %v1236 = vld [vmem:[%s3 + $0x58] sm:$0xff]
    %v1237 = vld [vmem:[%s3 + $0x60] sm:$0xff]
    %v1238 = vld [vmem:[%s3 + $0x68] sm:$0xff]
    %v1239 = vld [vmem:[%s3 + $0x70] sm:$0xff]
    %v1240 = vld [vmem:[%s3 + $0x78] sm:$0xff]
    %v1241 = vld [vmem:[%s4] sm:$0xff]
    %v1242 = vld [vmem:[%s4 + $0x8] sm:$0xff]
    %vm1243 = vcmask 130048
    %v1245 = vsel %vm1243, %v603, 0
    %v1248 = vsel %vm1243, %v604, 0
    %v1251 = vsel %vm1243, %v605, 0
    %v1254 = vsel %vm1243, %v606, 0
    %v1257 = vsel %vm1243, %v607, 0
    %v1260 = vsel %vm1243, %v608, 0
    %v1263 = vsel %vm1243, %v609, 0
    %v1266 = vsel %vm1243, %v610, 0
    %v1269 = vsel %vm1243, %v611, 0
    %v1272 = vsel %vm1243, %v612, 0
    %v1275 = vsel %vm1243, %v613, 0
    %v1278 = vsel %vm1243, %v614, 0
    %v1281 = vsel %vm1243, %v615, 0
    %v1284 = vsel %vm1243, %v616, 0
    %v1287 = vsel %vm1243, %v617, 0
    %v1290 = vsel %vm1243, %v618, 0
    %v1293 = vsel %vm1243, %v619, 0
    %v1296 = vsel %vm1243, %v620, 0
    %v1299 = vsel %vm1243, %v621, 0
    %v1302 = vsel %vm1243, %v622, 0
    %v1305 = vsel %vm1243, %v623, 0
    %v1308 = vsel %vm1243, %v624, 0
    %v1311 = vsel %vm1243, %v625, 0
    %v1314 = vsel %vm1243, %v626, 0
    %v1317 = vsel %vm1243, %v627, 0
    %v1320 = vsel %vm1243, %v628, 0
    %v1323 = vsel %vm1243, %v629, 0
    %v1326 = vsel %vm1243, %v630, 0
    %v1329 = vsel %vm1243, %v631, 0
    %v1332 = vsel %vm1243, %v632, 0
    %v1335 = vsel %vm1243, %v633, 0
    %v1338 = vsel %vm1243, %v634, 0
    %1340 = vmatprep.subr.mxu0 0.0
    %1341 = vmatpush1.msra.mxu0 %v1241
    %1342 = vmatprep.subr.mxu0 0.0
    %1343 = vmatpush1.msra.mxu0 %v1242
    %1344 = vmatprep.subr.mxu0 0.0
    %1345 = vmatpush1.msra.mxu0 0.0
    %1346 = vmatprep.subr.mxu0 0.0
    %1347 = vmatpush1.msra.mxu0 0.0
    %1348 = vmatprep.subr.mxu0 0.0
    %1349 = vmatpush1.msra.mxu0 0.0
    %1350 = vmatprep.subr.mxu0 0.0
    %1351 = vmatpush1.msra.mxu0 0.0
    %1352 = vmatprep.subr.mxu0 0.0
    %1353 = vmatpush1.msra.mxu0 0.0
    %1354 = vmatprep.subr.mxu0 0.0
    %1355 = vmatpush1.msra.mxu0 0.0
    %1356 = vmatprep.subr.mxu0 0.0
    %1357 = vmatpush1.msra.mxu0 0.0
    %1358 = vmatprep.subr.mxu0 0.0
    %1359 = vmatpush1.msra.mxu0 0.0
    %1360 = vmatprep.subr.mxu0 0.0
    %1361 = vmatpush1.msra.mxu0 0.0
    %1362 = vmatprep.subr.mxu0 0.0
    %1363 = vmatpush1.msra.mxu0 0.0
    %1364 = vmatprep.subr.mxu0 0.0
    %1365 = vmatpush1.msra.mxu0 0.0
    %1366 = vmatprep.subr.mxu0 0.0
    %1367 = vmatpush1.msra.mxu0 0.0
    %1368 = vmatprep.subr.mxu0 0.0
    %1369 = vmatpush1.msra.mxu0 0.0
    %1370 = vmatprep.subr.mxu0 0.0
    %1371 = vmatpush1.msra.mxu0 0.0
    %1372 = vmatprep.subr.mxu0 0.0
    %1373 = vmatpush1.msra.mxu0 0.0
    %1374 = vmatprep.subr.mxu0 0.0
    %1375 = vmatpush1.msra.mxu0 0.0
    %1376 = vmatprep.subr.mxu0 0.0
    %1377 = vmatpush1.msra.mxu0 0.0
    %1378 = vmatprep.subr.mxu0 0.0
    %1379 = vmatpush1.msra.mxu0 0.0
    %1380 = vmatprep.subr.mxu0 0.0
    %1381 = vmatpush1.msra.mxu0 0.0
    %1382 = vmatprep.subr.mxu0 0.0
    %1383 = vmatpush1.msra.mxu0 0.0
    %1384 = vmatprep.subr.mxu0 0.0
    %1385 = vmatpush1.msra.mxu0 0.0
    %1386 = vmatprep.subr.mxu0 0.0
    %1387 = vmatpush1.msra.mxu0 0.0
    %1388 = vmatprep.subr.mxu0 0.0
    %1389 = vmatpush1.msra.mxu0 0.0
    %1390 = vmatprep.subr.mxu0 0.0
    %1391 = vmatpush1.msra.mxu0 0.0
    %1392 = vmatprep.subr.mxu0 0.0
    %1393 = vmatpush1.msra.mxu0 0.0
    %1394 = vmatprep.subr.mxu0 0.0
    %1395 = vmatpush1.msra.mxu0 0.0
    %1396 = vmatprep.subr.mxu0 0.0
    %1397 = vmatpush1.msra.mxu0 0.0
    %1398 = vmatprep.subr.mxu0 0.0
    %1399 = vmatpush1.msra.mxu0 0.0
    %1400 = vmatprep.subr.mxu0 0.0
    %1401 = vmatpush1.msra.mxu0 0.0
    %1402 = vmatprep.subr.mxu0 0.0
    %1403 = vmatpush1.msra.mxu0 0.0
    %1404 = vmatprep.mubr.f32.mxu0 0.0
    %1405 = vmatmul.mubr.f32.gmra.mrb[0].mxu0 %v1245
    %v1406 = vpop.f32.mrb[0].mxu0
    %v1407 = vadd.f32 0.0, %v1406
    %v1408 = vpop.f32.mrb[0].mxu0
    %1409 = vmatprep.mubr.f32.mxu0 0.0
    %1410 = vmatmul.mubr.f32.gmra.mrb[0].mxu0 %v1248
    %v1411 = vpop.f32.mrb[0].mxu0
    %v1412 = vadd.f32 0.0, %v1411
    %v1413 = vpop.f32.mrb[0].mxu0
    %1414 = vmatprep.mubr.f32.mxu0 0.0
    %1415 = vmatmul.mubr.f32.gmra.mrb[0].mxu0 %v1251
    %v1416 = vpop.f32.mrb[0].mxu0
    %v1417 = vadd.f32 0.0, %v1416
    %v1418 = vpop.f32.mrb[0].mxu0
    %1419 = vmatprep.mubr.f32.mxu0 0.0
    %1420 = vmatmul.mubr.f32.gmra.mrb[0].mxu0 %v1254
    %v1421 = vpop.f32.mrb[0].mxu0
    %v1422 = vadd.f32 0.0, %v1421
    %v1423 = vpop.f32.mrb[0].mxu0
    %1424 = vmatprep.mubr.f32.mxu0 0.0
    %1425 = vmatmul.mubr.f32.gmra.mrb[0].mxu0 %v1257
    %v1426 = vpop.f32.mrb[0].mxu0
    %v1427 = vadd.f32 0.0, %v1426
    %v1428 = vpop.f32.mrb[0].mxu0
    %1429 = vmatprep.mubr.f32.mxu0 0.0
    %1430 = vmatmul.mubr.f32.gmra.mrb[0].mxu0 %v1260
    %v1431 = vpop.f32.mrb[0].mxu0
    %v1432 = vadd.f32 0.0, %v1431
    %v1433 = vpop.f32.mrb[0].mxu0
    %1434 = vmatprep.mubr.f32.mxu0 0.0
    %1435 = vmatmul.mubr.f32.gmra.mrb[0].mxu0 %v1263
    %v1436 = vpop.f32.mrb[0].mxu0
    %v1437 = vadd.f32 0.0, %v1436
    %v1438 = vpop.f32.mrb[0].mxu0
    %1439 = vmatprep.mubr.f32.mxu0 0.0
    %1440 = vmatmul.mubr.f32.gmra.mrb[0].mxu0 %v1266
    %v1441 = vpop.f32.mrb[0].mxu0
    %v1442 = vadd.f32 0.0, %v1441
    %v1443 = vpop.f32.mrb[0].mxu0
    %1444 = vmatprep.mubr.f32.mxu0 0.0
    %1445 = vmatmul.mubr.f32.gmra.mrb[0].mxu0 %v1269
    %v1446 = vpop.f32.mrb[0].mxu0
    %v1447 = vadd.f32 0.0, %v1446
    %v1448 = vpop.f32.mrb[0].mxu0
    %1449 = vmatprep.mubr.f32.mxu0 0.0
    %1450 = vmatmul.mubr.f32.gmra.mrb[0].mxu0 %v1272
    %v1451 = vpop.f32.mrb[0].mxu0
    %v1452 = vadd.f32 0.0, %v1451
    %v1453 = vpop.f32.mrb[0].mxu0
    %1454 = vmatprep.mubr.f32.mxu0 0.0
    %1455 = vmatmul.mubr.f32.gmra.mrb[0].mxu0 %v1275
    %v1456 = vpop.f32.mrb[0].mxu0
    %v1457 = vadd.f32 0.0, %v1456
    %v1458 = vpop.f32.mrb[0].mxu0
    %1459 = vmatprep.mubr.f32.mxu0 0.0
    %1460 = vmatmul.mubr.f32.gmra.mrb[0].mxu0 %v1278
    %v1461 = vpop.f32.mrb[0].mxu0
    %v1462 = vadd.f32 0.0, %v1461
    %v1463 = vpop.f32.mrb[0].mxu0
    %1464 = vmatprep.mubr.f32.mxu0 0.0
    %1465 = vmatmul.mubr.f32.gmra.mrb[0].mxu0 %v1281
    %v1466 = vpop.f32.mrb[0].mxu0
    %v1467 = vadd.f32 0.0, %v1466
    %v1468 = vpop.f32.mrb[0].mxu0
    %1469 = vmatprep.mubr.f32.mxu0 0.0
    %1470 = vmatmul.mubr.f32.gmra.mrb[0].mxu0 %v1284
    %v1471 = vpop.f32.mrb[0].mxu0
    %v1472 = vadd.f32 0.0, %v1471
    %v1473 = vpop.f32.mrb[0].mxu0
    %1474 = vmatprep.mubr.f32.mxu0 0.0
    %1475 = vmatmul.mubr.f32.gmra.mrb[0].mxu0 %v1287
    %v1476 = vpop.f32.mrb[0].mxu0
    %v1477 = vadd.f32 0.0, %v1476
    %v1478 = vpop.f32.mrb[0].mxu0
    %1479 = vmatprep.mubr.f32.mxu0 0.0
    %1480 = vmatmul.mubr.f32.gmra.mrb[0].mxu0 %v1290
    %v1481 = vpop.f32.mrb[0].mxu0
    %v1482 = vadd.f32 0.0, %v1481
    %v1483 = vpop.f32.mrb[0].mxu0
    %1484 = vmatprep.mubr.f32.mxu0 0.0
    %1485 = vmatmul.mubr.f32.gmra.mrb[0].mxu0 %v1293
    %v1486 = vpop.f32.mrb[0].mxu0
    %v1487 = vadd.f32 0.0, %v1486
    %v1488 = vpop.f32.mrb[0].mxu0
    %1489 = vmatprep.mubr.f32.mxu0 0.0
    %1490 = vmatmul.mubr.f32.gmra.mrb[0].mxu0 %v1296
    %v1491 = vpop.f32.mrb[0].mxu0
    %v1492 = vadd.f32 0.0, %v1491
    %v1493 = vpop.f32.mrb[0].mxu0
    %1494 = vmatprep.mubr.f32.mxu0 0.0
    %1495 = vmatmul.mubr.f32.gmra.mrb[0].mxu0 %v1299
    %v1496 = vpop.f32.mrb[0].mxu0
    %v1497 = vadd.f32 0.0, %v1496
    %v1498 = vpop.f32.mrb[0].mxu0
    %1499 = vmatprep.mubr.f32.mxu0 0.0
    %1500 = vmatmul.mubr.f32.gmra.mrb[0].mxu0 %v1302
    %v1501 = vpop.f32.mrb[0].mxu0
    %v1502 = vadd.f32 0.0, %v1501
    %v1503 = vpop.f32.mrb[0].mxu0
    %1504 = vmatprep.mubr.f32.mxu0 0.0
    %1505 = vmatmul.mubr.f32.gmra.mrb[0].mxu0 %v1305
    %v1506 = vpop.f32.mrb[0].mxu0
    %v1507 = vadd.f32 0.0, %v1506
    %v1508 = vpop.f32.mrb[0].mxu0
    %1509 = vmatprep.mubr.f32.mxu0 0.0
    %1510 = vmatmul.mubr.f32.gmra.mrb[0].mxu0 %v1308
    %v1511 = vpop.f32.mrb[0].mxu0
    %v1512 = vadd.f32 0.0, %v1511
    %v1513 = vpop.f32.mrb[0].mxu0
    %1514 = vmatprep.mubr.f32.mxu0 0.0
    %1515 = vmatmul.mubr.f32.gmra.mrb[0].mxu0 %v1311
    %v1516 = vpop.f32.mrb[0].mxu0
    %v1517 = vadd.f32 0.0, %v1516
    %v1518 = vpop.f32.mrb[0].mxu0
    %1519 = vmatprep.mubr.f32.mxu0 0.0
    %1520 = vmatmul.mubr.f32.gmra.mrb[0].mxu0 %v1314
    %v1521 = vpop.f32.mrb[0].mxu0
    %v1522 = vadd.f32 0.0, %v1521
    %v1523 = vpop.f32.mrb[0].mxu0
    %1524 = vmatprep.mubr.f32.mxu0 0.0
    %1525 = vmatmul.mubr.f32.gmra.mrb[0].mxu0 %v1317
    %v1526 = vpop.f32.mrb[0].mxu0
    %v1527 = vadd.f32 0.0, %v1526
    %v1528 = vpop.f32.mrb[0].mxu0
    %1529 = vmatprep.mubr.f32.mxu0 0.0
    %1530 = vmatmul.mubr.f32.gmra.mrb[0].mxu0 %v1320
    %v1531 = vpop.f32.mrb[0].mxu0
    %v1532 = vadd.f32 0.0, %v1531
    %v1533 = vpop.f32.mrb[0].mxu0
    %1534 = vmatprep.mubr.f32.mxu0 0.0
    %1535 = vmatmul.mubr.f32.gmra.mrb[0].mxu0 %v1323
    %v1536 = vpop.f32.mrb[0].mxu0
    %v1537 = vadd.f32 0.0, %v1536
    %v1538 = vpop.f32.mrb[0].mxu0
    %1539 = vmatprep.mubr.f32.mxu0 0.0
    %1540 = vmatmul.mubr.f32.gmra.mrb[0].mxu0 %v1326
    %v1541 = vpop.f32.mrb[0].mxu0
    %v1542 = vadd.f32 0.0, %v1541
    %v1543 = vpop.f32.mrb[0].mxu0
    %1544 = vmatprep.mubr.f32.mxu0 0.0
    %1545 = vmatmul.mubr.f32.gmra.mrb[0].mxu0 %v1329
    %v1546 = vpop.f32.mrb[0].mxu0
    %v1547 = vadd.f32 0.0, %v1546
    %v1548 = vpop.f32.mrb[0].mxu0
    %1549 = vmatprep.mubr.f32.mxu0 0.0
    %1550 = vmatmul.mubr.f32.gmra.mrb[0].mxu0 %v1332
    %v1551 = vpop.f32.mrb[0].mxu0
    %v1552 = vadd.f32 0.0, %v1551
    %v1553 = vpop.f32.mrb[0].mxu0
    %1554 = vmatprep.mubr.f32.mxu0 0.0
    %1555 = vmatmul.mubr.f32.gmra.mrb[0].mxu0 %v1335
    %v1556 = vpop.f32.mrb[0].mxu0
    %v1557 = vadd.f32 0.0, %v1556
    %v1558 = vpop.f32.mrb[0].mxu0
    %1559 = vmatprep.mubr.f32.mxu0 0.0
    %1560 = vmatmul.mubr.f32.gmra.mrb[0].mxu0 %v1338
    %v1561 = vpop.f32.mrb[0].mxu0
    %v1562 = vadd.f32 0.0, %v1561
    %v1563 = vpop.f32.mrb[0].mxu0
    %1564 = vdwg.mxu0
    %1565 = vmatprep.subr.mxu0 0.0
    %1566 = vmatpush1.msra.mxu0 %v1225
    %1567 = vmatprep.subr.mxu0 0.0
    %1568 = vmatpush1.msra.mxu0 %v1226
    %1569 = vmatprep.subr.mxu0 0.0
    %1570 = vmatpush1.msra.mxu0 %v1227
    %1571 = vmatprep.subr.mxu0 0.0
    %1572 = vmatpush1.msra.mxu0 %v1228
    %1573 = vmatprep.subr.mxu0 0.0
    %1574 = vmatpush1.msra.mxu0 %v1229
    %1575 = vmatprep.subr.mxu0 0.0
    %1576 = vmatpush1.msra.mxu0 %v1230
    %1577 = vmatprep.subr.mxu0 0.0
    %1578 = vmatpush1.msra.mxu0 %v1231
    %1579 = vmatprep.subr.mxu0 0.0
    %1580 = vmatpush1.msra.mxu0 %v1232
    %1581 = vmatprep.subr.mxu0 0.0
    %1582 = vmatpush1.msra.mxu0 %v1233
    %1583 = vmatprep.subr.mxu0 0.0
    %1584 = vmatpush1.msra.mxu0 %v1234
    %1585 = vmatprep.subr.mxu0 0.0
    %1586 = vmatpush1.msra.mxu0 %v1235
    %1587 = vmatprep.subr.mxu0 0.0
    %1588 = vmatpush1.msra.mxu0 %v1236
    %1589 = vmatprep.subr.mxu0 0.0
    %1590 = vmatpush1.msra.mxu0 %v1237
    %1591 = vmatprep.subr.mxu0 0.0
    %1592 = vmatpush1.msra.mxu0 %v1238
    %1593 = vmatprep.subr.mxu0 0.0
    %1594 = vmatpush1.msra.mxu0 %v1239
    %1595 = vmatprep.subr.mxu0 0.0
    %1596 = vmatpush1.msra.mxu0 %v1240
    %1597 = vmatprep.subr.mxu0 0.0
    %1598 = vmatpush1.msra.mxu0 0.0
    %1599 = vmatprep.subr.mxu0 0.0
    %1600 = vmatpush1.msra.mxu0 0.0
    %1601 = vmatprep.subr.mxu0 0.0
    %1602 = vmatpush1.msra.mxu0 0.0
    %1603 = vmatprep.subr.mxu0 0.0
    %1604 = vmatpush1.msra.mxu0 0.0
    %1605 = vmatprep.subr.mxu0 0.0
    %1606 = vmatpush1.msra.mxu0 0.0
    %1607 = vmatprep.subr.mxu0 0.0
    %1608 = vmatpush1.msra.mxu0 0.0
    %1609 = vmatprep.subr.mxu0 0.0
    %1610 = vmatpush1.msra.mxu0 0.0
    %1611 = vmatprep.subr.mxu0 0.0
    %1612 = vmatpush1.msra.mxu0 0.0
    %1613 = vmatprep.subr.mxu0 0.0
    %1614 = vmatpush1.msra.mxu0 0.0
    %1615 = vmatprep.subr.mxu0 0.0
    %1616 = vmatpush1.msra.mxu0 0.0
    %1617 = vmatprep.subr.mxu0 0.0
    %1618 = vmatpush1.msra.mxu0 0.0
    %1619 = vmatprep.subr.mxu0 0.0
    %1620 = vmatpush1.msra.mxu0 0.0
    %1621 = vmatprep.subr.mxu0 0.0
    %1622 = vmatpush1.msra.mxu0 0.0
    %1623 = vmatprep.subr.mxu0 0.0
    %1624 = vmatpush1.msra.mxu0 0.0
    %1625 = vmatprep.subr.mxu0 0.0
    %1626 = vmatpush1.msra.mxu0 0.0
    %1627 = vmatprep.subr.mxu0 0.0
    %1628 = vmatpush1.msra.mxu0 0.0
    %1629 = vmatprep.mubr.f32.mxu0 0.0
    %1630 = vmatmul.mubr.f32.gmra.mrb[0].mxu0 %v1193
    %v1631 = vpop.f32.mrb[0].mxu0
    %v1632 = vadd.f32 %v1407, %v1631
    %v1633 = vpop.f32.mrb[0].mxu0
    %1634 = vmatprep.mubr.f32.mxu0 0.0
    %1635 = vmatmul.mubr.f32.gmra.mrb[0].mxu0 %v1194
    %v1636 = vpop.f32.mrb[0].mxu0
    %v1637 = vadd.f32 %v1412, %v1636
    %v1638 = vpop.f32.mrb[0].mxu0
    %1639 = vmatprep.mubr.f32.mxu0 0.0
    %1640 = vmatmul.mubr.f32.gmra.mrb[0].mxu0 %v1195
    %v1641 = vpop.f32.mrb[0].mxu0
    %v1642 = vadd.f32 %v1417, %v1641
    %v1643 = vpop.f32.mrb[0].mxu0
    %1644 = vmatprep.mubr.f32.mxu0 0.0
    %1645 = vmatmul.mubr.f32.gmra.mrb[0].mxu0 %v1196
    %v1646 = vpop.f32.mrb[0].mxu0
    %v1647 = vadd.f32 %v1422, %v1646
    %v1648 = vpop.f32.mrb[0].mxu0
    %1649 = vmatprep.mubr.f32.mxu0 0.0
    %1650 = vmatmul.mubr.f32.gmra.mrb[0].mxu0 %v1197
    %v1651 = vpop.f32.mrb[0].mxu0
    %v1652 = vadd.f32 %v1427, %v1651
    %v1653 = vpop.f32.mrb[0].mxu0
    %1654 = vmatprep.mubr.f32.mxu0 0.0
    %1655 = vmatmul.mubr.f32.gmra.mrb[0].mxu0 %v1198
    %v1656 = vpop.f32.mrb[0].mxu0
    %v1657 = vadd.f32 %v1432, %v1656
    %v1658 = vpop.f32.mrb[0].mxu0
    %1659 = vmatprep.mubr.f32.mxu0 0.0
    %1660 = vmatmul.mubr.f32.gmra.mrb[0].mxu0 %v1199
    %v1661 = vpop.f32.mrb[0].mxu0
    %v1662 = vadd.f32 %v1437, %v1661
    %v1663 = vpop.f32.mrb[0].mxu0
    %1664 = vmatprep.mubr.f32.mxu0 0.0
    %1665 = vmatmul.mubr.f32.gmra.mrb[0].mxu0 %v1200
    %v1666 = vpop.f32.mrb[0].mxu0
    %v1667 = vadd.f32 %v1442, %v1666
    %v1668 = vpop.f32.mrb[0].mxu0
    %1669 = vmatprep.mubr.f32.mxu0 0.0
    %1670 = vmatmul.mubr.f32.gmra.mrb[0].mxu0 %v1201
    %v1671 = vpop.f32.mrb[0].mxu0
    %v1672 = vadd.f32 %v1447, %v1671
    %v1673 = vpop.f32.mrb[0].mxu0
    %1674 = vmatprep.mubr.f32.mxu0 0.0
    %1675 = vmatmul.mubr.f32.gmra.mrb[0].mxu0 %v1202
    %v1676 = vpop.f32.mrb[0].mxu0
    %v1677 = vadd.f32 %v1452, %v1676
    %v1678 = vpop.f32.mrb[0].mxu0
    %1679 = vmatprep.mubr.f32.mxu0 0.0
    %1680 = vmatmul.mubr.f32.gmra.mrb[0].mxu0 %v1203
    %v1681 = vpop.f32.mrb[0].mxu0
    %v1682 = vadd.f32 %v1457, %v1681
    %v1683 = vpop.f32.mrb[0].mxu0
    %1684 = vmatprep.mubr.f32.mxu0 0.0
    %1685 = vmatmul.mubr.f32.gmra.mrb[0].mxu0 %v1204
    %v1686 = vpop.f32.mrb[0].mxu0
    %v1687 = vadd.f32 %v1462, %v1686
    %v1688 = vpop.f32.mrb[0].mxu0
    %1689 = vmatprep.mubr.f32.mxu0 0.0
    %1690 = vmatmul.mubr.f32.gmra.mrb[0].mxu0 %v1205
    %v1691 = vpop.f32.mrb[0].mxu0
    %v1692 = vadd.f32 %v1467, %v1691
    %v1693 = vpop.f32.mrb[0].mxu0
    %1694 = vmatprep.mubr.f32.mxu0 0.0
    %1695 = vmatmul.mubr.f32.gmra.mrb[0].mxu0 %v1206
    %v1696 = vpop.f32.mrb[0].mxu0
    %v1697 = vadd.f32 %v1472, %v1696
    %v1698 = vpop.f32.mrb[0].mxu0
    %1699 = vmatprep.mubr.f32.mxu0 0.0
    %1700 = vmatmul.mubr.f32.gmra.mrb[0].mxu0 %v1207
    %v1701 = vpop.f32.mrb[0].mxu0
    %v1702 = vadd.f32 %v1477, %v1701
    %v1703 = vpop.f32.mrb[0].mxu0
    %1704 = vmatprep.mubr.f32.mxu0 0.0
    %1705 = vmatmul.mubr.f32.gmra.mrb[0].mxu0 %v1208
    %v1706 = vpop.f32.mrb[0].mxu0
    %v1707 = vadd.f32 %v1482, %v1706
    %v1708 = vpop.f32.mrb[0].mxu0
    %1709 = vmatprep.mubr.f32.mxu0 0.0
    %1710 = vmatmul.mubr.f32.gmra.mrb[0].mxu0 %v1209
    %v1711 = vpop.f32.mrb[0].mxu0
    %v1712 = vadd.f32 %v1487, %v1711
    %v1713 = vpop.f32.mrb[0].mxu0
    %1714 = vmatprep.mubr.f32.mxu0 0.0
    %1715 = vmatmul.mubr.f32.gmra.mrb[0].mxu0 %v1210
    %v1716 = vpop.f32.mrb[0].mxu0
    %v1717 = vadd.f32 %v1492, %v1716
    %v1718 = vpop.f32.mrb[0].mxu0
    %1719 = vmatprep.mubr.f32.mxu0 0.0
    %1720 = vmatmul.mubr.f32.gmra.mrb[0].mxu0 %v1211
    %v1721 = vpop.f32.mrb[0].mxu0
    %v1722 = vadd.f32 %v1497, %v1721
    %v1723 = vpop.f32.mrb[0].mxu0
    %1724 = vmatprep.mubr.f32.mxu0 0.0
    %1725 = vmatmul.mubr.f32.gmra.mrb[0].mxu0 %v1212
    %v1726 = vpop.f32.mrb[0].mxu0
    %v1727 = vadd.f32 %v1502, %v1726
    %v1728 = vpop.f32.mrb[0].mxu0
    %1729 = vmatprep.mubr.f32.mxu0 0.0
    %1730 = vmatmul.mubr.f32.gmra.mrb[0].mxu0 %v1213
    %v1731 = vpop.f32.mrb[0].mxu0
    %v1732 = vadd.f32 %v1507, %v1731
    %v1733 = vpop.f32.mrb[0].mxu0
    %1734 = vmatprep.mubr.f32.mxu0 0.0
    %1735 = vmatmul.mubr.f32.gmra.mrb[0].mxu0 %v1214
    %v1736 = vpop.f32.mrb[0].mxu0
    %v1737 = vadd.f32 %v1512, %v1736
    %v1738 = vpop.f32.mrb[0].mxu0
    %1739 = vmatprep.mubr.f32.mxu0 0.0
    %1740 = vmatmul.mubr.f32.gmra.mrb[0].mxu0 %v1215
    %v1741 = vpop.f32.mrb[0].mxu0
    %v1742 = vadd.f32 %v1517, %v1741
    %v1743 = vpop.f32.mrb[0].mxu0
    %1744 = vmatprep.mubr.f32.mxu0 0.0
    %1745 = vmatmul.mubr.f32.gmra.mrb[0].mxu0 %v1216
    %v1746 = vpop.f32.mrb[0].mxu0
    %v1747 = vadd.f32 %v1522, %v1746
    %v1748 = vpop.f32.mrb[0].mxu0
    %1749 = vmatprep.mubr.f32.mxu0 0.0
    %1750 = vmatmul.mubr.f32.gmra.mrb[0].mxu0 %v1217
    %v1751 = vpop.f32.mrb[0].mxu0
    %v1752 = vadd.f32 %v1527, %v1751
    %v1753 = vpop.f32.mrb[0].mxu0
    %1754 = vmatprep.mubr.f32.mxu0 0.0
    %1755 = vmatmul.mubr.f32.gmra.mrb[0].mxu0 %v1218
    %v1756 = vpop.f32.mrb[0].mxu0
    %v1757 = vadd.f32 %v1532, %v1756
    %v1758 = vpop.f32.mrb[0].mxu0
    %1759 = vmatprep.mubr.f32.mxu0 0.0
    %1760 = vmatmul.mubr.f32.gmra.mrb[0].mxu0 %v1219
    %v1761 = vpop.f32.mrb[0].mxu0
    %v1762 = vadd.f32 %v1537, %v1761
    %v1763 = vpop.f32.mrb[0].mxu0
    %1764 = vmatprep.mubr.f32.mxu0 0.0
    %1765 = vmatmul.mubr.f32.gmra.mrb[0].mxu0 %v1220
    %v1766 = vpop.f32.mrb[0].mxu0
    %v1767 = vadd.f32 %v1542, %v1766
    %v1768 = vpop.f32.mrb[0].mxu0
    %1769 = vmatprep.mubr.f32.mxu0 0.0
    %1770 = vmatmul.mubr.f32.gmra.mrb[0].mxu0 %v1221
    %v1771 = vpop.f32.mrb[0].mxu0
    %v1772 = vadd.f32 %v1547, %v1771
    %v1773 = vpop.f32.mrb[0].mxu0
    %1774 = vmatprep.mubr.f32.mxu0 0.0
    %1775 = vmatmul.mubr.f32.gmra.mrb[0].mxu0 %v1222
    %v1776 = vpop.f32.mrb[0].mxu0
    %v1777 = vadd.f32 %v1552, %v1776
    %v1778 = vpop.f32.mrb[0].mxu0
    %1779 = vmatprep.mubr.f32.mxu0 0.0
    %1780 = vmatmul.mubr.f32.gmra.mrb[0].mxu0 %v1223
    %v1781 = vpop.f32.mrb[0].mxu0
    %v1782 = vadd.f32 %v1557, %v1781
    %v1783 = vpop.f32.mrb[0].mxu0
    %1784 = vmatprep.mubr.f32.mxu0 0.0
    %1785 = vmatmul.mubr.f32.gmra.mrb[0].mxu0 %v1224
    %v1786 = vpop.f32.mrb[0].mxu0
    %v1787 = vadd.f32 %v1562, %v1786
    %v1788 = vpop.f32.mrb[0].mxu0
    %1789 = vdwg.mxu0
    %vm1790 = vcmask 261120
    %1791 = vst.msk [vmem:[#allocation4] sm:$0xff] %vm1790, %v1632
    %1792 = vst.msk [vmem:[#allocation4 + $0x8] sm:$0xff] %vm1790, %v1637
    %1793 = vst.msk [vmem:[#allocation4 + $0x10] sm:$0xff] %vm1790, %v1642
    %1794 = vst.msk [vmem:[#allocation4 + $0x18] sm:$0xff] %vm1790, %v1647
    %1795 = vst.msk [vmem:[#allocation4 + $0x20] sm:$0xff] %vm1790, %v1652
    %1796 = vst.msk [vmem:[#allocation4 + $0x28] sm:$0xff] %vm1790, %v1657
    %1797 = vst.msk [vmem:[#allocation4 + $0x30] sm:$0xff] %vm1790, %v1662
    %1798 = vst.msk [vmem:[#allocation4 + $0x38] sm:$0xff] %vm1790, %v1667
    %1799 = vst.msk [vmem:[#allocation4 + $0x40] sm:$0xff] %vm1790, %v1672
    %1800 = vst.msk [vmem:[#allocation4 + $0x48] sm:$0xff] %vm1790, %v1677
    %1801 = vst.msk [vmem:[#allocation4 + $0x50] sm:$0xff] %vm1790, %v1682
    %1802 = vst.msk [vmem:[#allocation4 + $0x58] sm:$0xff] %vm1790, %v1687
    %1803 = vst.msk [vmem:[#allocation4 + $0x60] sm:$0xff] %vm1790, %v1692
    %1804 = vst.msk [vmem:[#allocation4 + $0x68] sm:$0xff] %vm1790, %v1697
    %1805 = vst.msk [vmem:[#allocation4 + $0x70] sm:$0xff] %vm1790, %v1702
    %1806 = vst.msk [vmem:[#allocation4 + $0x78] sm:$0xff] %vm1790, %v1707
    %1807 = vst.msk [vmem:[#allocation4 + $0x80] sm:$0xff] %vm1790, %v1712
    %1808 = vst.msk [vmem:[#allocation4 + $0x88] sm:$0xff] %vm1790, %v1717
    %1809 = vst.msk [vmem:[#allocation4 + $0x90] sm:$0xff] %vm1790, %v1722
    %1810 = vst.msk [vmem:[#allocation4 + $0x98] sm:$0xff] %vm1790, %v1727
    %1811 = vst.msk [vmem:[#allocation4 + $0xa0] sm:$0xff] %vm1790, %v1732
    %1812 = vst.msk [vmem:[#allocation4 + $0xa8] sm:$0xff] %vm1790, %v1737
    %1813 = vst.msk [vmem:[#allocation4 + $0xb0] sm:$0xff] %vm1790, %v1742
    %1814 = vst.msk [vmem:[#allocation4 + $0xb8] sm:$0xff] %vm1790, %v1747
    %1815 = vst.msk [vmem:[#allocation4 + $0xc0] sm:$0xff] %vm1790, %v1752
    %1816 = vst.msk [vmem:[#allocation4 + $0xc8] sm:$0xff] %vm1790, %v1757
    %1817 = vst.msk [vmem:[#allocation4 + $0xd0] sm:$0xff] %vm1790, %v1762
    %1818 = vst.msk [vmem:[#allocation4 + $0xd8] sm:$0xff] %vm1790, %v1767
    %1819 = vst.msk [vmem:[#allocation4 + $0xe0] sm:$0xff] %vm1790, %v1772
    %1820 = vst.msk [vmem:[#allocation4 + $0xe8] sm:$0xff] %vm1790, %v1777
    %1821 = vst.msk [vmem:[#allocation4 + $0xf0] sm:$0xff] %vm1790, %v1782
    %1822 = vst.msk [vmem:[#allocation4 + $0xf8] sm:$0xff] %vm1790, %v1787
    %s1823 = sld [smem:[#allocation3 + $0x1]]
    %p1824 = scmp.lt.s32.totalorder %s1823, 0
    %s1825 = ssub.s32 0, %s1823
    %s1826 = scalar_select %p1824, %s1825, %s1823
    %s1827 = sand.u32 %s1826, 127
    %s1828 = ssub.s32 0, %s1827
    %s1829 = scalar_select %p1824, %s1828, %s1827
    %p1830 = scmp.ne.s32.totalorder %s1829, 0
    %p1831 = scmp.lt.s32.totalorder %s1829, 0
    %p1832 = pnand %p1831, %p1830
    %p1833 = pneg %p1832
    %s1834 = sadd.s32 %s1829, 128
    %s1835 = scalar_select %p1833, %s1834, %s1829
    %v1836 = vstv %s1835
    %v1837 = vmul.u32 %v409, %v1836
    %v1838 = vmul.u32 %v410, %v1836
    %v1839 = vmul.u32 %v411, %v1836
    %v1840 = vmul.u32 %v412, %v1836
    %v1841 = vmul.u32 %v413, %v1836
    %v1842 = vmul.u32 %v414, %v1836
    %v1843 = vmul.u32 %v415, %v1836
    %v1844 = vmul.u32 %v416, %v1836
    %v1845 = vmul.u32 %v417, %v1836
    %v1846 = vmul.u32 %v418, %v1836
    %v1847 = vmul.u32 %v419, %v1836
    %v1848 = vmul.u32 %v420, %v1836
    %v1849 = vmul.u32 %v421, %v1836
    %v1850 = vmul.u32 %v422, %v1836
    %v1851 = vmul.u32 %v423, %v1836
    %v1852 = vmul.u32 %v424, %v1836
    %v1853 = vmul.u32 %v425, %v1836
    %v1854 = vmul.u32 %v426, %v1836
    %v1855 = vmul.u32 %v427, %v1836
    %v1856 = vmul.u32 %v428, %v1836
    %v1857 = vmul.u32 %v429, %v1836
    %v1858 = vmul.u32 %v430, %v1836
    %v1859 = vmul.u32 %v431, %v1836
    %v1860 = vmul.u32 %v432, %v1836
    %v1861 = vmul.u32 %v433, %v1836
    %v1862 = vmul.u32 %v434, %v1836
    %v1863 = vmul.u32 %v435, %v1836
    %v1864 = vmul.u32 %v436, %v1836
    %v1865 = vmul.u32 %v437, %v1836
    %v1866 = vmul.u32 %v438, %v1836
    %v1867 = vmul.u32 %v439, %v1836
    %v1868 = vmul.u32 %v440, %v1836
    %vm1869 = vcmp.lt.s32.totalorder %v1837, 0
    %v1870 = vsub.s32 0, %v1837
    %v1871 = vsel %vm1869, %v1870, %v1837
    %v1872 = vshrl.u32 %v1871, 7
    %v1873 = vand.u32 %v1871, 127
    %v1874 = vsub.s32 0, %v1873
    %v1875 = vsel %vm1869, %v1874, %v1873
    %vm1876 = vcmp.lt.s32.totalorder %v1838, 0
    %v1877 = vsub.s32 0, %v1838
    %v1878 = vsel %vm1876, %v1877, %v1838
    %v1879 = vshrl.u32 %v1878, 7
    %v1880 = vand.u32 %v1878, 127
    %v1881 = vsub.s32 0, %v1880
    %v1882 = vsel %vm1876, %v1881, %v1880
    %vm1883 = vcmp.lt.s32.totalorder %v1839, 0
    %v1884 = vsub.s32 0, %v1839
    %v1885 = vsel %vm1883, %v1884, %v1839
    %v1886 = vshrl.u32 %v1885, 7
    %v1887 = vand.u32 %v1885, 127
    %v1888 = vsub.s32 0, %v1887
    %v1889 = vsel %vm1883, %v1888, %v1887
    %vm1890 = vcmp.lt.s32.totalorder %v1840, 0
    %v1891 = vsub.s32 0, %v1840
    %v1892 = vsel %vm1890, %v1891, %v1840
    %v1893 = vshrl.u32 %v1892, 7
    %v1894 = vand.u32 %v1892, 127
    %v1895 = vsub.s32 0, %v1894
    %v1896 = vsel %vm1890, %v1895, %v1894
    %vm1897 = vcmp.lt.s32.totalorder %v1841, 0
    %v1898 = vsub.s32 0, %v1841
    %v1899 = vsel %vm1897, %v1898, %v1841
    %v1900 = vshrl.u32 %v1899, 7
    %v1901 = vand.u32 %v1899, 127
    %v1902 = vsub.s32 0, %v1901
    %v1903 = vsel %vm1897, %v1902, %v1901
    %vm1904 = vcmp.lt.s32.totalorder %v1842, 0
    %v1905 = vsub.s32 0, %v1842
    %v1906 = vsel %vm1904, %v1905, %v1842
    %v1907 = vshrl.u32 %v1906, 7
    %v1908 = vand.u32 %v1906, 127
    %v1909 = vsub.s32 0, %v1908
    %v1910 = vsel %vm1904, %v1909, %v1908
    %vm1911 = vcmp.lt.s32.totalorder %v1843, 0
    %v1912 = vsub.s32 0, %v1843
    %v1913 = vsel %vm1911, %v1912, %v1843
    %v1914 = vshrl.u32 %v1913, 7
    %v1915 = vand.u32 %v1913, 127
    %v1916 = vsub.s32 0, %v1915
    %v1917 = vsel %vm1911, %v1916, %v1915
    %vm1918 = vcmp.lt.s32.totalorder %v1844, 0
    %v1919 = vsub.s32 0, %v1844
    %v1920 = vsel %vm1918, %v1919, %v1844
    %v1921 = vshrl.u32 %v1920, 7
    %v1922 = vand.u32 %v1920, 127
    %v1923 = vsub.s32 0, %v1922
    %v1924 = vsel %vm1918, %v1923, %v1922
    %vm1925 = vcmp.lt.s32.totalorder %v1845, 0
    %v1926 = vsub.s32 0, %v1845
    %v1927 = vsel %vm1925, %v1926, %v1845
    %v1928 = vshrl.u32 %v1927, 7
    %v1929 = vand.u32 %v1927, 127
    %v1930 = vsub.s32 0, %v1929
    %v1931 = vsel %vm1925, %v1930, %v1929
    %vm1932 = vcmp.lt.s32.totalorder %v1846, 0
    %v1933 = vsub.s32 0, %v1846
    %v1934 = vsel %vm1932, %v1933, %v1846
    %v1935 = vshrl.u32 %v1934, 7
    %v1936 = vand.u32 %v1934, 127
    %v1937 = vsub.s32 0, %v1936
    %v1938 = vsel %vm1932, %v1937, %v1936
    %vm1939 = vcmp.lt.s32.totalorder %v1847, 0
    %v1940 = vsub.s32 0, %v1847
    %v1941 = vsel %vm1939, %v1940, %v1847
    %v1942 = vshrl.u32 %v1941, 7
    %v1943 = vand.u32 %v1941, 127
    %v1944 = vsub.s32 0, %v1943
    %v1945 = vsel %vm1939, %v1944, %v1943
    %vm1946 = vcmp.lt.s32.totalorder %v1848, 0
    %v1947 = vsub.s32 0, %v1848
    %v1948 = vsel %vm1946, %v1947, %v1848
    %v1949 = vshrl.u32 %v1948, 7
    %v1950 = vand.u32 %v1948, 127
    %v1951 = vsub.s32 0, %v1950
    %v1952 = vsel %vm1946, %v1951, %v1950
    %vm1953 = vcmp.lt.s32.totalorder %v1849, 0
    %v1954 = vsub.s32 0, %v1849
    %v1955 = vsel %vm1953, %v1954, %v1849
    %v1956 = vshrl.u32 %v1955, 7
    %v1957 = vand.u32 %v1955, 127
    %v1958 = vsub.s32 0, %v1957
    %v1959 = vsel %vm1953, %v1958, %v1957
    %vm1960 = vcmp.lt.s32.totalorder %v1850, 0
    %v1961 = vsub.s32 0, %v1850
    %v1962 = vsel %vm1960, %v1961, %v1850
    %v1963 = vshrl.u32 %v1962, 7
    %v1964 = vand.u32 %v1962, 127
    %v1965 = vsub.s32 0, %v1964
    %v1966 = vsel %vm1960, %v1965, %v1964
    %vm1967 = vcmp.lt.s32.totalorder %v1851, 0
    %v1968 = vsub.s32 0, %v1851
    %v1969 = vsel %vm1967, %v1968, %v1851
    %v1970 = vshrl.u32 %v1969, 7
    %v1971 = vand.u32 %v1969, 127
    %v1972 = vsub.s32 0, %v1971
    %v1973 = vsel %vm1967, %v1972, %v1971
    %vm1974 = vcmp.lt.s32.totalorder %v1852, 0
    %v1975 = vsub.s32 0, %v1852
    %v1976 = vsel %vm1974, %v1975, %v1852
    %v1977 = vshrl.u32 %v1976, 7
    %v1978 = vand.u32 %v1976, 127
    %v1979 = vsub.s32 0, %v1978
    %v1980 = vsel %vm1974, %v1979, %v1978
    %vm1981 = vcmp.lt.s32.totalorder %v1853, 0
    %v1982 = vsub.s32 0, %v1853
    %v1983 = vsel %vm1981, %v1982, %v1853
    %v1984 = vshrl.u32 %v1983, 7
    %v1985 = vand.u32 %v1983, 127
    %v1986 = vsub.s32 0, %v1985
    %v1987 = vsel %vm1981, %v1986, %v1985
    %vm1988 = vcmp.lt.s32.totalorder %v1854, 0
    %v1989 = vsub.s32 0, %v1854
    %v1990 = vsel %vm1988, %v1989, %v1854
    %v1991 = vshrl.u32 %v1990, 7
    %v1992 = vand.u32 %v1990, 127
    %v1993 = vsub.s32 0, %v1992
    %v1994 = vsel %vm1988, %v1993, %v1992
    %vm1995 = vcmp.lt.s32.totalorder %v1855, 0
    %v1996 = vsub.s32 0, %v1855
    %v1997 = vsel %vm1995, %v1996, %v1855
    %v1998 = vshrl.u32 %v1997, 7
    %v1999 = vand.u32 %v1997, 127
    %v2000 = vsub.s32 0, %v1999
    %v2001 = vsel %vm1995, %v2000, %v1999
    %vm2002 = vcmp.lt.s32.totalorder %v1856, 0
    %v2003 = vsub.s32 0, %v1856
    %v2004 = vsel %vm2002, %v2003, %v1856
    %v2005 = vshrl.u32 %v2004, 7
    %v2006 = vand.u32 %v2004, 127
    %v2007 = vsub.s32 0, %v2006
    %v2008 = vsel %vm2002, %v2007, %v2006
    %vm2009 = vcmp.lt.s32.totalorder %v1857, 0
    %v2010 = vsub.s32 0, %v1857
    %v2011 = vsel %vm2009, %v2010, %v1857
    %v2012 = vshrl.u32 %v2011, 7
    %v2013 = vand.u32 %v2011, 127
    %v2014 = vsub.s32 0, %v2013
    %v2015 = vsel %vm2009, %v2014, %v2013
    %vm2016 = vcmp.lt.s32.totalorder %v1858, 0
    %v2017 = vsub.s32 0, %v1858
    %v2018 = vsel %vm2016, %v2017, %v1858
    %v2019 = vshrl.u32 %v2018, 7
    %v2020 = vand.u32 %v2018, 127
    %v2021 = vsub.s32 0, %v2020
    %v2022 = vsel %vm2016, %v2021, %v2020
    %vm2023 = vcmp.lt.s32.totalorder %v1859, 0
    %v2024 = vsub.s32 0, %v1859
    %v2025 = vsel %vm2023, %v2024, %v1859
    %v2026 = vshrl.u32 %v2025, 7
    %v2027 = vand.u32 %v2025, 127
    %v2028 = vsub.s32 0, %v2027
    %v2029 = vsel %vm2023, %v2028, %v2027
    %vm2030 = vcmp.lt.s32.totalorder %v1860, 0
    %v2031 = vsub.s32 0, %v1860
    %v2032 = vsel %vm2030, %v2031, %v1860
    %v2033 = vshrl.u32 %v2032, 7
    %v2034 = vand.u32 %v2032, 127
    %v2035 = vsub.s32 0, %v2034
    %v2036 = vsel %vm2030, %v2035, %v2034
    %vm2037 = vcmp.lt.s32.totalorder %v1861, 0
    %v2038 = vsub.s32 0, %v1861
    %v2039 = vsel %vm2037, %v2038, %v1861
    %v2040 = vshrl.u32 %v2039, 7
    %v2041 = vand.u32 %v2039, 127
    %v2042 = vsub.s32 0, %v2041
    %v2043 = vsel %vm2037, %v2042, %v2041
    %vm2044 = vcmp.lt.s32.totalorder %v1862, 0
    %v2045 = vsub.s32 0, %v1862
    %v2046 = vsel %vm2044, %v2045, %v1862
    %v2047 = vshrl.u32 %v2046, 7
    %v2048 = vand.u32 %v2046, 127
    %v2049 = vsub.s32 0, %v2048
    %v2050 = vsel %vm2044, %v2049, %v2048
    %vm2051 = vcmp.lt.s32.totalorder %v1863, 0
    %v2052 = vsub.s32 0, %v1863
    %v2053 = vsel %vm2051, %v2052, %v1863
    %v2054 = vshrl.u32 %v2053, 7
    %v2055 = vand.u32 %v2053, 127
    %v2056 = vsub.s32 0, %v2055
    %v2057 = vsel %vm2051, %v2056, %v2055
    %vm2058 = vcmp.lt.s32.totalorder %v1864, 0
    %v2059 = vsub.s32 0, %v1864
    %v2060 = vsel %vm2058, %v2059, %v1864
    %v2061 = vshrl.u32 %v2060, 7
    %v2062 = vand.u32 %v2060, 127
    %v2063 = vsub.s32 0, %v2062
    %v2064 = vsel %vm2058, %v2063, %v2062
    %vm2065 = vcmp.lt.s32.totalorder %v1865, 0
    %v2066 = vsub.s32 0, %v1865
    %v2067 = vsel %vm2065, %v2066, %v1865
    %v2068 = vshrl.u32 %v2067, 7
    %v2069 = vand.u32 %v2067, 127
    %v2070 = vsub.s32 0, %v2069
    %v2071 = vsel %vm2065, %v2070, %v2069
    %vm2072 = vcmp.lt.s32.totalorder %v1866, 0
    %v2073 = vsub.s32 0, %v1866
    %v2074 = vsel %vm2072, %v2073, %v1866
    %v2075 = vshrl.u32 %v2074, 7
    %v2076 = vand.u32 %v2074, 127
    %v2077 = vsub.s32 0, %v2076
    %v2078 = vsel %vm2072, %v2077, %v2076
    %vm2079 = vcmp.lt.s32.totalorder %v1867, 0
    %v2080 = vsub.s32 0, %v1867
    %v2081 = vsel %vm2079, %v2080, %v1867
    %v2082 = vshrl.u32 %v2081, 7
    %v2083 = vand.u32 %v2081, 127
    %v2084 = vsub.s32 0, %v2083
    %v2085 = vsel %vm2079, %v2084, %v2083
    %vm2086 = vcmp.lt.s32.totalorder %v1868, 0
    %v2087 = vsub.s32 0, %v1868
    %v2088 = vsel %vm2086, %v2087, %v1868
    %v2089 = vshrl.u32 %v2088, 7
    %v2090 = vand.u32 %v2088, 127
    %v2091 = vsub.s32 0, %v2090
    %v2092 = vsel %vm2086, %v2091, %v2090
    %vm2093 = vcmp.ne.s32.totalorder %v1875, 0
    %vm2094 = vcmp.ne.s32.totalorder %v1882, 0
    %vm2095 = vcmp.ne.s32.totalorder %v1889, 0
    %vm2096 = vcmp.ne.s32.totalorder %v1896, 0
    %vm2097 = vcmp.ne.s32.totalorder %v1903, 0
    %vm2098 = vcmp.ne.s32.totalorder %v1910, 0
    %vm2099 = vcmp.ne.s32.totalorder %v1917, 0
    %vm2100 = vcmp.ne.s32.totalorder %v1924, 0
    %vm2101 = vcmp.ne.s32.totalorder %v1931, 0
    %vm2102 = vcmp.ne.s32.totalorder %v1938, 0
    %vm2103 = vcmp.ne.s32.totalorder %v1945, 0
    %vm2104 = vcmp.ne.s32.totalorder %v1952, 0
    %vm2105 = vcmp.ne.s32.totalorder %v1959, 0
    %vm2106 = vcmp.ne.s32.totalorder %v1966, 0
    %vm2107 = vcmp.ne.s32.totalorder %v1973, 0
    %vm2108 = vcmp.ne.s32.totalorder %v1980, 0
    %vm2109 = vcmp.ne.s32.totalorder %v1987, 0
    %vm2110 = vcmp.ne.s32.totalorder %v1994, 0
    %vm2111 = vcmp.ne.s32.totalorder %v2001, 0
    %vm2112 = vcmp.ne.s32.totalorder %v2008, 0
    %vm2113 = vcmp.ne.s32.totalorder %v2015, 0
    %vm2114 = vcmp.ne.s32.totalorder %v2022, 0
    %vm2115 = vcmp.ne.s32.totalorder %v2029, 0
    %vm2116 = vcmp.ne.s32.totalorder %v2036, 0
    %vm2117 = vcmp.ne.s32.totalorder %v2043, 0
    %vm2118 = vcmp.ne.s32.totalorder %v2050, 0
    %vm2119 = vcmp.ne.s32.totalorder %v2057, 0
    %vm2120 = vcmp.ne.s32.totalorder %v2064, 0
    %vm2121 = vcmp.ne.s32.totalorder %v2071, 0
    %vm2122 = vcmp.ne.s32.totalorder %v2078, 0
    %vm2123 = vcmp.ne.s32.totalorder %v2085, 0
    %vm2124 = vcmp.ne.s32.totalorder %v2092, 0
    %vm2125 = vcmp.lt.s32.totalorder %v1875, 0
    %vm2126 = vcmp.lt.s32.totalorder %v1882, 0
    %vm2127 = vcmp.lt.s32.totalorder %v1889, 0
    %vm2128 = vcmp.lt.s32.totalorder %v1896, 0
    %vm2129 = vcmp.lt.s32.totalorder %v1903, 0
    %vm2130 = vcmp.lt.s32.totalorder %v1910, 0
    %vm2131 = vcmp.lt.s32.totalorder %v1917, 0
    %vm2132 = vcmp.lt.s32.totalorder %v1924, 0
    %vm2133 = vcmp.lt.s32.totalorder %v1931, 0
    %vm2134 = vcmp.lt.s32.totalorder %v1938, 0
    %vm2135 = vcmp.lt.s32.totalorder %v1945, 0
    %vm2136 = vcmp.lt.s32.totalorder %v1952, 0
    %vm2137 = vcmp.lt.s32.totalorder %v1959, 0
    %vm2138 = vcmp.lt.s32.totalorder %v1966, 0
    %vm2139 = vcmp.lt.s32.totalorder %v1973, 0
    %vm2140 = vcmp.lt.s32.totalorder %v1980, 0
    %vm2141 = vcmp.lt.s32.totalorder %v1987, 0
    %vm2142 = vcmp.lt.s32.totalorder %v1994, 0
    %vm2143 = vcmp.lt.s32.totalorder %v2001, 0
    %vm2144 = vcmp.lt.s32.totalorder %v2008, 0
    %vm2145 = vcmp.lt.s32.totalorder %v2015, 0
    %vm2146 = vcmp.lt.s32.totalorder %v2022, 0
    %vm2147 = vcmp.lt.s32.totalorder %v2029, 0
    %vm2148 = vcmp.lt.s32.totalorder %v2036, 0
    %vm2149 = vcmp.lt.s32.totalorder %v2043, 0
    %vm2150 = vcmp.lt.s32.totalorder %v2050, 0
    %vm2151 = vcmp.lt.s32.totalorder %v2057, 0
    %vm2152 = vcmp.lt.s32.totalorder %v2064, 0
    %vm2153 = vcmp.lt.s32.totalorder %v2071, 0
    %vm2154 = vcmp.lt.s32.totalorder %v2078, 0
    %vm2155 = vcmp.lt.s32.totalorder %v2085, 0
    %vm2156 = vcmp.lt.s32.totalorder %v2092, 0
    %vm2157 = vmand %vm2125, %vm2093
    %vm2158 = vmand %vm2126, %vm2094
    %vm2159 = vmand %vm2127, %vm2095
    %vm2160 = vmand %vm2128, %vm2096
    %vm2161 = vmand %vm2129, %vm2097
    %vm2162 = vmand %vm2130, %vm2098
    %vm2163 = vmand %vm2131, %vm2099
    %vm2164 = vmand %vm2132, %vm2100
    %vm2165 = vmand %vm2133, %vm2101
    %vm2166 = vmand %vm2134, %vm2102
    %vm2167 = vmand %vm2135, %vm2103
    %vm2168 = vmand %vm2136, %vm2104
    %vm2169 = vmand %vm2137, %vm2105
    %vm2170 = vmand %vm2138, %vm2106
    %vm2171 = vmand %vm2139, %vm2107
    %vm2172 = vmand %vm2140, %vm2108
    %vm2173 = vmand %vm2141, %vm2109
    %vm2174 = vmand %vm2142, %vm2110
    %vm2175 = vmand %vm2143, %vm2111
    %vm2176 = vmand %vm2144, %vm2112
    %vm2177 = vmand %vm2145, %vm2113
    %vm2178 = vmand %vm2146, %vm2114
    %vm2179 = vmand %vm2147, %vm2115
    %vm2180 = vmand %vm2148, %vm2116
    %vm2181 = vmand %vm2149, %vm2117
    %vm2182 = vmand %vm2150, %vm2118
    %vm2183 = vmand %vm2151, %vm2119
    %vm2184 = vmand %vm2152, %vm2120
    %vm2185 = vmand %vm2153, %vm2121
    %vm2186 = vmand %vm2154, %vm2122
    %vm2187 = vmand %vm2155, %vm2123
    %vm2188 = vmand %vm2156, %vm2124
    %v2189 = vadd.s32 %v1875, 128
    %v2190 = vadd.s32 %v1882, 128
    %v2191 = vadd.s32 %v1889, 128
    %v2192 = vadd.s32 %v1896, 128
    %v2193 = vadd.s32 %v1903, 128
    %v2194 = vadd.s32 %v1910, 128
    %v2195 = vadd.s32 %v1917, 128
    %v2196 = vadd.s32 %v1924, 128
    %v2197 = vadd.s32 %v1931, 128
    %v2198 = vadd.s32 %v1938, 128
    %v2199 = vadd.s32 %v1945, 128
    %v2200 = vadd.s32 %v1952, 128
    %v2201 = vadd.s32 %v1959, 128
    %v2202 = vadd.s32 %v1966, 128
    %v2203 = vadd.s32 %v1973, 128
    %v2204 = vadd.s32 %v1980, 128
    %v2205 = vadd.s32 %v1987, 128
    %v2206 = vadd.s32 %v1994, 128
    %v2207 = vadd.s32 %v2001, 128
    %v2208 = vadd.s32 %v2008, 128
    %v2209 = vadd.s32 %v2015, 128
    %v2210 = vadd.s32 %v2022, 128
    %v2211 = vadd.s32 %v2029, 128
    %v2212 = vadd.s32 %v2036, 128
    %v2213 = vadd.s32 %v2043, 128
    %v2214 = vadd.s32 %v2050, 128
    %v2215 = vadd.s32 %v2057, 128
    %v2216 = vadd.s32 %v2064, 128
    %v2217 = vadd.s32 %v2071, 128
    %v2218 = vadd.s32 %v2078, 128
    %v2219 = vadd.s32 %v2085, 128
    %v2220 = vadd.s32 %v2092, 128
    %v2221 = vsel %vm2157, %v2189, %v1875
    %v2222 = vsel %vm2158, %v2190, %v1882
    %v2223 = vsel %vm2159, %v2191, %v1889
    %v2224 = vsel %vm2160, %v2192, %v1896
    %v2225 = vsel %vm2161, %v2193, %v1903
    %v2226 = vsel %vm2162, %v2194, %v1910
    %v2227 = vsel %vm2163, %v2195, %v1917
    %v2228 = vsel %vm2164, %v2196, %v1924
    %v2229 = vsel %vm2165, %v2197, %v1931
    %v2230 = vsel %vm2166, %v2198, %v1938
    %v2231 = vsel %vm2167, %v2199, %v1945
    %v2232 = vsel %vm2168, %v2200, %v1952
    %v2233 = vsel %vm2169, %v2201, %v1959
    %v2234 = vsel %vm2170, %v2202, %v1966
    %v2235 = vsel %vm2171, %v2203, %v1973
    %v2236 = vsel %vm2172, %v2204, %v1980
    %v2237 = vsel %vm2173, %v2205, %v1987
    %v2238 = vsel %vm2174, %v2206, %v1994
    %v2239 = vsel %vm2175, %v2207, %v2001
    %v2240 = vsel %vm2176, %v2208, %v2008
    %v2241 = vsel %vm2177, %v2209, %v2015
    %v2242 = vsel %vm2178, %v2210, %v2022
    %v2243 = vsel %vm2179, %v2211, %v2029
    %v2244 = vsel %vm2180, %v2212, %v2036
    %v2245 = vsel %vm2181, %v2213, %v2043
    %v2246 = vsel %vm2182, %v2214, %v2050
    %v2247 = vsel %vm2183, %v2215, %v2057
    %v2248 = vsel %vm2184, %v2216, %v2064
    %v2249 = vsel %vm2185, %v2217, %v2071
    %v2250 = vsel %vm2186, %v2218, %v2078
    %v2251 = vsel %vm2187, %v2219, %v2085
    %v2252 = vsel %vm2188, %v2220, %v2092
    %2253 = vset.pattern.permute.xlu0 0
    %2254 = vperm.xlu0 %2253, %v2221
    %v2255 = vpop.permute.xlu0 %2254
    %2256 = vset.pattern.permute.xlu0 0
    %2257 = vperm.xlu0 %2256, %v2222
    %v2258 = vpop.permute.xlu0 %2257
    %2259 = vset.pattern.permute.xlu0 0
    %2260 = vperm.xlu0 %2259, %v2223
    %v2261 = vpop.permute.xlu0 %2260
    %2262 = vset.pattern.permute.xlu0 0
    %2263 = vperm.xlu0 %2262, %v2224
    %v2264 = vpop.permute.xlu0 %2263
    %2265 = vset.pattern.permute.xlu0 0
    %2266 = vperm.xlu0 %2265, %v2225
    %v2267 = vpop.permute.xlu0 %2266
    %2268 = vset.pattern.permute.xlu0 0
    %2269 = vperm.xlu0 %2268, %v2226
    %v2270 = vpop.permute.xlu0 %2269
    %2271 = vset.pattern.permute.xlu0 0
    %2272 = vperm.xlu0 %2271, %v2227
    %v2273 = vpop.permute.xlu0 %2272
    %2274 = vset.pattern.permute.xlu0 0
    %2275 = vperm.xlu0 %2274, %v2228
    %v2276 = vpop.permute.xlu0 %2275
    %2277 = vset.pattern.permute.xlu0 0
    %2278 = vperm.xlu0 %2277, %v2229
    %v2279 = vpop.permute.xlu0 %2278
    %2280 = vset.pattern.permute.xlu0 0
    %2281 = vperm.xlu0 %2280, %v2230
    %v2282 = vpop.permute.xlu0 %2281
    %2283 = vset.pattern.permute.xlu0 0
    %2284 = vperm.xlu0 %2283, %v2231
    %v2285 = vpop.permute.xlu0 %2284
    %2286 = vset.pattern.permute.xlu0 0
    %2287 = vperm.xlu0 %2286, %v2232
    %v2288 = vpop.permute.xlu0 %2287
    %2289 = vset.pattern.permute.xlu0 0
    %2290 = vperm.xlu0 %2289, %v2233
    %v2291 = vpop.permute.xlu0 %2290
    %2292 = vset.pattern.permute.xlu0 0
    %2293 = vperm.xlu0 %2292, %v2234
    %v2294 = vpop.permute.xlu0 %2293
    %2295 = vset.pattern.permute.xlu0 0
    %2296 = vperm.xlu0 %2295, %v2235
    %v2297 = vpop.permute.xlu0 %2296
    %2298 = vset.pattern.permute.xlu0 0
    %2299 = vperm.xlu0 %2298, %v2236
    %v2300 = vpop.permute.xlu0 %2299
    %2301 = vset.pattern.permute.xlu0 0
    %2302 = vperm.xlu0 %2301, %v2237
    %v2303 = vpop.permute.xlu0 %2302
    %2304 = vset.pattern.permute.xlu0 0
    %2305 = vperm.xlu0 %2304, %v2238
    %v2306 = vpop.permute.xlu0 %2305
    %2307 = vset.pattern.permute.xlu0 0
    %2308 = vperm.xlu0 %2307, %v2239
    %v2309 = vpop.permute.xlu0 %2308
    %2310 = vset.pattern.permute.xlu0 0
    %2311 = vperm.xlu0 %2310, %v2240
    %v2312 = vpop.permute.xlu0 %2311
    %2313 = vset.pattern.permute.xlu0 0
    %2314 = vperm.xlu0 %2313, %v2241
    %v2315 = vpop.permute.xlu0 %2314
    %2316 = vset.pattern.permute.xlu0 0
    %2317 = vperm.xlu0 %2316, %v2242
    %v2318 = vpop.permute.xlu0 %2317
    %2319 = vset.pattern.permute.xlu0 0
    %2320 = vperm.xlu0 %2319, %v2243
    %v2321 = vpop.permute.xlu0 %2320
    %2322 = vset.pattern.permute.xlu0 0
    %2323 = vperm.xlu0 %2322, %v2244
    %v2324 = vpop.permute.xlu0 %2323
    %2325 = vset.pattern.permute.xlu0 0
    %2326 = vperm.xlu0 %2325, %v2245
    %v2327 = vpop.permute.xlu0 %2326
    %2328 = vset.pattern.permute.xlu0 0
    %2329 = vperm.xlu0 %2328, %v2246
    %v2330 = vpop.permute.xlu0 %2329
    %2331 = vset.pattern.permute.xlu0 0
    %2332 = vperm.xlu0 %2331, %v2247
    %v2333 = vpop.permute.xlu0 %2332
    %2334 = vset.pattern.permute.xlu0 0
    %2335 = vperm.xlu0 %2334, %v2248
    %v2336 = vpop.permute.xlu0 %2335
    %2337 = vset.pattern.permute.xlu0 0
    %2338 = vperm.xlu0 %2337, %v2249
    %v2339 = vpop.permute.xlu0 %2338
    %2340 = vset.pattern.permute.xlu0 0
    %2341 = vperm.xlu0 %2340, %v2250
    %v2342 = vpop.permute.xlu0 %2341
    %2343 = vset.pattern.permute.xlu0 0
    %2344 = vperm.xlu0 %2343, %v2251
    %v2345 = vpop.permute.xlu0 %2344
    %2346 = vset.pattern.permute.xlu0 0
    %2347 = vperm.xlu0 %2346, %v2252
    %v2348 = vpop.permute.xlu0 %2347
    %vm2349 = vcmp.eq.s32.totalorder %v2255, %v442
    %vm2350 = vcmp.eq.s32.totalorder %v2258, %v442
    %vm2351 = vcmp.eq.s32.totalorder %v2261, %v442
    %vm2352 = vcmp.eq.s32.totalorder %v2264, %v442
    %vm2353 = vcmp.eq.s32.totalorder %v2267, %v442
    %vm2354 = vcmp.eq.s32.totalorder %v2270, %v442
    %vm2355 = vcmp.eq.s32.totalorder %v2273, %v442
    %vm2356 = vcmp.eq.s32.totalorder %v2276, %v442
    %vm2357 = vcmp.eq.s32.totalorder %v2279, %v442
    %vm2358 = vcmp.eq.s32.totalorder %v2282, %v442
    %vm2359 = vcmp.eq.s32.totalorder %v2285, %v442
    %vm2360 = vcmp.eq.s32.totalorder %v2288, %v442
    %vm2361 = vcmp.eq.s32.totalorder %v2291, %v442
    %vm2362 = vcmp.eq.s32.totalorder %v2294, %v442
    %vm2363 = vcmp.eq.s32.totalorder %v2297, %v442
    %vm2364 = vcmp.eq.s32.totalorder %v2300, %v442
    %vm2365 = vcmp.eq.s32.totalorder %v2303, %v442
    %vm2366 = vcmp.eq.s32.totalorder %v2306, %v442
    %vm2367 = vcmp.eq.s32.totalorder %v2309, %v442
    %vm2368 = vcmp.eq.s32.totalorder %v2312, %v442
    %vm2369 = vcmp.eq.s32.totalorder %v2315, %v442
    %vm2370 = vcmp.eq.s32.totalorder %v2318, %v442
    %vm2371 = vcmp.eq.s32.totalorder %v2321, %v442
    %vm2372 = vcmp.eq.s32.totalorder %v2324, %v442
    %vm2373 = vcmp.eq.s32.totalorder %v2327, %v442
    %vm2374 = vcmp.eq.s32.totalorder %v2330, %v442
    %vm2375 = vcmp.eq.s32.totalorder %v2333, %v442
    %vm2376 = vcmp.eq.s32.totalorder %v2336, %v442
    %vm2377 = vcmp.eq.s32.totalorder %v2339, %v442
    %vm2378 = vcmp.eq.s32.totalorder %v2342, %v442
    %vm2379 = vcmp.eq.s32.totalorder %v2345, %v442
    %vm2380 = vcmp.eq.s32.totalorder %v2348, %v442
    %v2381 = vsel %vm2349, 1.0, 0.0
    %v2382 = vsel %vm2350, 1.0, 0.0
    %v2383 = vsel %vm2351, 1.0, 0.0
    %v2384 = vsel %vm2352, 1.0, 0.0
    %v2385 = vsel %vm2353, 1.0, 0.0
    %v2386 = vsel %vm2354, 1.0, 0.0
    %v2387 = vsel %vm2355, 1.0, 0.0
    %v2388 = vsel %vm2356, 1.0, 0.0
    %v2389 = vsel %vm2357, 1.0, 0.0
    %v2390 = vsel %vm2358, 1.0, 0.0
    %v2391 = vsel %vm2359, 1.0, 0.0
    %v2392 = vsel %vm2360, 1.0, 0.0
    %v2393 = vsel %vm2361, 1.0, 0.0
    %v2394 = vsel %vm2362, 1.0, 0.0
    %v2395 = vsel %vm2363, 1.0, 0.0
    %v2396 = vsel %vm2364, 1.0, 0.0
    %v2397 = vsel %vm2365, 1.0, 0.0
    %v2398 = vsel %vm2366, 1.0, 0.0
    %v2399 = vsel %vm2367, 1.0, 0.0
    %v2400 = vsel %vm2368, 1.0, 0.0
    %v2401 = vsel %vm2369, 1.0, 0.0
    %v2402 = vsel %vm2370, 1.0, 0.0
    %v2403 = vsel %vm2371, 1.0, 0.0
    %v2404 = vsel %vm2372, 1.0, 0.0
    %v2405 = vsel %vm2373, 1.0, 0.0
    %v2406 = vsel %vm2374, 1.0, 0.0
    %v2407 = vsel %vm2375, 1.0, 0.0
    %v2408 = vsel %vm2376, 1.0, 0.0
    %v2409 = vsel %vm2377, 1.0, 0.0
    %v2410 = vsel %vm2378, 1.0, 0.0
    %v2411 = vsel %vm2379, 1.0, 0.0
    %v2412 = vsel %vm2380, 1.0, 0.0
    %s2413 = scalar_lea.vmem %s3, 128
    %v2414 = vld [vmem:[%s2413] sm:$0xff]
    %v2415 = vld [vmem:[%s2413 + $0x8] sm:$0xff]
    %v2416 = vld [vmem:[%s2413 + $0x10] sm:$0xff]
    %v2417 = vld [vmem:[%s2413 + $0x18] sm:$0xff]
    %v2418 = vld [vmem:[%s2413 + $0x20] sm:$0xff]
    %v2419 = vld [vmem:[%s2413 + $0x28] sm:$0xff]
    %v2420 = vld [vmem:[%s2413 + $0x30] sm:$0xff]
    %v2421 = vld [vmem:[%s2413 + $0x38] sm:$0xff]
    %v2422 = vld [vmem:[%s2413 + $0x40] sm:$0xff]
    %v2423 = vld [vmem:[%s2413 + $0x48] sm:$0xff]
    %v2424 = vld [vmem:[%s2413 + $0x50] sm:$0xff]
    %v2425 = vld [vmem:[%s2413 + $0x58] sm:$0xff]
    %v2426 = vld [vmem:[%s2413 + $0x60] sm:$0xff]
    %v2427 = vld [vmem:[%s2413 + $0x68] sm:$0xff]
    %v2428 = vld [vmem:[%s2413 + $0x70] sm:$0xff]
    %v2429 = vld [vmem:[%s2413 + $0x78] sm:$0xff]
    %v2430 = vld [vmem:[%s4] sm:$0xff]
    %v2431 = vld [vmem:[%s4 + $0x8] sm:$0xff]
    %2434 = vrot.lane.b32.xlu0 %v2430, 96
    %v2435 = vpop.permute.xlu0 %2434
    %2436 = vrot.lane.b32.xlu0 %v2431, 96
    %v2437 = vpop.permute.xlu0 %2436
    %2440 = vmatprep.subr.mxu0 0.0
    %2441 = vmatpush1.msra.mxu0 %v2435
    %2442 = vmatprep.subr.mxu0 0.0
    %2443 = vmatpush1.msra.mxu0 %v2437
    %2444 = vmatprep.subr.mxu0 0.0
    %2445 = vmatpush1.msra.mxu0 0.0
    %2446 = vmatprep.subr.mxu0 0.0
    %2447 = vmatpush1.msra.mxu0 0.0
    %2448 = vmatprep.subr.mxu0 0.0
    %2449 = vmatpush1.msra.mxu0 0.0
    %2450 = vmatprep.subr.mxu0 0.0
    %2451 = vmatpush1.msra.mxu0 0.0
    %2452 = vmatprep.subr.mxu0 0.0
    %2453 = vmatpush1.msra.mxu0 0.0
    %2454 = vmatprep.subr.mxu0 0.0
    %2455 = vmatpush1.msra.mxu0 0.0
    %2456 = vmatprep.subr.mxu0 0.0
    %2457 = vmatpush1.msra.mxu0 0.0
    %2458 = vmatprep.subr.mxu0 0.0
    %2459 = vmatpush1.msra.mxu0 0.0
    %2460 = vmatprep.subr.mxu0 0.0
    %2461 = vmatpush1.msra.mxu0 0.0
    %2462 = vmatprep.subr.mxu0 0.0
    %2463 = vmatpush1.msra.mxu0 0.0
    %2464 = vmatprep.subr.mxu0 0.0
    %2465 = vmatpush1.msra.mxu0 0.0
    %2466 = vmatprep.subr.mxu0 0.0
    %2467 = vmatpush1.msra.mxu0 0.0
    %2468 = vmatprep.subr.mxu0 0.0
    %2469 = vmatpush1.msra.mxu0 0.0
    %2470 = vmatprep.subr.mxu0 0.0
    %2471 = vmatpush1.msra.mxu0 0.0
    %2472 = vmatprep.subr.mxu0 0.0
    %2473 = vmatpush1.msra.mxu0 0.0
    %2474 = vmatprep.subr.mxu0 0.0
    %2475 = vmatpush1.msra.mxu0 0.0
    %2476 = vmatprep.subr.mxu0 0.0
    %2477 = vmatpush1.msra.mxu0 0.0
    %2478 = vmatprep.subr.mxu0 0.0
    %2479 = vmatpush1.msra.mxu0 0.0
    %2480 = vmatprep.subr.mxu0 0.0
    %2481 = vmatpush1.msra.mxu0 0.0
    %2482 = vmatprep.subr.mxu0 0.0
    %2483 = vmatpush1.msra.mxu0 0.0
    %2484 = vmatprep.subr.mxu0 0.0
    %2485 = vmatpush1.msra.mxu0 0.0
    %2486 = vmatprep.subr.mxu0 0.0
    %2487 = vmatpush1.msra.mxu0 0.0
    %2488 = vmatprep.subr.mxu0 0.0
    %2489 = vmatpush1.msra.mxu0 0.0
    %2490 = vmatprep.subr.mxu0 0.0
    %2491 = vmatpush1.msra.mxu0 0.0
    %2492 = vmatprep.subr.mxu0 0.0
    %2493 = vmatpush1.msra.mxu0 0.0
    %2494 = vmatprep.subr.mxu0 0.0
    %2495 = vmatpush1.msra.mxu0 0.0
    %2496 = vmatprep.subr.mxu0 0.0
    %2497 = vmatpush1.msra.mxu0 0.0
    %2498 = vmatprep.subr.mxu0 0.0
    %2499 = vmatpush1.msra.mxu0 0.0
    %2500 = vmatprep.subr.mxu0 0.0
    %2501 = vmatpush1.msra.mxu0 0.0
    %2502 = vmatprep.subr.mxu0 0.0
    %2503 = vmatpush1.msra.mxu0 0.0
    %2504 = vmatprep.mubr.f32.mxu0 0.0
    %2505 = vmatmul.mubr.f32.gmra.mrb[0].mxu0 %v1245
    %v2506 = vpop.f32.mrb[0].mxu0
    %v2507 = vadd.f32 0.0, %v2506
    %v2508 = vpop.f32.mrb[0].mxu0
    %2509 = vmatprep.mubr.f32.mxu0 0.0
    %2510 = vmatmul.mubr.f32.gmra.mrb[0].mxu0 %v1248
    %v2511 = vpop.f32.mrb[0].mxu0
    %v2512 = vadd.f32 0.0, %v2511
    %v2513 = vpop.f32.mrb[0].mxu0
    %2514 = vmatprep.mubr.f32.mxu0 0.0
    %2515 = vmatmul.mubr.f32.gmra.mrb[0].mxu0 %v1251
    %v2516 = vpop.f32.mrb[0].mxu0
    %v2517 = vadd.f32 0.0, %v2516
    %v2518 = vpop.f32.mrb[0].mxu0
    %2519 = vmatprep.mubr.f32.mxu0 0.0
    %2520 = vmatmul.mubr.f32.gmra.mrb[0].mxu0 %v1254
    %v2521 = vpop.f32.mrb[0].mxu0
    %v2522 = vadd.f32 0.0, %v2521
    %v2523 = vpop.f32.mrb[0].mxu0
    %2524 = vmatprep.mubr.f32.mxu0 0.0
    %2525 = vmatmul.mubr.f32.gmra.mrb[0].mxu0 %v1257
    %v2526 = vpop.f32.mrb[0].mxu0
    %v2527 = vadd.f32 0.0, %v2526
    %v2528 = vpop.f32.mrb[0].mxu0
    %2529 = vmatprep.mubr.f32.mxu0 0.0
    %2530 = vmatmul.mubr.f32.gmra.mrb[0].mxu0 %v1260
    %v2531 = vpop.f32.mrb[0].mxu0
    %v2532 = vadd.f32 0.0, %v2531
    %v2533 = vpop.f32.mrb[0].mxu0
    %2534 = vmatprep.mubr.f32.mxu0 0.0
    %2535 = vmatmul.mubr.f32.gmra.mrb[0].mxu0 %v1263
    %v2536 = vpop.f32.mrb[0].mxu0
    %v2537 = vadd.f32 0.0, %v2536
    %v2538 = vpop.f32.mrb[0].mxu0
    %2539 = vmatprep.mubr.f32.mxu0 0.0
    %2540 = vmatmul.mubr.f32.gmra.mrb[0].mxu0 %v1266
    %v2541 = vpop.f32.mrb[0].mxu0
    %v2542 = vadd.f32 0.0, %v2541
    %v2543 = vpop.f32.mrb[0].mxu0
    %2544 = vmatprep.mubr.f32.mxu0 0.0
    %2545 = vmatmul.mubr.f32.gmra.mrb[0].mxu0 %v1269
    %v2546 = vpop.f32.mrb[0].mxu0
    %v2547 = vadd.f32 0.0, %v2546
    %v2548 = vpop.f32.mrb[0].mxu0
    %2549 = vmatprep.mubr.f32.mxu0 0.0
    %2550 = vmatmul.mubr.f32.gmra.mrb[0].mxu0 %v1272
    %v2551 = vpop.f32.mrb[0].mxu0
    %v2552 = vadd.f32 0.0, %v2551
    %v2553 = vpop.f32.mrb[0].mxu0
    %2554 = vmatprep.mubr.f32.mxu0 0.0
    %2555 = vmatmul.mubr.f32.gmra.mrb[0].mxu0 %v1275
    %v2556 = vpop.f32.mrb[0].mxu0
    %v2557 = vadd.f32 0.0, %v2556
    %v2558 = vpop.f32.mrb[0].mxu0
    %2559 = vmatprep.mubr.f32.mxu0 0.0
    %2560 = vmatmul.mubr.f32.gmra.mrb[0].mxu0 %v1278
    %v2561 = vpop.f32.mrb[0].mxu0
    %v2562 = vadd.f32 0.0, %v2561
    %v2563 = vpop.f32.mrb[0].mxu0
    %2564 = vmatprep.mubr.f32.mxu0 0.0
    %2565 = vmatmul.mubr.f32.gmra.mrb[0].mxu0 %v1281
    %v2566 = vpop.f32.mrb[0].mxu0
    %v2567 = vadd.f32 0.0, %v2566
    %v2568 = vpop.f32.mrb[0].mxu0
    %2569 = vmatprep.mubr.f32.mxu0 0.0
    %2570 = vmatmul.mubr.f32.gmra.mrb[0].mxu0 %v1284
    %v2571 = vpop.f32.mrb[0].mxu0
    %v2572 = vadd.f32 0.0, %v2571
    %v2573 = vpop.f32.mrb[0].mxu0
    %2574 = vmatprep.mubr.f32.mxu0 0.0
    %2575 = vmatmul.mubr.f32.gmra.mrb[0].mxu0 %v1287
    %v2576 = vpop.f32.mrb[0].mxu0
    %v2577 = vadd.f32 0.0, %v2576
    %v2578 = vpop.f32.mrb[0].mxu0
    %2579 = vmatprep.mubr.f32.mxu0 0.0
    %2580 = vmatmul.mubr.f32.gmra.mrb[0].mxu0 %v1290
    %v2581 = vpop.f32.mrb[0].mxu0
    %v2582 = vadd.f32 0.0, %v2581
    %v2583 = vpop.f32.mrb[0].mxu0
    %2584 = vmatprep.mubr.f32.mxu0 0.0
    %2585 = vmatmul.mubr.f32.gmra.mrb[0].mxu0 %v1293
    %v2586 = vpop.f32.mrb[0].mxu0
    %v2587 = vadd.f32 0.0, %v2586
    %v2588 = vpop.f32.mrb[0].mxu0
    %2589 = vmatprep.mubr.f32.mxu0 0.0
    %2590 = vmatmul.mubr.f32.gmra.mrb[0].mxu0 %v1296
    %v2591 = vpop.f32.mrb[0].mxu0
    %v2592 = vadd.f32 0.0, %v2591
    %v2593 = vpop.f32.mrb[0].mxu0
    %2594 = vmatprep.mubr.f32.mxu0 0.0
    %2595 = vmatmul.mubr.f32.gmra.mrb[0].mxu0 %v1299
    %v2596 = vpop.f32.mrb[0].mxu0
    %v2597 = vadd.f32 0.0, %v2596
    %v2598 = vpop.f32.mrb[0].mxu0
    %2599 = vmatprep.mubr.f32.mxu0 0.0
    %2600 = vmatmul.mubr.f32.gmra.mrb[0].mxu0 %v1302
    %v2601 = vpop.f32.mrb[0].mxu0
    %v2602 = vadd.f32 0.0, %v2601
    %v2603 = vpop.f32.mrb[0].mxu0
    %2604 = vmatprep.mubr.f32.mxu0 0.0
    %2605 = vmatmul.mubr.f32.gmra.mrb[0].mxu0 %v1305
    %v2606 = vpop.f32.mrb[0].mxu0
    %v2607 = vadd.f32 0.0, %v2606
    %v2608 = vpop.f32.mrb[0].mxu0
    %2609 = vmatprep.mubr.f32.mxu0 0.0
    %2610 = vmatmul.mubr.f32.gmra.mrb[0].mxu0 %v1308
    %v2611 = vpop.f32.mrb[0].mxu0
    %v2612 = vadd.f32 0.0, %v2611
    %v2613 = vpop.f32.mrb[0].mxu0
    %2614 = vmatprep.mubr.f32.mxu0 0.0
    %2615 = vmatmul.mubr.f32.gmra.mrb[0].mxu0 %v1311
    %v2616 = vpop.f32.mrb[0].mxu0
    %v2617 = vadd.f32 0.0, %v2616
    %v2618 = vpop.f32.mrb[0].mxu0
    %2619 = vmatprep.mubr.f32.mxu0 0.0
    %2620 = vmatmul.mubr.f32.gmra.mrb[0].mxu0 %v1314
    %v2621 = vpop.f32.mrb[0].mxu0
    %v2622 = vadd.f32 0.0, %v2621
    %v2623 = vpop.f32.mrb[0].mxu0
    %2624 = vmatprep.mubr.f32.mxu0 0.0
    %2625 = vmatmul.mubr.f32.gmra.mrb[0].mxu0 %v1317
    %v2626 = vpop.f32.mrb[0].mxu0
    %v2627 = vadd.f32 0.0, %v2626
    %v2628 = vpop.f32.mrb[0].mxu0
    %2629 = vmatprep.mubr.f32.mxu0 0.0
    %2630 = vmatmul.mubr.f32.gmra.mrb[0].mxu0 %v1320
    %v2631 = vpop.f32.mrb[0].mxu0
    %v2632 = vadd.f32 0.0, %v2631
    %v2633 = vpop.f32.mrb[0].mxu0
    %2634 = vmatprep.mubr.f32.mxu0 0.0
    %2635 = vmatmul.mubr.f32.gmra.mrb[0].mxu0 %v1323
    %v2636 = vpop.f32.mrb[0].mxu0
    %v2637 = vadd.f32 0.0, %v2636
    %v2638 = vpop.f32.mrb[0].mxu0
    %2639 = vmatprep.mubr.f32.mxu0 0.0
    %2640 = vmatmul.mubr.f32.gmra.mrb[0].mxu0 %v1326
    %v2641 = vpop.f32.mrb[0].mxu0
    %v2642 = vadd.f32 0.0, %v2641
    %v2643 = vpop.f32.mrb[0].mxu0
    %2644 = vmatprep.mubr.f32.mxu0 0.0
    %2645 = vmatmul.mubr.f32.gmra.mrb[0].mxu0 %v1329
    %v2646 = vpop.f32.mrb[0].mxu0
    %v2647 = vadd.f32 0.0, %v2646
    %v2648 = vpop.f32.mrb[0].mxu0
    %2649 = vmatprep.mubr.f32.mxu0 0.0
    %2650 = vmatmul.mubr.f32.gmra.mrb[0].mxu0 %v1332
    %v2651 = vpop.f32.mrb[0].mxu0
    %v2652 = vadd.f32 0.0, %v2651
    %v2653 = vpop.f32.mrb[0].mxu0
    %2654 = vmatprep.mubr.f32.mxu0 0.0
    %2655 = vmatmul.mubr.f32.gmra.mrb[0].mxu0 %v1335
    %v2656 = vpop.f32.mrb[0].mxu0
    %v2657 = vadd.f32 0.0, %v2656
    %v2658 = vpop.f32.mrb[0].mxu0
    %2659 = vmatprep.mubr.f32.mxu0 0.0
    %2660 = vmatmul.mubr.f32.gmra.mrb[0].mxu0 %v1338
    %v2661 = vpop.f32.mrb[0].mxu0
    %v2662 = vadd.f32 0.0, %v2661
    %v2663 = vpop.f32.mrb[0].mxu0
    %2664 = vdwg.mxu0
    %2665 = vmatprep.subr.mxu0 0.0
    %2666 = vmatpush1.msra.mxu0 %v2414
    %2667 = vmatprep.subr.mxu0 0.0
    %2668 = vmatpush1.msra.mxu0 %v2415
    %2669 = vmatprep.subr.mxu0 0.0
    %2670 = vmatpush1.msra.mxu0 %v2416
    %2671 = vmatprep.subr.mxu0 0.0
    %2672 = vmatpush1.msra.mxu0 %v2417
    %2673 = vmatprep.subr.mxu0 0.0
    %2674 = vmatpush1.msra.mxu0 %v2418
    %2675 = vmatprep.subr.mxu0 0.0
    %2676 = vmatpush1.msra.mxu0 %v2419
    %2677 = vmatprep.subr.mxu0 0.0
    %2678 = vmatpush1.msra.mxu0 %v2420
    %2679 = vmatprep.subr.mxu0 0.0
    %2680 = vmatpush1.msra.mxu0 %v2421
    %2681 = vmatprep.subr.mxu0 0.0
    %2682 = vmatpush1.msra.mxu0 %v2422
    %2683 = vmatprep.subr.mxu0 0.0
    %2684 = vmatpush1.msra.mxu0 %v2423
    %2685 = vmatprep.subr.mxu0 0.0
    %2686 = vmatpush1.msra.mxu0 %v2424
    %2687 = vmatprep.subr.mxu0 0.0
    %2688 = vmatpush1.msra.mxu0 %v2425
    %2689 = vmatprep.subr.mxu0 0.0
    %2690 = vmatpush1.msra.mxu0 %v2426
    %2691 = vmatprep.subr.mxu0 0.0
    %2692 = vmatpush1.msra.mxu0 %v2427
    %2693 = vmatprep.subr.mxu0 0.0
    %2694 = vmatpush1.msra.mxu0 %v2428
    %2695 = vmatprep.subr.mxu0 0.0
    %2696 = vmatpush1.msra.mxu0 %v2429
    %2697 = vmatprep.subr.mxu0 0.0
    %2698 = vmatpush1.msra.mxu0 0.0
    %2699 = vmatprep.subr.mxu0 0.0
    %2700 = vmatpush1.msra.mxu0 0.0
    %2701 = vmatprep.subr.mxu0 0.0
    %2702 = vmatpush1.msra.mxu0 0.0
    %2703 = vmatprep.subr.mxu0 0.0
    %2704 = vmatpush1.msra.mxu0 0.0
    %2705 = vmatprep.subr.mxu0 0.0
    %2706 = vmatpush1.msra.mxu0 0.0
    %2707 = vmatprep.subr.mxu0 0.0
    %2708 = vmatpush1.msra.mxu0 0.0
    %2709 = vmatprep.subr.mxu0 0.0
    %2710 = vmatpush1.msra.mxu0 0.0
    %2711 = vmatprep.subr.mxu0 0.0
    %2712 = vmatpush1.msra.mxu0 0.0
    %2713 = vmatprep.subr.mxu0 0.0
    %2714 = vmatpush1.msra.mxu0 0.0
    %2715 = vmatprep.subr.mxu0 0.0
    %2716 = vmatpush1.msra.mxu0 0.0
    %2717 = vmatprep.subr.mxu0 0.0
    %2718 = vmatpush1.msra.mxu0 0.0
    %2719 = vmatprep.subr.mxu0 0.0
    %2720 = vmatpush1.msra.mxu0 0.0
    %2721 = vmatprep.subr.mxu0 0.0
    %2722 = vmatpush1.msra.mxu0 0.0
    %2723 = vmatprep.subr.mxu0 0.0
    %2724 = vmatpush1.msra.mxu0 0.0
    %2725 = vmatprep.subr.mxu0 0.0
    %2726 = vmatpush1.msra.mxu0 0.0
    %2727 = vmatprep.subr.mxu0 0.0
    %2728 = vmatpush1.msra.mxu0 0.0
    %2729 = vmatprep.mubr.f32.mxu0 0.0
    %2730 = vmatmul.mubr.f32.gmra.mrb[0].mxu0 %v2381
    %v2731 = vpop.f32.mrb[0].mxu0
    %v2732 = vadd.f32 %v2507, %v2731
    %v2733 = vpop.f32.mrb[0].mxu0
    %2734 = vmatprep.mubr.f32.mxu0 0.0
    %2735 = vmatmul.mubr.f32.gmra.mrb[0].mxu0 %v2382
    %v2736 = vpop.f32.mrb[0].mxu0
    %v2737 = vadd.f32 %v2512, %v2736
    %v2738 = vpop.f32.mrb[0].mxu0
    %2739 = vmatprep.mubr.f32.mxu0 0.0
    %2740 = vmatmul.mubr.f32.gmra.mrb[0].mxu0 %v2383
    %v2741 = vpop.f32.mrb[0].mxu0
    %v2742 = vadd.f32 %v2517, %v2741
    %v2743 = vpop.f32.mrb[0].mxu0
    %2744 = vmatprep.mubr.f32.mxu0 0.0
    %2745 = vmatmul.mubr.f32.gmra.mrb[0].mxu0 %v2384
    %v2746 = vpop.f32.mrb[0].mxu0
    %v2747 = vadd.f32 %v2522, %v2746
    %v2748 = vpop.f32.mrb[0].mxu0
    %2749 = vmatprep.mubr.f32.mxu0 0.0
    %2750 = vmatmul.mubr.f32.gmra.mrb[0].mxu0 %v2385
    %v2751 = vpop.f32.mrb[0].mxu0
    %v2752 = vadd.f32 %v2527, %v2751
    %v2753 = vpop.f32.mrb[0].mxu0
    %2754 = vmatprep.mubr.f32.mxu0 0.0
    %2755 = vmatmul.mubr.f32.gmra.mrb[0].mxu0 %v2386
    %v2756 = vpop.f32.mrb[0].mxu0
    %v2757 = vadd.f32 %v2532, %v2756
    %v2758 = vpop.f32.mrb[0].mxu0
    %2759 = vmatprep.mubr.f32.mxu0 0.0
    %2760 = vmatmul.mubr.f32.gmra.mrb[0].mxu0 %v2387
    %v2761 = vpop.f32.mrb[0].mxu0
    %v2762 = vadd.f32 %v2537, %v2761
    %v2763 = vpop.f32.mrb[0].mxu0
    %2764 = vmatprep.mubr.f32.mxu0 0.0
    %2765 = vmatmul.mubr.f32.gmra.mrb[0].mxu0 %v2388
    %v2766 = vpop.f32.mrb[0].mxu0
    %v2767 = vadd.f32 %v2542, %v2766
    %v2768 = vpop.f32.mrb[0].mxu0
    %2769 = vmatprep.mubr.f32.mxu0 0.0
    %2770 = vmatmul.mubr.f32.gmra.mrb[0].mxu0 %v2389
    %v2771 = vpop.f32.mrb[0].mxu0
    %v2772 = vadd.f32 %v2547, %v2771
    %v2773 = vpop.f32.mrb[0].mxu0
    %2774 = vmatprep.mubr.f32.mxu0 0.0
    %2775 = vmatmul.mubr.f32.gmra.mrb[0].mxu0 %v2390
    %v2776 = vpop.f32.mrb[0].mxu0
    %v2777 = vadd.f32 %v2552, %v2776
    %v2778 = vpop.f32.mrb[0].mxu0
    %2779 = vmatprep.mubr.f32.mxu0 0.0
    %2780 = vmatmul.mubr.f32.gmra.mrb[0].mxu0 %v2391
    %v2781 = vpop.f32.mrb[0].mxu0
    %v2782 = vadd.f32 %v2557, %v2781
    %v2783 = vpop.f32.mrb[0].mxu0
    %2784 = vmatprep.mubr.f32.mxu0 0.0
    %2785 = vmatmul.mubr.f32.gmra.mrb[0].mxu0 %v2392
    %v2786 = vpop.f32.mrb[0].mxu0
    %v2787 = vadd.f32 %v2562, %v2786
    %v2788 = vpop.f32.mrb[0].mxu0
    %2789 = vmatprep.mubr.f32.mxu0 0.0
    %2790 = vmatmul.mubr.f32.gmra.mrb[0].mxu0 %v2393
    %v2791 = vpop.f32.mrb[0].mxu0
    %v2792 = vadd.f32 %v2567, %v2791
    %v2793 = vpop.f32.mrb[0].mxu0
    %2794 = vmatprep.mubr.f32.mxu0 0.0
    %2795 = vmatmul.mubr.f32.gmra.mrb[0].mxu0 %v2394
    %v2796 = vpop.f32.mrb[0].mxu0
    %v2797 = vadd.f32 %v2572, %v2796
    %v2798 = vpop.f32.mrb[0].mxu0
    %2799 = vmatprep.mubr.f32.mxu0 0.0
    %2800 = vmatmul.mubr.f32.gmra.mrb[0].mxu0 %v2395
    %v2801 = vpop.f32.mrb[0].mxu0
    %v2802 = vadd.f32 %v2577, %v2801
    %v2803 = vpop.f32.mrb[0].mxu0
    %2804 = vmatprep.mubr.f32.mxu0 0.0
    %2805 = vmatmul.mubr.f32.gmra.mrb[0].mxu0 %v2396
    %v2806 = vpop.f32.mrb[0].mxu0
    %v2807 = vadd.f32 %v2582, %v2806
    %v2808 = vpop.f32.mrb[0].mxu0
    %2809 = vmatprep.mubr.f32.mxu0 0.0
    %2810 = vmatmul.mubr.f32.gmra.mrb[0].mxu0 %v2397
    %v2811 = vpop.f32.mrb[0].mxu0
    %v2812 = vadd.f32 %v2587, %v2811
    %v2813 = vpop.f32.mrb[0].mxu0
    %2814 = vmatprep.mubr.f32.mxu0 0.0
    %2815 = vmatmul.mubr.f32.gmra.mrb[0].mxu0 %v2398
    %v2816 = vpop.f32.mrb[0].mxu0
    %v2817 = vadd.f32 %v2592, %v2816
    %v2818 = vpop.f32.mrb[0].mxu0
    %2819 = vmatprep.mubr.f32.mxu0 0.0
    %2820 = vmatmul.mubr.f32.gmra.mrb[0].mxu0 %v2399
    %v2821 = vpop.f32.mrb[0].mxu0
    %v2822 = vadd.f32 %v2597, %v2821
    %v2823 = vpop.f32.mrb[0].mxu0
    %2824 = vmatprep.mubr.f32.mxu0 0.0
    %2825 = vmatmul.mubr.f32.gmra.mrb[0].mxu0 %v2400
    %v2826 = vpop.f32.mrb[0].mxu0
    %v2827 = vadd.f32 %v2602, %v2826
    %v2828 = vpop.f32.mrb[0].mxu0
    %2829 = vmatprep.mubr.f32.mxu0 0.0
    %2830 = vmatmul.mubr.f32.gmra.mrb[0].mxu0 %v2401
    %v2831 = vpop.f32.mrb[0].mxu0
    %v2832 = vadd.f32 %v2607, %v2831
    %v2833 = vpop.f32.mrb[0].mxu0
    %2834 = vmatprep.mubr.f32.mxu0 0.0
    %2835 = vmatmul.mubr.f32.gmra.mrb[0].mxu0 %v2402
    %v2836 = vpop.f32.mrb[0].mxu0
    %v2837 = vadd.f32 %v2612, %v2836
    %v2838 = vpop.f32.mrb[0].mxu0
    %2839 = vmatprep.mubr.f32.mxu0 0.0
    %2840 = vmatmul.mubr.f32.gmra.mrb[0].mxu0 %v2403
    %v2841 = vpop.f32.mrb[0].mxu0
    %v2842 = vadd.f32 %v2617, %v2841
    %v2843 = vpop.f32.mrb[0].mxu0
    %2844 = vmatprep.mubr.f32.mxu0 0.0
    %2845 = vmatmul.mubr.f32.gmra.mrb[0].mxu0 %v2404
    %v2846 = vpop.f32.mrb[0].mxu0
    %v2847 = vadd.f32 %v2622, %v2846
    %v2848 = vpop.f32.mrb[0].mxu0
    %2849 = vmatprep.mubr.f32.mxu0 0.0
    %2850 = vmatmul.mubr.f32.gmra.mrb[0].mxu0 %v2405
    %v2851 = vpop.f32.mrb[0].mxu0
    %v2852 = vadd.f32 %v2627, %v2851
    %v2853 = vpop.f32.mrb[0].mxu0
    %2854 = vmatprep.mubr.f32.mxu0 0.0
    %2855 = vmatmul.mubr.f32.gmra.mrb[0].mxu0 %v2406
    %v2856 = vpop.f32.mrb[0].mxu0
    %v2857 = vadd.f32 %v2632, %v2856
    %v2858 = vpop.f32.mrb[0].mxu0
    %2859 = vmatprep.mubr.f32.mxu0 0.0
    %2860 = vmatmul.mubr.f32.gmra.mrb[0].mxu0 %v2407
    %v2861 = vpop.f32.mrb[0].mxu0
    %v2862 = vadd.f32 %v2637, %v2861
    %v2863 = vpop.f32.mrb[0].mxu0
    %2864 = vmatprep.mubr.f32.mxu0 0.0
    %2865 = vmatmul.mubr.f32.gmra.mrb[0].mxu0 %v2408
    %v2866 = vpop.f32.mrb[0].mxu0
    %v2867 = vadd.f32 %v2642, %v2866
    %v2868 = vpop.f32.mrb[0].mxu0
    %2869 = vmatprep.mubr.f32.mxu0 0.0
    %2870 = vmatmul.mubr.f32.gmra.mrb[0].mxu0 %v2409
    %v2871 = vpop.f32.mrb[0].mxu0
    %v2872 = vadd.f32 %v2647, %v2871
    %v2873 = vpop.f32.mrb[0].mxu0
    %2874 = vmatprep.mubr.f32.mxu0 0.0
    %2875 = vmatmul.mubr.f32.gmra.mrb[0].mxu0 %v2410
    %v2876 = vpop.f32.mrb[0].mxu0
    %v2877 = vadd.f32 %v2652, %v2876
    %v2878 = vpop.f32.mrb[0].mxu0
    %2879 = vmatprep.mubr.f32.mxu0 0.0
    %2880 = vmatmul.mubr.f32.gmra.mrb[0].mxu0 %v2411
    %v2881 = vpop.f32.mrb[0].mxu0
    %v2882 = vadd.f32 %v2657, %v2881
    %v2883 = vpop.f32.mrb[0].mxu0
    %2884 = vmatprep.mubr.f32.mxu0 0.0
    %2885 = vmatmul.mubr.f32.gmra.mrb[0].mxu0 %v2412
    %v2886 = vpop.f32.mrb[0].mxu0
    %v2887 = vadd.f32 %v2662, %v2886
    %v2888 = vpop.f32.mrb[0].mxu0
    %2889 = vdwg.mxu0
    %2922 = vrot.lane.b32.xlu0 %v2732, 32
    %v2923 = vpop.permute.xlu0 %2922
    %2924 = vrot.lane.b32.xlu0 %v2737, 32
    %v2925 = vpop.permute.xlu0 %2924
    %2926 = vrot.lane.b32.xlu0 %v2742, 32
    %v2927 = vpop.permute.xlu0 %2926
    %2928 = vrot.lane.b32.xlu0 %v2747, 32
    %v2929 = vpop.permute.xlu0 %2928
    %2930 = vrot.lane.b32.xlu0 %v2752, 32
    %v2931 = vpop.permute.xlu0 %2930
    %2932 = vrot.lane.b32.xlu0 %v2757, 32
    %v2933 = vpop.permute.xlu0 %2932
    %2934 = vrot.lane.b32.xlu0 %v2762, 32
    %v2935 = vpop.permute.xlu0 %2934
    %2936 = vrot.lane.b32.xlu0 %v2767, 32
    %v2937 = vpop.permute.xlu0 %2936
    %2938 = vrot.lane.b32.xlu0 %v2772, 32
    %v2939 = vpop.permute.xlu0 %2938
    %2940 = vrot.lane.b32.xlu0 %v2777, 32
    %v2941 = vpop.permute.xlu0 %2940
    %2942 = vrot.lane.b32.xlu0 %v2782, 32
    %v2943 = vpop.permute.xlu0 %2942
    %2944 = vrot.lane.b32.xlu0 %v2787, 32
    %v2945 = vpop.permute.xlu0 %2944
    %2946 = vrot.lane.b32.xlu0 %v2792, 32
    %v2947 = vpop.permute.xlu0 %2946
    %2948 = vrot.lane.b32.xlu0 %v2797, 32
    %v2949 = vpop.permute.xlu0 %2948
    %2950 = vrot.lane.b32.xlu0 %v2802, 32
    %v2951 = vpop.permute.xlu0 %2950
    %2952 = vrot.lane.b32.xlu0 %v2807, 32
    %v2953 = vpop.permute.xlu0 %2952
    %2954 = vrot.lane.b32.xlu0 %v2812, 32
    %v2955 = vpop.permute.xlu0 %2954
    %2956 = vrot.lane.b32.xlu0 %v2817, 32
    %v2957 = vpop.permute.xlu0 %2956
    %2958 = vrot.lane.b32.xlu0 %v2822, 32
    %v2959 = vpop.permute.xlu0 %2958
    %2960 = vrot.lane.b32.xlu0 %v2827, 32
    %v2961 = vpop.permute.xlu0 %2960
    %2962 = vrot.lane.b32.xlu0 %v2832, 32
    %v2963 = vpop.permute.xlu0 %2962
    %2964 = vrot.lane.b32.xlu0 %v2837, 32
    %v2965 = vpop.permute.xlu0 %2964
    %2966 = vrot.lane.b32.xlu0 %v2842, 32
    %v2967 = vpop.permute.xlu0 %2966
    %2968 = vrot.lane.b32.xlu0 %v2847, 32
    %v2969 = vpop.permute.xlu0 %2968
    %2970 = vrot.lane.b32.xlu0 %v2852, 32
    %v2971 = vpop.permute.xlu0 %2970
    %2972 = vrot.lane.b32.xlu0 %v2857, 32
    %v2973 = vpop.permute.xlu0 %2972
    %2974 = vrot.lane.b32.xlu0 %v2862, 32
    %v2975 = vpop.permute.xlu0 %2974
    %2976 = vrot.lane.b32.xlu0 %v2867, 32
    %v2977 = vpop.permute.xlu0 %2976
    %2978 = vrot.lane.b32.xlu0 %v2872, 32
    %v2979 = vpop.permute.xlu0 %2978
    %2980 = vrot.lane.b32.xlu0 %v2877, 32
    %v2981 = vpop.permute.xlu0 %2980
    %2982 = vrot.lane.b32.xlu0 %v2882, 32
    %v2983 = vpop.permute.xlu0 %2982
    %2984 = vrot.lane.b32.xlu0 %v2887, 32
    %v2985 = vpop.permute.xlu0 %2984
    %vm3018 = vcmask 523520
    %3019 = vst.msk [vmem:[#allocation4] sm:$0xff] %vm3018, %v2923
    %3020 = vst.msk [vmem:[#allocation4 + $0x8] sm:$0xff] %vm3018, %v2925
    %3021 = vst.msk [vmem:[#allocation4 + $0x10] sm:$0xff] %vm3018, %v2927
    %3022 = vst.msk [vmem:[#allocation4 + $0x18] sm:$0xff] %vm3018, %v2929
    %3023 = vst.msk [vmem:[#allocation4 + $0x20] sm:$0xff] %vm3018, %v2931
    %3024 = vst.msk [vmem:[#allocation4 + $0x28] sm:$0xff] %vm3018, %v2933
    %3025 = vst.msk [vmem:[#allocation4 + $0x30] sm:$0xff] %vm3018, %v2935
    %3026 = vst.msk [vmem:[#allocation4 + $0x38] sm:$0xff] %vm3018, %v2937
    %3027 = vst.msk [vmem:[#allocation4 + $0x40] sm:$0xff] %vm3018, %v2939
    %3028 = vst.msk [vmem:[#allocation4 + $0x48] sm:$0xff] %vm3018, %v2941
    %3029 = vst.msk [vmem:[#allocation4 + $0x50] sm:$0xff] %vm3018, %v2943
    %3030 = vst.msk [vmem:[#allocation4 + $0x58] sm:$0xff] %vm3018, %v2945
    %3031 = vst.msk [vmem:[#allocation4 + $0x60] sm:$0xff] %vm3018, %v2947
    %3032 = vst.msk [vmem:[#allocation4 + $0x68] sm:$0xff] %vm3018, %v2949
    %3033 = vst.msk [vmem:[#allocation4 + $0x70] sm:$0xff] %vm3018, %v2951
    %3034 = vst.msk [vmem:[#allocation4 + $0x78] sm:$0xff] %vm3018, %v2953
    %3035 = vst.msk [vmem:[#allocation4 + $0x80] sm:$0xff] %vm3018, %v2955
    %3036 = vst.msk [vmem:[#allocation4 + $0x88] sm:$0xff] %vm3018, %v2957
    %3037 = vst.msk [vmem:[#allocation4 + $0x90] sm:$0xff] %vm3018, %v2959
    %3038 = vst.msk [vmem:[#allocation4 + $0x98] sm:$0xff] %vm3018, %v2961
    %3039 = vst.msk [vmem:[#allocation4 + $0xa0] sm:$0xff] %vm3018, %v2963
    %3040 = vst.msk [vmem:[#allocation4 + $0xa8] sm:$0xff] %vm3018, %v2965
    %3041 = vst.msk [vmem:[#allocation4 + $0xb0] sm:$0xff] %vm3018, %v2967
    %3042 = vst.msk [vmem:[#allocation4 + $0xb8] sm:$0xff] %vm3018, %v2969
    %3043 = vst.msk [vmem:[#allocation4 + $0xc0] sm:$0xff] %vm3018, %v2971
    %3044 = vst.msk [vmem:[#allocation4 + $0xc8] sm:$0xff] %vm3018, %v2973
    %3045 = vst.msk [vmem:[#allocation4 + $0xd0] sm:$0xff] %vm3018, %v2975
    %3046 = vst.msk [vmem:[#allocation4 + $0xd8] sm:$0xff] %vm3018, %v2977
    %3047 = vst.msk [vmem:[#allocation4 + $0xe0] sm:$0xff] %vm3018, %v2979
    %3048 = vst.msk [vmem:[#allocation4 + $0xe8] sm:$0xff] %vm3018, %v2981
    %3049 = vst.msk [vmem:[#allocation4 + $0xf0] sm:$0xff] %vm3018, %v2983
    %3050 = vst.msk [vmem:[#allocation4 + $0xf8] sm:$0xff] %vm3018, %v2985
    %s3051 = sld [smem:[#allocation3 + $0x2]]
    %p3052 = scmp.lt.s32.totalorder %s3051, 0
    %s3053 = ssub.s32 0, %s3051
    %s3054 = scalar_select %p3052, %s3053, %s3051
    %s3055 = sand.u32 %s3054, 127
    %s3056 = ssub.s32 0, %s3055
    %s3057 = scalar_select %p3052, %s3056, %s3055
    %p3058 = scmp.ne.s32.totalorder %s3057, 0
    %p3059 = scmp.lt.s32.totalorder %s3057, 0
    %p3060 = pnand %p3059, %p3058
    %p3061 = pneg %p3060
    %s3062 = sadd.s32 %s3057, 128
    %s3063 = scalar_select %p3061, %s3062, %s3057
    %v3064 = vstv %s3063
    %v3065 = vmul.u32 %v409, %v3064
    %v3066 = vmul.u32 %v410, %v3064
    %v3067 = vmul.u32 %v411, %v3064
    %v3068 = vmul.u32 %v412, %v3064
    %v3069 = vmul.u32 %v413, %v3064
    %v3070 = vmul.u32 %v414, %v3064
    %v3071 = vmul.u32 %v415, %v3064
    %v3072 = vmul.u32 %v416, %v3064
    %v3073 = vmul.u32 %v417, %v3064
    %v3074 = vmul.u32 %v418, %v3064
    %v3075 = vmul.u32 %v419, %v3064
    %v3076 = vmul.u32 %v420, %v3064
    %v3077 = vmul.u32 %v421, %v3064
    %v3078 = vmul.u32 %v422, %v3064
    %v3079 = vmul.u32 %v423, %v3064
    %v3080 = vmul.u32 %v424, %v3064
    %v3081 = vmul.u32 %v425, %v3064
    %v3082 = vmul.u32 %v426, %v3064
    %v3083 = vmul.u32 %v427, %v3064
    %v3084 = vmul.u32 %v428, %v3064
    %v3085 = vmul.u32 %v429, %v3064
    %v3086 = vmul.u32 %v430, %v3064
    %v3087 = vmul.u32 %v431, %v3064
    %v3088 = vmul.u32 %v432, %v3064
    %v3089 = vmul.u32 %v433, %v3064
    %v3090 = vmul.u32 %v434, %v3064
    %v3091 = vmul.u32 %v435, %v3064
    %v3092 = vmul.u32 %v436, %v3064
    %v3093 = vmul.u32 %v437, %v3064
    %v3094 = vmul.u32 %v438, %v3064
    %v3095 = vmul.u32 %v439, %v3064
    %v3096 = vmul.u32 %v440, %v3064
    %vm3097 = vcmp.lt.s32.totalorder %v3065, 0
    %v3098 = vsub.s32 0, %v3065
    %v3099 = vsel %vm3097, %v3098, %v3065
    %v3100 = vshrl.u32 %v3099, 7
    %v3101 = vand.u32 %v3099, 127
    %v3102 = vsub.s32 0, %v3101
    %v3103 = vsel %vm3097, %v3102, %v3101
    %vm3104 = vcmp.lt.s32.totalorder %v3066, 0
    %v3105 = vsub.s32 0, %v3066
    %v3106 = vsel %vm3104, %v3105, %v3066
    %v3107 = vshrl.u32 %v3106, 7
    %v3108 = vand.u32 %v3106, 127
    %v3109 = vsub.s32 0, %v3108
    %v3110 = vsel %vm3104, %v3109, %v3108
    %vm3111 = vcmp.lt.s32.totalorder %v3067, 0
    %v3112 = vsub.s32 0, %v3067
    %v3113 = vsel %vm3111, %v3112, %v3067
    %v3114 = vshrl.u32 %v3113, 7
    %v3115 = vand.u32 %v3113, 127
    %v3116 = vsub.s32 0, %v3115
    %v3117 = vsel %vm3111, %v3116, %v3115
    %vm3118 = vcmp.lt.s32.totalorder %v3068, 0
    %v3119 = vsub.s32 0, %v3068
    %v3120 = vsel %vm3118, %v3119, %v3068
    %v3121 = vshrl.u32 %v3120, 7
    %v3122 = vand.u32 %v3120, 127
    %v3123 = vsub.s32 0, %v3122
    %v3124 = vsel %vm3118, %v3123, %v3122
    %vm3125 = vcmp.lt.s32.totalorder %v3069, 0
    %v3126 = vsub.s32 0, %v3069
    %v3127 = vsel %vm3125, %v3126, %v3069
    %v3128 = vshrl.u32 %v3127, 7
    %v3129 = vand.u32 %v3127, 127
    %v3130 = vsub.s32 0, %v3129
    %v3131 = vsel %vm3125, %v3130, %v3129
    %vm3132 = vcmp.lt.s32.totalorder %v3070, 0
    %v3133 = vsub.s32 0, %v3070
    %v3134 = vsel %vm3132, %v3133, %v3070
    %v3135 = vshrl.u32 %v3134, 7
    %v3136 = vand.u32 %v3134, 127
    %v3137 = vsub.s32 0, %v3136
    %v3138 = vsel %vm3132, %v3137, %v3136
    %vm3139 = vcmp.lt.s32.totalorder %v3071, 0
    %v3140 = vsub.s32 0, %v3071
    %v3141 = vsel %vm3139, %v3140, %v3071
    %v3142 = vshrl.u32 %v3141, 7
    %v3143 = vand.u32 %v3141, 127
    %v3144 = vsub.s32 0, %v3143
    %v3145 = vsel %vm3139, %v3144, %v3143
    %vm3146 = vcmp.lt.s32.totalorder %v3072, 0
    %v3147 = vsub.s32 0, %v3072
    %v3148 = vsel %vm3146, %v3147, %v3072
    %v3149 = vshrl.u32 %v3148, 7
    %v3150 = vand.u32 %v3148, 127
    %v3151 = vsub.s32 0, %v3150
    %v3152 = vsel %vm3146, %v3151, %v3150
    %vm3153 = vcmp.lt.s32.totalorder %v3073, 0
    %v3154 = vsub.s32 0, %v3073
    %v3155 = vsel %vm3153, %v3154, %v3073
    %v3156 = vshrl.u32 %v3155, 7
    %v3157 = vand.u32 %v3155, 127
    %v3158 = vsub.s32 0, %v3157
    %v3159 = vsel %vm3153, %v3158, %v3157
    %vm3160 = vcmp.lt.s32.totalorder %v3074, 0
    %v3161 = vsub.s32 0, %v3074
    %v3162 = vsel %vm3160, %v3161, %v3074
    %v3163 = vshrl.u32 %v3162, 7
    %v3164 = vand.u32 %v3162, 127
    %v3165 = vsub.s32 0, %v3164
    %v3166 = vsel %vm3160, %v3165, %v3164
    %vm3167 = vcmp.lt.s32.totalorder %v3075, 0
    %v3168 = vsub.s32 0, %v3075
    %v3169 = vsel %vm3167, %v3168, %v3075
    %v3170 = vshrl.u32 %v3169, 7
    %v3171 = vand.u32 %v3169, 127
    %v3172 = vsub.s32 0, %v3171
    %v3173 = vsel %vm3167, %v3172, %v3171
    %vm3174 = vcmp.lt.s32.totalorder %v3076, 0
    %v3175 = vsub.s32 0, %v3076
    %v3176 = vsel %vm3174, %v3175, %v3076
    %v3177 = vshrl.u32 %v3176, 7
    %v3178 = vand.u32 %v3176, 127
    %v3179 = vsub.s32 0, %v3178
    %v3180 = vsel %vm3174, %v3179, %v3178
    %vm3181 = vcmp.lt.s32.totalorder %v3077, 0
    %v3182 = vsub.s32 0, %v3077
    %v3183 = vsel %vm3181, %v3182, %v3077
    %v3184 = vshrl.u32 %v3183, 7
    %v3185 = vand.u32 %v3183, 127
    %v3186 = vsub.s32 0, %v3185
    %v3187 = vsel %vm3181, %v3186, %v3185
    %vm3188 = vcmp.lt.s32.totalorder %v3078, 0
    %v3189 = vsub.s32 0, %v3078
    %v3190 = vsel %vm3188, %v3189, %v3078
    %v3191 = vshrl.u32 %v3190, 7
    %v3192 = vand.u32 %v3190, 127
    %v3193 = vsub.s32 0, %v3192
    %v3194 = vsel %vm3188, %v3193, %v3192
    %vm3195 = vcmp.lt.s32.totalorder %v3079, 0
    %v3196 = vsub.s32 0, %v3079
    %v3197 = vsel %vm3195, %v3196, %v3079
    %v3198 = vshrl.u32 %v3197, 7
    %v3199 = vand.u32 %v3197, 127
    %v3200 = vsub.s32 0, %v3199
    %v3201 = vsel %vm3195, %v3200, %v3199
    %vm3202 = vcmp.lt.s32.totalorder %v3080, 0
    %v3203 = vsub.s32 0, %v3080
    %v3204 = vsel %vm3202, %v3203, %v3080
    %v3205 = vshrl.u32 %v3204, 7
    %v3206 = vand.u32 %v3204, 127
    %v3207 = vsub.s32 0, %v3206
    %v3208 = vsel %vm3202, %v3207, %v3206
    %vm3209 = vcmp.lt.s32.totalorder %v3081, 0
    %v3210 = vsub.s32 0, %v3081
    %v3211 = vsel %vm3209, %v3210, %v3081
    %v3212 = vshrl.u32 %v3211, 7
    %v3213 = vand.u32 %v3211, 127
    %v3214 = vsub.s32 0, %v3213
    %v3215 = vsel %vm3209, %v3214, %v3213
    %vm3216 = vcmp.lt.s32.totalorder %v3082, 0
    %v3217 = vsub.s32 0, %v3082
    %v3218 = vsel %vm3216, %v3217, %v3082
    %v3219 = vshrl.u32 %v3218, 7
    %v3220 = vand.u32 %v3218, 127
    %v3221 = vsub.s32 0, %v3220
    %v3222 = vsel %vm3216, %v3221, %v3220
    %vm3223 = vcmp.lt.s32.totalorder %v3083, 0
    %v3224 = vsub.s32 0, %v3083
    %v3225 = vsel %vm3223, %v3224, %v3083
    %v3226 = vshrl.u32 %v3225, 7
    %v3227 = vand.u32 %v3225, 127
    %v3228 = vsub.s32 0, %v3227
    %v3229 = vsel %vm3223, %v3228, %v3227
    %vm3230 = vcmp.lt.s32.totalorder %v3084, 0
    %v3231 = vsub.s32 0, %v3084
    %v3232 = vsel %vm3230, %v3231, %v3084
    %v3233 = vshrl.u32 %v3232, 7
    %v3234 = vand.u32 %v3232, 127
    %v3235 = vsub.s32 0, %v3234
    %v3236 = vsel %vm3230, %v3235, %v3234
    %vm3237 = vcmp.lt.s32.totalorder %v3085, 0
    %v3238 = vsub.s32 0, %v3085
    %v3239 = vsel %vm3237, %v3238, %v3085
    %v3240 = vshrl.u32 %v3239, 7
    %v3241 = vand.u32 %v3239, 127
    %v3242 = vsub.s32 0, %v3241
    %v3243 = vsel %vm3237, %v3242, %v3241
    %vm3244 = vcmp.lt.s32.totalorder %v3086, 0
    %v3245 = vsub.s32 0, %v3086
    %v3246 = vsel %vm3244, %v3245, %v3086
    %v3247 = vshrl.u32 %v3246, 7
    %v3248 = vand.u32 %v3246, 127
    %v3249 = vsub.s32 0, %v3248
    %v3250 = vsel %vm3244, %v3249, %v3248
    %vm3251 = vcmp.lt.s32.totalorder %v3087, 0
    %v3252 = vsub.s32 0, %v3087
    %v3253 = vsel %vm3251, %v3252, %v3087
    %v3254 = vshrl.u32 %v3253, 7
    %v3255 = vand.u32 %v3253, 127
    %v3256 = vsub.s32 0, %v3255
    %v3257 = vsel %vm3251, %v3256, %v3255
    %vm3258 = vcmp.lt.s32.totalorder %v3088, 0
    %v3259 = vsub.s32 0, %v3088
    %v3260 = vsel %vm3258, %v3259, %v3088
    %v3261 = vshrl.u32 %v3260, 7
    %v3262 = vand.u32 %v3260, 127
    %v3263 = vsub.s32 0, %v3262
    %v3264 = vsel %vm3258, %v3263, %v3262
    %vm3265 = vcmp.lt.s32.totalorder %v3089, 0
    %v3266 = vsub.s32 0, %v3089
    %v3267 = vsel %vm3265, %v3266, %v3089
    %v3268 = vshrl.u32 %v3267, 7
    %v3269 = vand.u32 %v3267, 127
    %v3270 = vsub.s32 0, %v3269
    %v3271 = vsel %vm3265, %v3270, %v3269
    %vm3272 = vcmp.lt.s32.totalorder %v3090, 0
    %v3273 = vsub.s32 0, %v3090
    %v3274 = vsel %vm3272, %v3273, %v3090
    %v3275 = vshrl.u32 %v3274, 7
    %v3276 = vand.u32 %v3274, 127
    %v3277 = vsub.s32 0, %v3276
    %v3278 = vsel %vm3272, %v3277, %v3276
    %vm3279 = vcmp.lt.s32.totalorder %v3091, 0
    %v3280 = vsub.s32 0, %v3091
    %v3281 = vsel %vm3279, %v3280, %v3091
    %v3282 = vshrl.u32 %v3281, 7
    %v3283 = vand.u32 %v3281, 127
    %v3284 = vsub.s32 0, %v3283
    %v3285 = vsel %vm3279, %v3284, %v3283
    %vm3286 = vcmp.lt.s32.totalorder %v3092, 0
    %v3287 = vsub.s32 0, %v3092
    %v3288 = vsel %vm3286, %v3287, %v3092
    %v3289 = vshrl.u32 %v3288, 7
    %v3290 = vand.u32 %v3288, 127
    %v3291 = vsub.s32 0, %v3290
    %v3292 = vsel %vm3286, %v3291, %v3290
    %vm3293 = vcmp.lt.s32.totalorder %v3093, 0
    %v3294 = vsub.s32 0, %v3093
    %v3295 = vsel %vm3293, %v3294, %v3093
    %v3296 = vshrl.u32 %v3295, 7
    %v3297 = vand.u32 %v3295, 127
    %v3298 = vsub.s32 0, %v3297
    %v3299 = vsel %vm3293, %v3298, %v3297
    %vm3300 = vcmp.lt.s32.totalorder %v3094, 0
    %v3301 = vsub.s32 0, %v3094
    %v3302 = vsel %vm3300, %v3301, %v3094
    %v3303 = vshrl.u32 %v3302, 7
    %v3304 = vand.u32 %v3302, 127
    %v3305 = vsub.s32 0, %v3304
    %v3306 = vsel %vm3300, %v3305, %v3304
    %vm3307 = vcmp.lt.s32.totalorder %v3095, 0
    %v3308 = vsub.s32 0, %v3095
    %v3309 = vsel %vm3307, %v3308, %v3095
    %v3310 = vshrl.u32 %v3309, 7
    %v3311 = vand.u32 %v3309, 127
    %v3312 = vsub.s32 0, %v3311
    %v3313 = vsel %vm3307, %v3312, %v3311
    %vm3314 = vcmp.lt.s32.totalorder %v3096, 0
    %v3315 = vsub.s32 0, %v3096
    %v3316 = vsel %vm3314, %v3315, %v3096
    %v3317 = vshrl.u32 %v3316, 7
    %v3318 = vand.u32 %v3316, 127
    %v3319 = vsub.s32 0, %v3318
    %v3320 = vsel %vm3314, %v3319, %v3318
    %vm3321 = vcmp.ne.s32.totalorder %v3103, 0
    %vm3322 = vcmp.ne.s32.totalorder %v3110, 0
    %vm3323 = vcmp.ne.s32.totalorder %v3117, 0
    %vm3324 = vcmp.ne.s32.totalorder %v3124, 0
    %vm3325 = vcmp.ne.s32.totalorder %v3131, 0
    %vm3326 = vcmp.ne.s32.totalorder %v3138, 0
    %vm3327 = vcmp.ne.s32.totalorder %v3145, 0
    %vm3328 = vcmp.ne.s32.totalorder %v3152, 0
    %vm3329 = vcmp.ne.s32.totalorder %v3159, 0
    %vm3330 = vcmp.ne.s32.totalorder %v3166, 0
    %vm3331 = vcmp.ne.s32.totalorder %v3173, 0
    %vm3332 = vcmp.ne.s32.totalorder %v3180, 0
    %vm3333 = vcmp.ne.s32.totalorder %v3187, 0
    %vm3334 = vcmp.ne.s32.totalorder %v3194, 0
    %vm3335 = vcmp.ne.s32.totalorder %v3201, 0
    %vm3336 = vcmp.ne.s32.totalorder %v3208, 0
    %vm3337 = vcmp.ne.s32.totalorder %v3215, 0
    %vm3338 = vcmp.ne.s32.totalorder %v3222, 0
    %vm3339 = vcmp.ne.s32.totalorder %v3229, 0
    %vm3340 = vcmp.ne.s32.totalorder %v3236, 0
    %vm3341 = vcmp.ne.s32.totalorder %v3243, 0
    %vm3342 = vcmp.ne.s32.totalorder %v3250, 0
    %vm3343 = vcmp.ne.s32.totalorder %v3257, 0
    %vm3344 = vcmp.ne.s32.totalorder %v3264, 0
    %vm3345 = vcmp.ne.s32.totalorder %v3271, 0
    %vm3346 = vcmp.ne.s32.totalorder %v3278, 0
    %vm3347 = vcmp.ne.s32.totalorder %v3285, 0
    %vm3348 = vcmp.ne.s32.totalorder %v3292, 0
    %vm3349 = vcmp.ne.s32.totalorder %v3299, 0
    %vm3350 = vcmp.ne.s32.totalorder %v3306, 0
    %vm3351 = vcmp.ne.s32.totalorder %v3313, 0
    %vm3352 = vcmp.ne.s32.totalorder %v3320, 0
    %vm3353 = vcmp.lt.s32.totalorder %v3103, 0
    %vm3354 = vcmp.lt.s32.totalorder %v3110, 0
    %vm3355 = vcmp.lt.s32.totalorder %v3117, 0
    %vm3356 = vcmp.lt.s32.totalorder %v3124, 0
    %vm3357 = vcmp.lt.s32.totalorder %v3131, 0
    %vm3358 = vcmp.lt.s32.totalorder %v3138, 0
    %vm3359 = vcmp.lt.s32.totalorder %v3145, 0
    %vm3360 = vcmp.lt.s32.totalorder %v3152, 0
    %vm3361 = vcmp.lt.s32.totalorder %v3159, 0
    %vm3362 = vcmp.lt.s32.totalorder %v3166, 0
    %vm3363 = vcmp.lt.s32.totalorder %v3173, 0
    %vm3364 = vcmp.lt.s32.totalorder %v3180, 0
    %vm3365 = vcmp.lt.s32.totalorder %v3187, 0
    %vm3366 = vcmp.lt.s32.totalorder %v3194, 0
    %vm3367 = vcmp.lt.s32.totalorder %v3201, 0
    %vm3368 = vcmp.lt.s32.totalorder %v3208, 0
    %vm3369 = vcmp.lt.s32.totalorder %v3215, 0
    %vm3370 = vcmp.lt.s32.totalorder %v3222, 0
    %vm3371 = vcmp.lt.s32.totalorder %v3229, 0
    %vm3372 = vcmp.lt.s32.totalorder %v3236, 0
    %vm3373 = vcmp.lt.s32.totalorder %v3243, 0
    %vm3374 = vcmp.lt.s32.totalorder %v3250, 0
    %vm3375 = vcmp.lt.s32.totalorder %v3257, 0
    %vm3376 = vcmp.lt.s32.totalorder %v3264, 0
    %vm3377 = vcmp.lt.s32.totalorder %v3271, 0
    %vm3378 = vcmp.lt.s32.totalorder %v3278, 0
    %vm3379 = vcmp.lt.s32.totalorder %v3285, 0
    %vm3380 = vcmp.lt.s32.totalorder %v3292, 0
    %vm3381 = vcmp.lt.s32.totalorder %v3299, 0
    %vm3382 = vcmp.lt.s32.totalorder %v3306, 0
    %vm3383 = vcmp.lt.s32.totalorder %v3313, 0
    %vm3384 = vcmp.lt.s32.totalorder %v3320, 0
    %vm3385 = vmand %vm3353, %vm3321
    %vm3386 = vmand %vm3354, %vm3322
    %vm3387 = vmand %vm3355, %vm3323
    %vm3388 = vmand %vm3356, %vm3324
    %vm3389 = vmand %vm3357, %vm3325
    %vm3390 = vmand %vm3358, %vm3326
    %vm3391 = vmand %vm3359, %vm3327
    %vm3392 = vmand %vm3360, %vm3328
    %vm3393 = vmand %vm3361, %vm3329
    %vm3394 = vmand %vm3362, %vm3330
    %vm3395 = vmand %vm3363, %vm3331
    %vm3396 = vmand %vm3364, %vm3332
    %vm3397 = vmand %vm3365, %vm3333
    %vm3398 = vmand %vm3366, %vm3334
    %vm3399 = vmand %vm3367, %vm3335
    %vm3400 = vmand %vm3368, %vm3336
    %vm3401 = vmand %vm3369, %vm3337
    %vm3402 = vmand %vm3370, %vm3338
    %vm3403 = vmand %vm3371, %vm3339
    %vm3404 = vmand %vm3372, %vm3340
    %vm3405 = vmand %vm3373, %vm3341
    %vm3406 = vmand %vm3374, %vm3342
    %vm3407 = vmand %vm3375, %vm3343
    %vm3408 = vmand %vm3376, %vm3344
    %vm3409 = vmand %vm3377, %vm3345
    %vm3410 = vmand %vm3378, %vm3346
    %vm3411 = vmand %vm3379, %vm3347
    %vm3412 = vmand %vm3380, %vm3348
    %vm3413 = vmand %vm3381, %vm3349
    %vm3414 = vmand %vm3382, %vm3350
    %vm3415 = vmand %vm3383, %vm3351
    %vm3416 = vmand %vm3384, %vm3352
    %v3417 = vadd.s32 %v3103, 128
    %v3418 = vadd.s32 %v3110, 128
    %v3419 = vadd.s32 %v3117, 128
    %v3420 = vadd.s32 %v3124, 128
    %v3421 = vadd.s32 %v3131, 128
    %v3422 = vadd.s32 %v3138, 128
    %v3423 = vadd.s32 %v3145, 128
    %v3424 = vadd.s32 %v3152, 128
    %v3425 = vadd.s32 %v3159, 128
    %v3426 = vadd.s32 %v3166, 128
    %v3427 = vadd.s32 %v3173, 128
    %v3428 = vadd.s32 %v3180, 128
    %v3429 = vadd.s32 %v3187, 128
    %v3430 = vadd.s32 %v3194, 128
    %v3431 = vadd.s32 %v3201, 128
    %v3432 = vadd.s32 %v3208, 128
    %v3433 = vadd.s32 %v3215, 128
    %v3434 = vadd.s32 %v3222, 128
    %v3435 = vadd.s32 %v3229, 128
    %v3436 = vadd.s32 %v3236, 128
    %v3437 = vadd.s32 %v3243, 128
    %v3438 = vadd.s32 %v3250, 128
    %v3439 = vadd.s32 %v3257, 128
    %v3440 = vadd.s32 %v3264, 128
    %v3441 = vadd.s32 %v3271, 128
    %v3442 = vadd.s32 %v3278, 128
    %v3443 = vadd.s32 %v3285, 128
    %v3444 = vadd.s32 %v3292, 128
    %v3445 = vadd.s32 %v3299, 128
    %v3446 = vadd.s32 %v3306, 128
    %v3447 = vadd.s32 %v3313, 128
    %v3448 = vadd.s32 %v3320, 128
    %v3449 = vsel %vm3385, %v3417, %v3103
    %v3450 = vsel %vm3386, %v3418, %v3110
    %v3451 = vsel %vm3387, %v3419, %v3117
    %v3452 = vsel %vm3388, %v3420, %v3124
    %v3453 = vsel %vm3389, %v3421, %v3131
    %v3454 = vsel %vm3390, %v3422, %v3138
    %v3455 = vsel %vm3391, %v3423, %v3145
    %v3456 = vsel %vm3392, %v3424, %v3152
    %v3457 = vsel %vm3393, %v3425, %v3159
    %v3458 = vsel %vm3394, %v3426, %v3166
    %v3459 = vsel %vm3395, %v3427, %v3173
    %v3460 = vsel %vm3396, %v3428, %v3180
    %v3461 = vsel %vm3397, %v3429, %v3187
    %v3462 = vsel %vm3398, %v3430, %v3194
    %v3463 = vsel %vm3399, %v3431, %v3201
    %v3464 = vsel %vm3400, %v3432, %v3208
    %v3465 = vsel %vm3401, %v3433, %v3215
    %v3466 = vsel %vm3402, %v3434, %v3222
    %v3467 = vsel %vm3403, %v3435, %v3229
    %v3468 = vsel %vm3404, %v3436, %v3236
    %v3469 = vsel %vm3405, %v3437, %v3243
    %v3470 = vsel %vm3406, %v3438, %v3250
    %v3471 = vsel %vm3407, %v3439, %v3257
    %v3472 = vsel %vm3408, %v3440, %v3264
    %v3473 = vsel %vm3409, %v3441, %v3271
    %v3474 = vsel %vm3410, %v3442, %v3278
    %v3475 = vsel %vm3411, %v3443, %v3285
    %v3476 = vsel %vm3412, %v3444, %v3292
    %v3477 = vsel %vm3413, %v3445, %v3299
    %v3478 = vsel %vm3414, %v3446, %v3306
    %v3479 = vsel %vm3415, %v3447, %v3313
    %v3480 = vsel %vm3416, %v3448, %v3320
    %3481 = vset.pattern.permute.xlu0 0
    %3482 = vperm.xlu0 %3481, %v3449
    %v3483 = vpop.permute.xlu0 %3482
    %3484 = vset.pattern.permute.xlu0 0
    %3485 = vperm.xlu0 %3484, %v3450
    %v3486 = vpop.permute.xlu0 %3485
    %3487 = vset.pattern.permute.xlu0 0
    %3488 = vperm.xlu0 %3487, %v3451
    %v3489 = vpop.permute.xlu0 %3488
    %3490 = vset.pattern.permute.xlu0 0
    %3491 = vperm.xlu0 %3490, %v3452
    %v3492 = vpop.permute.xlu0 %3491
    %3493 = vset.pattern.permute.xlu0 0
    %3494 = vperm.xlu0 %3493, %v3453
    %v3495 = vpop.permute.xlu0 %3494
    %3496 = vset.pattern.permute.xlu0 0
    %3497 = vperm.xlu0 %3496, %v3454
    %v3498 = vpop.permute.xlu0 %3497
    %3499 = vset.pattern.permute.xlu0 0
    %3500 = vperm.xlu0 %3499, %v3455
    %v3501 = vpop.permute.xlu0 %3500
    %3502 = vset.pattern.permute.xlu0 0
    %3503 = vperm.xlu0 %3502, %v3456
    %v3504 = vpop.permute.xlu0 %3503
    %3505 = vset.pattern.permute.xlu0 0
    %3506 = vperm.xlu0 %3505, %v3457
    %v3507 = vpop.permute.xlu0 %3506
    %3508 = vset.pattern.permute.xlu0 0
    %3509 = vperm.xlu0 %3508, %v3458
    %v3510 = vpop.permute.xlu0 %3509
    %3511 = vset.pattern.permute.xlu0 0
    %3512 = vperm.xlu0 %3511, %v3459
    %v3513 = vpop.permute.xlu0 %3512
    %3514 = vset.pattern.permute.xlu0 0
    %3515 = vperm.xlu0 %3514, %v3460
    %v3516 = vpop.permute.xlu0 %3515
    %3517 = vset.pattern.permute.xlu0 0
    %3518 = vperm.xlu0 %3517, %v3461
    %v3519 = vpop.permute.xlu0 %3518
    %3520 = vset.pattern.permute.xlu0 0
    %3521 = vperm.xlu0 %3520, %v3462
    %v3522 = vpop.permute.xlu0 %3521
    %3523 = vset.pattern.permute.xlu0 0
    %3524 = vperm.xlu0 %3523, %v3463
    %v3525 = vpop.permute.xlu0 %3524
    %3526 = vset.pattern.permute.xlu0 0
    %3527 = vperm.xlu0 %3526, %v3464
    %v3528 = vpop.permute.xlu0 %3527
    %3529 = vset.pattern.permute.xlu0 0
    %3530 = vperm.xlu0 %3529, %v3465
    %v3531 = vpop.permute.xlu0 %3530
    %3532 = vset.pattern.permute.xlu0 0
    %3533 = vperm.xlu0 %3532, %v3466
    %v3534 = vpop.permute.xlu0 %3533
    %3535 = vset.pattern.permute.xlu0 0
    %3536 = vperm.xlu0 %3535, %v3467
    %v3537 = vpop.permute.xlu0 %3536
    %3538 = vset.pattern.permute.xlu0 0
    %3539 = vperm.xlu0 %3538, %v3468
    %v3540 = vpop.permute.xlu0 %3539
    %3541 = vset.pattern.permute.xlu0 0
    %3542 = vperm.xlu0 %3541, %v3469
    %v3543 = vpop.permute.xlu0 %3542
    %3544 = vset.pattern.permute.xlu0 0
    %3545 = vperm.xlu0 %3544, %v3470
    %v3546 = vpop.permute.xlu0 %3545
    %3547 = vset.pattern.permute.xlu0 0
    %3548 = vperm.xlu0 %3547, %v3471
    %v3549 = vpop.permute.xlu0 %3548
    %3550 = vset.pattern.permute.xlu0 0
    %3551 = vperm.xlu0 %3550, %v3472
    %v3552 = vpop.permute.xlu0 %3551
    %3553 = vset.pattern.permute.xlu0 0
    %3554 = vperm.xlu0 %3553, %v3473
    %v3555 = vpop.permute.xlu0 %3554
    %3556 = vset.pattern.permute.xlu0 0
    %3557 = vperm.xlu0 %3556, %v3474
    %v3558 = vpop.permute.xlu0 %3557
    %3559 = vset.pattern.permute.xlu0 0
    %3560 = vperm.xlu0 %3559, %v3475
    %v3561 = vpop.permute.xlu0 %3560
    %3562 = vset.pattern.permute.xlu0 0
    %3563 = vperm.xlu0 %3562, %v3476
    %v3564 = vpop.permute.xlu0 %3563
    %3565 = vset.pattern.permute.xlu0 0
    %3566 = vperm.xlu0 %3565, %v3477
    %v3567 = vpop.permute.xlu0 %3566
    %3568 = vset.pattern.permute.xlu0 0
    %3569 = vperm.xlu0 %3568, %v3478
    %v3570 = vpop.permute.xlu0 %3569
    %3571 = vset.pattern.permute.xlu0 0
    %3572 = vperm.xlu0 %3571, %v3479
    %v3573 = vpop.permute.xlu0 %3572
    %3574 = vset.pattern.permute.xlu0 0
    %3575 = vperm.xlu0 %3574, %v3480
    %v3576 = vpop.permute.xlu0 %3575
    %vm3577 = vcmp.eq.s32.totalorder %v3483, %v442
    %vm3578 = vcmp.eq.s32.totalorder %v3486, %v442
    %vm3579 = vcmp.eq.s32.totalorder %v3489, %v442
    %vm3580 = vcmp.eq.s32.totalorder %v3492, %v442
    %vm3581 = vcmp.eq.s32.totalorder %v3495, %v442
    %vm3582 = vcmp.eq.s32.totalorder %v3498, %v442
    %vm3583 = vcmp.eq.s32.totalorder %v3501, %v442
    %vm3584 = vcmp.eq.s32.totalorder %v3504, %v442
    %vm3585 = vcmp.eq.s32.totalorder %v3507, %v442
    %vm3586 = vcmp.eq.s32.totalorder %v3510, %v442
    %vm3587 = vcmp.eq.s32.totalorder %v3513, %v442
    %vm3588 = vcmp.eq.s32.totalorder %v3516, %v442
    %vm3589 = vcmp.eq.s32.totalorder %v3519, %v442
    %vm3590 = vcmp.eq.s32.totalorder %v3522, %v442
    %vm3591 = vcmp.eq.s32.totalorder %v3525, %v442
    %vm3592 = vcmp.eq.s32.totalorder %v3528, %v442
    %vm3593 = vcmp.eq.s32.totalorder %v3531, %v442
    %vm3594 = vcmp.eq.s32.totalorder %v3534, %v442
    %vm3595 = vcmp.eq.s32.totalorder %v3537, %v442
    %vm3596 = vcmp.eq.s32.totalorder %v3540, %v442
    %vm3597 = vcmp.eq.s32.totalorder %v3543, %v442
    %vm3598 = vcmp.eq.s32.totalorder %v3546, %v442
    %vm3599 = vcmp.eq.s32.totalorder %v3549, %v442
    %vm3600 = vcmp.eq.s32.totalorder %v3552, %v442
    %vm3601 = vcmp.eq.s32.totalorder %v3555, %v442
    %vm3602 = vcmp.eq.s32.totalorder %v3558, %v442
    %vm3603 = vcmp.eq.s32.totalorder %v3561, %v442
    %vm3604 = vcmp.eq.s32.totalorder %v3564, %v442
    %vm3605 = vcmp.eq.s32.totalorder %v3567, %v442
    %vm3606 = vcmp.eq.s32.totalorder %v3570, %v442
    %vm3607 = vcmp.eq.s32.totalorder %v3573, %v442
    %vm3608 = vcmp.eq.s32.totalorder %v3576, %v442
    %v3609 = vsel %vm3577, 1.0, 0.0
    %v3610 = vsel %vm3578, 1.0, 0.0
    %v3611 = vsel %vm3579, 1.0, 0.0
    %v3612 = vsel %vm3580, 1.0, 0.0
    %v3613 = vsel %vm3581, 1.0, 0.0
    %v3614 = vsel %vm3582, 1.0, 0.0
    %v3615 = vsel %vm3583, 1.0, 0.0
    %v3616 = vsel %vm3584, 1.0, 0.0
    %v3617 = vsel %vm3585, 1.0, 0.0
    %v3618 = vsel %vm3586, 1.0, 0.0
    %v3619 = vsel %vm3587, 1.0, 0.0
    %v3620 = vsel %vm3588, 1.0, 0.0
    %v3621 = vsel %vm3589, 1.0, 0.0
    %v3622 = vsel %vm3590, 1.0, 0.0
    %v3623 = vsel %vm3591, 1.0, 0.0
    %v3624 = vsel %vm3592, 1.0, 0.0
    %v3625 = vsel %vm3593, 1.0, 0.0
    %v3626 = vsel %vm3594, 1.0, 0.0
    %v3627 = vsel %vm3595, 1.0, 0.0
    %v3628 = vsel %vm3596, 1.0, 0.0
    %v3629 = vsel %vm3597, 1.0, 0.0
    %v3630 = vsel %vm3598, 1.0, 0.0
    %v3631 = vsel %vm3599, 1.0, 0.0
    %v3632 = vsel %vm3600, 1.0, 0.0
    %v3633 = vsel %vm3601, 1.0, 0.0
    %v3634 = vsel %vm3602, 1.0, 0.0
    %v3635 = vsel %vm3603, 1.0, 0.0
    %v3636 = vsel %vm3604, 1.0, 0.0
    %v3637 = vsel %vm3605, 1.0, 0.0
    %v3638 = vsel %vm3606, 1.0, 0.0
    %v3639 = vsel %vm3607, 1.0, 0.0
    %v3640 = vsel %vm3608, 1.0, 0.0
    %s3641 = scalar_lea.vmem %s3, 256
    %v3642 = vld [vmem:[%s3641] sm:$0xff]
    %v3643 = vld [vmem:[%s3641 + $0x8] sm:$0xff]
    %v3644 = vld [vmem:[%s3641 + $0x10] sm:$0xff]
    %v3645 = vld [vmem:[%s3641 + $0x18] sm:$0xff]
    %v3646 = vld [vmem:[%s3641 + $0x20] sm:$0xff]
    %v3647 = vld [vmem:[%s3641 + $0x28] sm:$0xff]
    %v3648 = vld [vmem:[%s3641 + $0x30] sm:$0xff]
    %v3649 = vld [vmem:[%s3641 + $0x38] sm:$0xff]
    %v3650 = vld [vmem:[%s3641 + $0x40] sm:$0xff]
    %v3651 = vld [vmem:[%s3641 + $0x48] sm:$0xff]
    %v3652 = vld [vmem:[%s3641 + $0x50] sm:$0xff]
    %v3653 = vld [vmem:[%s3641 + $0x58] sm:$0xff]
    %v3654 = vld [vmem:[%s3641 + $0x60] sm:$0xff]
    %v3655 = vld [vmem:[%s3641 + $0x68] sm:$0xff]
    %v3656 = vld [vmem:[%s3641 + $0x70] sm:$0xff]
    %v3657 = vld [vmem:[%s3641 + $0x78] sm:$0xff]
    %v3658 = vld [vmem:[%s4] sm:$0xff]
    %v3659 = vld [vmem:[%s4 + $0x8] sm:$0xff]
    %3662 = vrot.lane.b32.xlu0 %v3658, 64
    %v3663 = vpop.permute.xlu0 %3662
    %3664 = vrot.lane.b32.xlu0 %v3659, 64
    %v3665 = vpop.permute.xlu0 %3664
    %3668 = vmatprep.subr.mxu0 0.0
    %3669 = vmatpush1.msra.mxu0 %v3663
    %3670 = vmatprep.subr.mxu0 0.0
    %3671 = vmatpush1.msra.mxu0 %v3665
    %3672 = vmatprep.subr.mxu0 0.0
    %3673 = vmatpush1.msra.mxu0 0.0
    %3674 = vmatprep.subr.mxu0 0.0
    %3675 = vmatpush1.msra.mxu0 0.0
    %3676 = vmatprep.subr.mxu0 0.0
    %3677 = vmatpush1.msra.mxu0 0.0
    %3678 = vmatprep.subr.mxu0 0.0
    %3679 = vmatpush1.msra.mxu0 0.0
    %3680 = vmatprep.subr.mxu0 0.0
    %3681 = vmatpush1.msra.mxu0 0.0
    %3682 = vmatprep.subr.mxu0 0.0
    %3683 = vmatpush1.msra.mxu0 0.0
    %3684 = vmatprep.subr.mxu0 0.0
    %3685 = vmatpush1.msra.mxu0 0.0
    %3686 = vmatprep.subr.mxu0 0.0
    %3687 = vmatpush1.msra.mxu0 0.0
    %3688 = vmatprep.subr.mxu0 0.0
    %3689 = vmatpush1.msra.mxu0 0.0
    %3690 = vmatprep.subr.mxu0 0.0
    %3691 = vmatpush1.msra.mxu0 0.0
    %3692 = vmatprep.subr.mxu0 0.0
    %3693 = vmatpush1.msra.mxu0 0.0
    %3694 = vmatprep.subr.mxu0 0.0
    %3695 = vmatpush1.msra.mxu0 0.0
    %3696 = vmatprep.subr.mxu0 0.0
    %3697 = vmatpush1.msra.mxu0 0.0
    %3698 = vmatprep.subr.mxu0 0.0
    %3699 = vmatpush1.msra.mxu0 0.0
    %3700 = vmatprep.subr.mxu0 0.0
    %3701 = vmatpush1.msra.mxu0 0.0
    %3702 = vmatprep.subr.mxu0 0.0
    %3703 = vmatpush1.msra.mxu0 0.0
    %3704 = vmatprep.subr.mxu0 0.0
    %3705 = vmatpush1.msra.mxu0 0.0
    %3706 = vmatprep.subr.mxu0 0.0
    %3707 = vmatpush1.msra.mxu0 0.0
    %3708 = vmatprep.subr.mxu0 0.0
    %3709 = vmatpush1.msra.mxu0 0.0
    %3710 = vmatprep.subr.mxu0 0.0
    %3711 = vmatpush1.msra.mxu0 0.0
    %3712 = vmatprep.subr.mxu0 0.0
    %3713 = vmatpush1.msra.mxu0 0.0
    %3714 = vmatprep.subr.mxu0 0.0
    %3715 = vmatpush1.msra.mxu0 0.0
    %3716 = vmatprep.subr.mxu0 0.0
    %3717 = vmatpush1.msra.mxu0 0.0
    %3718 = vmatprep.subr.mxu0 0.0
    %3719 = vmatpush1.msra.mxu0 0.0
    %3720 = vmatprep.subr.mxu0 0.0
    %3721 = vmatpush1.msra.mxu0 0.0
    %3722 = vmatprep.subr.mxu0 0.0
    %3723 = vmatpush1.msra.mxu0 0.0
    %3724 = vmatprep.subr.mxu0 0.0
    %3725 = vmatpush1.msra.mxu0 0.0
    %3726 = vmatprep.subr.mxu0 0.0
    %3727 = vmatpush1.msra.mxu0 0.0
    %3728 = vmatprep.subr.mxu0 0.0
    %3729 = vmatpush1.msra.mxu0 0.0
    %3730 = vmatprep.subr.mxu0 0.0
    %3731 = vmatpush1.msra.mxu0 0.0
    %3732 = vmatprep.mubr.f32.mxu0 0.0
    %3733 = vmatmul.mubr.f32.gmra.mrb[0].mxu0 %v1245
    %v3734 = vpop.f32.mrb[0].mxu0
    %v3735 = vadd.f32 0.0, %v3734
    %v3736 = vpop.f32.mrb[0].mxu0
    %3737 = vmatprep.mubr.f32.mxu0 0.0
    %3738 = vmatmul.mubr.f32.gmra.mrb[0].mxu0 %v1248
    %v3739 = vpop.f32.mrb[0].mxu0
    %v3740 = vadd.f32 0.0, %v3739
    %v3741 = vpop.f32.mrb[0].mxu0
    %3742 = vmatprep.mubr.f32.mxu0 0.0
    %3743 = vmatmul.mubr.f32.gmra.mrb[0].mxu0 %v1251
    %v3744 = vpop.f32.mrb[0].mxu0
    %v3745 = vadd.f32 0.0, %v3744
    %v3746 = vpop.f32.mrb[0].mxu0
    %3747 = vmatprep.mubr.f32.mxu0 0.0
    %3748 = vmatmul.mubr.f32.gmra.mrb[0].mxu0 %v1254
    %v3749 = vpop.f32.mrb[0].mxu0
    %v3750 = vadd.f32 0.0, %v3749
    %v3751 = vpop.f32.mrb[0].mxu0
    %3752 = vmatprep.mubr.f32.mxu0 0.0
    %3753 = vmatmul.mubr.f32.gmra.mrb[0].mxu0 %v1257
    %v3754 = vpop.f32.mrb[0].mxu0
    %v3755 = vadd.f32 0.0, %v3754
    %v3756 = vpop.f32.mrb[0].mxu0
    %3757 = vmatprep.mubr.f32.mxu0 0.0
    %3758 = vmatmul.mubr.f32.gmra.mrb[0].mxu0 %v1260
    %v3759 = vpop.f32.mrb[0].mxu0
    %v3760 = vadd.f32 0.0, %v3759
    %v3761 = vpop.f32.mrb[0].mxu0
    %3762 = vmatprep.mubr.f32.mxu0 0.0
    %3763 = vmatmul.mubr.f32.gmra.mrb[0].mxu0 %v1263
    %v3764 = vpop.f32.mrb[0].mxu0
    %v3765 = vadd.f32 0.0, %v3764
    %v3766 = vpop.f32.mrb[0].mxu0
    %3767 = vmatprep.mubr.f32.mxu0 0.0
    %3768 = vmatmul.mubr.f32.gmra.mrb[0].mxu0 %v1266
    %v3769 = vpop.f32.mrb[0].mxu0
    %v3770 = vadd.f32 0.0, %v3769
    %v3771 = vpop.f32.mrb[0].mxu0
    %3772 = vmatprep.mubr.f32.mxu0 0.0
    %3773 = vmatmul.mubr.f32.gmra.mrb[0].mxu0 %v1269
    %v3774 = vpop.f32.mrb[0].mxu0
    %v3775 = vadd.f32 0.0, %v3774
    %v3776 = vpop.f32.mrb[0].mxu0
    %3777 = vmatprep.mubr.f32.mxu0 0.0
    %3778 = vmatmul.mubr.f32.gmra.mrb[0].mxu0 %v1272
    %v3779 = vpop.f32.mrb[0].mxu0
    %v3780 = vadd.f32 0.0, %v3779
    %v3781 = vpop.f32.mrb[0].mxu0
    %3782 = vmatprep.mubr.f32.mxu0 0.0
    %3783 = vmatmul.mubr.f32.gmra.mrb[0].mxu0 %v1275
    %v3784 = vpop.f32.mrb[0].mxu0
    %v3785 = vadd.f32 0.0, %v3784
    %v3786 = vpop.f32.mrb[0].mxu0
    %3787 = vmatprep.mubr.f32.mxu0 0.0
    %3788 = vmatmul.mubr.f32.gmra.mrb[0].mxu0 %v1278
    %v3789 = vpop.f32.mrb[0].mxu0
    %v3790 = vadd.f32 0.0, %v3789
    %v3791 = vpop.f32.mrb[0].mxu0
    %3792 = vmatprep.mubr.f32.mxu0 0.0
    %3793 = vmatmul.mubr.f32.gmra.mrb[0].mxu0 %v1281
    %v3794 = vpop.f32.mrb[0].mxu0
    %v3795 = vadd.f32 0.0, %v3794
    %v3796 = vpop.f32.mrb[0].mxu0
    %3797 = vmatprep.mubr.f32.mxu0 0.0
    %3798 = vmatmul.mubr.f32.gmra.mrb[0].mxu0 %v1284
    %v3799 = vpop.f32.mrb[0].mxu0
    %v3800 = vadd.f32 0.0, %v3799
    %v3801 = vpop.f32.mrb[0].mxu0
    %3802 = vmatprep.mubr.f32.mxu0 0.0
    %3803 = vmatmul.mubr.f32.gmra.mrb[0].mxu0 %v1287
    %v3804 = vpop.f32.mrb[0].mxu0
    %v3805 = vadd.f32 0.0, %v3804
    %v3806 = vpop.f32.mrb[0].mxu0
    %3807 = vmatprep.mubr.f32.mxu0 0.0
    %3808 = vmatmul.mubr.f32.gmra.mrb[0].mxu0 %v1290
    %v3809 = vpop.f32.mrb[0].mxu0
    %v3810 = vadd.f32 0.0, %v3809
    %v3811 = vpop.f32.mrb[0].mxu0
    %3812 = vmatprep.mubr.f32.mxu0 0.0
    %3813 = vmatmul.mubr.f32.gmra.mrb[0].mxu0 %v1293
    %v3814 = vpop.f32.mrb[0].mxu0
    %v3815 = vadd.f32 0.0, %v3814
    %v3816 = vpop.f32.mrb[0].mxu0
    %3817 = vmatprep.mubr.f32.mxu0 0.0
    %3818 = vmatmul.mubr.f32.gmra.mrb[0].mxu0 %v1296
    %v3819 = vpop.f32.mrb[0].mxu0
    %v3820 = vadd.f32 0.0, %v3819
    %v3821 = vpop.f32.mrb[0].mxu0
    %3822 = vmatprep.mubr.f32.mxu0 0.0
    %3823 = vmatmul.mubr.f32.gmra.mrb[0].mxu0 %v1299
    %v3824 = vpop.f32.mrb[0].mxu0
    %v3825 = vadd.f32 0.0, %v3824
    %v3826 = vpop.f32.mrb[0].mxu0
    %3827 = vmatprep.mubr.f32.mxu0 0.0
    %3828 = vmatmul.mubr.f32.gmra.mrb[0].mxu0 %v1302
    %v3829 = vpop.f32.mrb[0].mxu0
    %v3830 = vadd.f32 0.0, %v3829
    %v3831 = vpop.f32.mrb[0].mxu0
    %3832 = vmatprep.mubr.f32.mxu0 0.0
    %3833 = vmatmul.mubr.f32.gmra.mrb[0].mxu0 %v1305
    %v3834 = vpop.f32.mrb[0].mxu0
    %v3835 = vadd.f32 0.0, %v3834
    %v3836 = vpop.f32.mrb[0].mxu0
    %3837 = vmatprep.mubr.f32.mxu0 0.0
    %3838 = vmatmul.mubr.f32.gmra.mrb[0].mxu0 %v1308
    %v3839 = vpop.f32.mrb[0].mxu0
    %v3840 = vadd.f32 0.0, %v3839
    %v3841 = vpop.f32.mrb[0].mxu0
    %3842 = vmatprep.mubr.f32.mxu0 0.0
    %3843 = vmatmul.mubr.f32.gmra.mrb[0].mxu0 %v1311
    %v3844 = vpop.f32.mrb[0].mxu0
    %v3845 = vadd.f32 0.0, %v3844
    %v3846 = vpop.f32.mrb[0].mxu0
    %3847 = vmatprep.mubr.f32.mxu0 0.0
    %3848 = vmatmul.mubr.f32.gmra.mrb[0].mxu0 %v1314
    %v3849 = vpop.f32.mrb[0].mxu0
    %v3850 = vadd.f32 0.0, %v3849
    %v3851 = vpop.f32.mrb[0].mxu0
    %3852 = vmatprep.mubr.f32.mxu0 0.0
    %3853 = vmatmul.mubr.f32.gmra.mrb[0].mxu0 %v1317
    %v3854 = vpop.f32.mrb[0].mxu0
    %v3855 = vadd.f32 0.0, %v3854
    %v3856 = vpop.f32.mrb[0].mxu0
    %3857 = vmatprep.mubr.f32.mxu0 0.0
    %3858 = vmatmul.mubr.f32.gmra.mrb[0].mxu0 %v1320
    %v3859 = vpop.f32.mrb[0].mxu0
    %v3860 = vadd.f32 0.0, %v3859
    %v3861 = vpop.f32.mrb[0].mxu0
    %3862 = vmatprep.mubr.f32.mxu0 0.0
    %3863 = vmatmul.mubr.f32.gmra.mrb[0].mxu0 %v1323
    %v3864 = vpop.f32.mrb[0].mxu0
    %v3865 = vadd.f32 0.0, %v3864
    %v3866 = vpop.f32.mrb[0].mxu0
    %3867 = vmatprep.mubr.f32.mxu0 0.0
    %3868 = vmatmul.mubr.f32.gmra.mrb[0].mxu0 %v1326
    %v3869 = vpop.f32.mrb[0].mxu0
    %v3870 = vadd.f32 0.0, %v3869
    %v3871 = vpop.f32.mrb[0].mxu0
    %3872 = vmatprep.mubr.f32.mxu0 0.0
    %3873 = vmatmul.mubr.f32.gmra.mrb[0].mxu0 %v1329
    %v3874 = vpop.f32.mrb[0].mxu0
    %v3875 = vadd.f32 0.0, %v3874
    %v3876 = vpop.f32.mrb[0].mxu0
    %3877 = vmatprep.mubr.f32.mxu0 0.0
    %3878 = vmatmul.mubr.f32.gmra.mrb[0].mxu0 %v1332
    %v3879 = vpop.f32.mrb[0].mxu0
    %v3880 = vadd.f32 0.0, %v3879
    %v3881 = vpop.f32.mrb[0].mxu0
    %3882 = vmatprep.mubr.f32.mxu0 0.0
    %3883 = vmatmul.mubr.f32.gmra.mrb[0].mxu0 %v1335
    %v3884 = vpop.f32.mrb[0].mxu0
    %v3885 = vadd.f32 0.0, %v3884
    %v3886 = vpop.f32.mrb[0].mxu0
    %3887 = vmatprep.mubr.f32.mxu0 0.0
    %3888 = vmatmul.mubr.f32.gmra.mrb[0].mxu0 %v1338
    %v3889 = vpop.f32.mrb[0].mxu0
    %v3890 = vadd.f32 0.0, %v3889
    %v3891 = vpop.f32.mrb[0].mxu0
    %3892 = vdwg.mxu0
    %3893 = vmatprep.subr.mxu0 0.0
    %3894 = vmatpush1.msra.mxu0 %v3642
    %3895 = vmatprep.subr.mxu0 0.0
    %3896 = vmatpush1.msra.mxu0 %v3643
    %3897 = vmatprep.subr.mxu0 0.0
    %3898 = vmatpush1.msra.mxu0 %v3644
    %3899 = vmatprep.subr.mxu0 0.0
    %3900 = vmatpush1.msra.mxu0 %v3645
    %3901 = vmatprep.subr.mxu0 0.0
    %3902 = vmatpush1.msra.mxu0 %v3646
    %3903 = vmatprep.subr.mxu0 0.0
    %3904 = vmatpush1.msra.mxu0 %v3647
    %3905 = vmatprep.subr.mxu0 0.0
    %3906 = vmatpush1.msra.mxu0 %v3648
    %3907 = vmatprep.subr.mxu0 0.0
    %3908 = vmatpush1.msra.mxu0 %v3649
    %3909 = vmatprep.subr.mxu0 0.0
    %3910 = vmatpush1.msra.mxu0 %v3650
    %3911 = vmatprep.subr.mxu0 0.0
    %3912 = vmatpush1.msra.mxu0 %v3651
    %3913 = vmatprep.subr.mxu0 0.0
    %3914 = vmatpush1.msra.mxu0 %v3652
    %3915 = vmatprep.subr.mxu0 0.0
    %3916 = vmatpush1.msra.mxu0 %v3653
    %3917 = vmatprep.subr.mxu0 0.0
    %3918 = vmatpush1.msra.mxu0 %v3654
    %3919 = vmatprep.subr.mxu0 0.0
    %3920 = vmatpush1.msra.mxu0 %v3655
    %3921 = vmatprep.subr.mxu0 0.0
    %3922 = vmatpush1.msra.mxu0 %v3656
    %3923 = vmatprep.subr.mxu0 0.0
    %3924 = vmatpush1.msra.mxu0 %v3657
    %3925 = vmatprep.subr.mxu0 0.0
    %3926 = vmatpush1.msra.mxu0 0.0
    %3927 = vmatprep.subr.mxu0 0.0
    %3928 = vmatpush1.msra.mxu0 0.0
    %3929 = vmatprep.subr.mxu0 0.0
    %3930 = vmatpush1.msra.mxu0 0.0
    %3931 = vmatprep.subr.mxu0 0.0
    %3932 = vmatpush1.msra.mxu0 0.0
    %3933 = vmatprep.subr.mxu0 0.0
    %3934 = vmatpush1.msra.mxu0 0.0
    %3935 = vmatprep.subr.mxu0 0.0
    %3936 = vmatpush1.msra.mxu0 0.0
    %3937 = vmatprep.subr.mxu0 0.0
    %3938 = vmatpush1.msra.mxu0 0.0
    %3939 = vmatprep.subr.mxu0 0.0
    %3940 = vmatpush1.msra.mxu0 0.0
    %3941 = vmatprep.subr.mxu0 0.0
    %3942 = vmatpush1.msra.mxu0 0.0
    %3943 = vmatprep.subr.mxu0 0.0
    %3944 = vmatpush1.msra.mxu0 0.0
    %3945 = vmatprep.subr.mxu0 0.0
    %3946 = vmatpush1.msra.mxu0 0.0
    %3947 = vmatprep.subr.mxu0 0.0
    %3948 = vmatpush1.msra.mxu0 0.0
    %3949 = vmatprep.subr.mxu0 0.0
    %3950 = vmatpush1.msra.mxu0 0.0
    %3951 = vmatprep.subr.mxu0 0.0
    %3952 = vmatpush1.msra.mxu0 0.0
    %3953 = vmatprep.subr.mxu0 0.0
    %3954 = vmatpush1.msra.mxu0 0.0
    %3955 = vmatprep.subr.mxu0 0.0
    %3956 = vmatpush1.msra.mxu0 0.0
    %3957 = vmatprep.mubr.f32.mxu0 0.0
    %3958 = vmatmul.mubr.f32.gmra.mrb[0].mxu0 %v3609
    %v3959 = vpop.f32.mrb[0].mxu0
    %v3960 = vadd.f32 %v3735, %v3959
    %v3961 = vpop.f32.mrb[0].mxu0
    %3962 = vmatprep.mubr.f32.mxu0 0.0
    %3963 = vmatmul.mubr.f32.gmra.mrb[0].mxu0 %v3610
    %v3964 = vpop.f32.mrb[0].mxu0
    %v3965 = vadd.f32 %v3740, %v3964
    %v3966 = vpop.f32.mrb[0].mxu0
    %3967 = vmatprep.mubr.f32.mxu0 0.0
    %3968 = vmatmul.mubr.f32.gmra.mrb[0].mxu0 %v3611
    %v3969 = vpop.f32.mrb[0].mxu0
    %v3970 = vadd.f32 %v3745, %v3969
    %v3971 = vpop.f32.mrb[0].mxu0
    %3972 = vmatprep.mubr.f32.mxu0 0.0
    %3973 = vmatmul.mubr.f32.gmra.mrb[0].mxu0 %v3612
    %v3974 = vpop.f32.mrb[0].mxu0
    %v3975 = vadd.f32 %v3750, %v3974
    %v3976 = vpop.f32.mrb[0].mxu0
    %3977 = vmatprep.mubr.f32.mxu0 0.0
    %3978 = vmatmul.mubr.f32.gmra.mrb[0].mxu0 %v3613
    %v3979 = vpop.f32.mrb[0].mxu0
    %v3980 = vadd.f32 %v3755, %v3979
    %v3981 = vpop.f32.mrb[0].mxu0
    %3982 = vmatprep.mubr.f32.mxu0 0.0
    %3983 = vmatmul.mubr.f32.gmra.mrb[0].mxu0 %v3614
    %v3984 = vpop.f32.mrb[0].mxu0
    %v3985 = vadd.f32 %v3760, %v3984
    %v3986 = vpop.f32.mrb[0].mxu0
    %3987 = vmatprep.mubr.f32.mxu0 0.0
    %3988 = vmatmul.mubr.f32.gmra.mrb[0].mxu0 %v3615
    %v3989 = vpop.f32.mrb[0].mxu0
    %v3990 = vadd.f32 %v3765, %v3989
    %v3991 = vpop.f32.mrb[0].mxu0
    %3992 = vmatprep.mubr.f32.mxu0 0.0
    %3993 = vmatmul.mubr.f32.gmra.mrb[0].mxu0 %v3616
    %v3994 = vpop.f32.mrb[0].mxu0
    %v3995 = vadd.f32 %v3770, %v3994
    %v3996 = vpop.f32.mrb[0].mxu0
    %3997 = vmatprep.mubr.f32.mxu0 0.0
    %3998 = vmatmul.mubr.f32.gmra.mrb[0].mxu0 %v3617
    %v3999 = vpop.f32.mrb[0].mxu0
    %v4000 = vadd.f32 %v3775, %v3999
    %v4001 = vpop.f32.mrb[0].mxu0
    %4002 = vmatprep.mubr.f32.mxu0 0.0
    %4003 = vmatmul.mubr.f32.gmra.mrb[0].mxu0 %v3618
    %v4004 = vpop.f32.mrb[0].mxu0
    %v4005 = vadd.f32 %v3780, %v4004
    %v4006 = vpop.f32.mrb[0].mxu0
    %4007 = vmatprep.mubr.f32.mxu0 0.0
    %4008 = vmatmul.mubr.f32.gmra.mrb[0].mxu0 %v3619
    %v4009 = vpop.f32.mrb[0].mxu0
    %v4010 = vadd.f32 %v3785, %v4009
    %v4011 = vpop.f32.mrb[0].mxu0
    %4012 = vmatprep.mubr.f32.mxu0 0.0
    %4013 = vmatmul.mubr.f32.gmra.mrb[0].mxu0 %v3620
    %v4014 = vpop.f32.mrb[0].mxu0
    %v4015 = vadd.f32 %v3790, %v4014
    %v4016 = vpop.f32.mrb[0].mxu0
    %4017 = vmatprep.mubr.f32.mxu0 0.0
    %4018 = vmatmul.mubr.f32.gmra.mrb[0].mxu0 %v3621
    %v4019 = vpop.f32.mrb[0].mxu0
    %v4020 = vadd.f32 %v3795, %v4019
    %v4021 = vpop.f32.mrb[0].mxu0
    %4022 = vmatprep.mubr.f32.mxu0 0.0
    %4023 = vmatmul.mubr.f32.gmra.mrb[0].mxu0 %v3622
    %v4024 = vpop.f32.mrb[0].mxu0
    %v4025 = vadd.f32 %v3800, %v4024
    %v4026 = vpop.f32.mrb[0].mxu0
    %4027 = vmatprep.mubr.f32.mxu0 0.0
    %4028 = vmatmul.mubr.f32.gmra.mrb[0].mxu0 %v3623
    %v4029 = vpop.f32.mrb[0].mxu0
    %v4030 = vadd.f32 %v3805, %v4029
    %v4031 = vpop.f32.mrb[0].mxu0
    %4032 = vmatprep.mubr.f32.mxu0 0.0
    %4033 = vmatmul.mubr.f32.gmra.mrb[0].mxu0 %v3624
    %v4034 = vpop.f32.mrb[0].mxu0
    %v4035 = vadd.f32 %v3810, %v4034
    %v4036 = vpop.f32.mrb[0].mxu0
    %4037 = vmatprep.mubr.f32.mxu0 0.0
    %4038 = vmatmul.mubr.f32.gmra.mrb[0].mxu0 %v3625
    %v4039 = vpop.f32.mrb[0].mxu0
    %v4040 = vadd.f32 %v3815, %v4039
    %v4041 = vpop.f32.mrb[0].mxu0
    %4042 = vmatprep.mubr.f32.mxu0 0.0
    %4043 = vmatmul.mubr.f32.gmra.mrb[0].mxu0 %v3626
    %v4044 = vpop.f32.mrb[0].mxu0
    %v4045 = vadd.f32 %v3820, %v4044
    %v4046 = vpop.f32.mrb[0].mxu0
    %4047 = vmatprep.mubr.f32.mxu0 0.0
    %4048 = vmatmul.mubr.f32.gmra.mrb[0].mxu0 %v3627
    %v4049 = vpop.f32.mrb[0].mxu0
    %v4050 = vadd.f32 %v3825, %v4049
    %v4051 = vpop.f32.mrb[0].mxu0
    %4052 = vmatprep.mubr.f32.mxu0 0.0
    %4053 = vmatmul.mubr.f32.gmra.mrb[0].mxu0 %v3628
    %v4054 = vpop.f32.mrb[0].mxu0
    %v4055 = vadd.f32 %v3830, %v4054
    %v4056 = vpop.f32.mrb[0].mxu0
    %4057 = vmatprep.mubr.f32.mxu0 0.0
    %4058 = vmatmul.mubr.f32.gmra.mrb[0].mxu0 %v3629
    %v4059 = vpop.f32.mrb[0].mxu0
    %v4060 = vadd.f32 %v3835, %v4059
    %v4061 = vpop.f32.mrb[0].mxu0
    %4062 = vmatprep.mubr.f32.mxu0 0.0
    %4063 = vmatmul.mubr.f32.gmra.mrb[0].mxu0 %v3630
    %v4064 = vpop.f32.mrb[0].mxu0
    %v4065 = vadd.f32 %v3840, %v4064
    %v4066 = vpop.f32.mrb[0].mxu0
    %4067 = vmatprep.mubr.f32.mxu0 0.0
    %4068 = vmatmul.mubr.f32.gmra.mrb[0].mxu0 %v3631
    %v4069 = vpop.f32.mrb[0].mxu0
    %v4070 = vadd.f32 %v3845, %v4069
    %v4071 = vpop.f32.mrb[0].mxu0
    %4072 = vmatprep.mubr.f32.mxu0 0.0
    %4073 = vmatmul.mubr.f32.gmra.mrb[0].mxu0 %v3632
    %v4074 = vpop.f32.mrb[0].mxu0
    %v4075 = vadd.f32 %v3850, %v4074
    %v4076 = vpop.f32.mrb[0].mxu0
    %4077 = vmatprep.mubr.f32.mxu0 0.0
    %4078 = vmatmul.mubr.f32.gmra.mrb[0].mxu0 %v3633
    %v4079 = vpop.f32.mrb[0].mxu0
    %v4080 = vadd.f32 %v3855, %v4079
    %v4081 = vpop.f32.mrb[0].mxu0
    %4082 = vmatprep.mubr.f32.mxu0 0.0
    %4083 = vmatmul.mubr.f32.gmra.mrb[0].mxu0 %v3634
    %v4084 = vpop.f32.mrb[0].mxu0
    %v4085 = vadd.f32 %v3860, %v4084
    %v4086 = vpop.f32.mrb[0].mxu0
    %4087 = vmatprep.mubr.f32.mxu0 0.0
    %4088 = vmatmul.mubr.f32.gmra.mrb[0].mxu0 %v3635
    %v4089 = vpop.f32.mrb[0].mxu0
    %v4090 = vadd.f32 %v3865, %v4089
    %v4091 = vpop.f32.mrb[0].mxu0
    %4092 = vmatprep.mubr.f32.mxu0 0.0
    %4093 = vmatmul.mubr.f32.gmra.mrb[0].mxu0 %v3636
    %v4094 = vpop.f32.mrb[0].mxu0
    %v4095 = vadd.f32 %v3870, %v4094
    %v4096 = vpop.f32.mrb[0].mxu0
    %4097 = vmatprep.mubr.f32.mxu0 0.0
    %4098 = vmatmul.mubr.f32.gmra.mrb[0].mxu0 %v3637
    %v4099 = vpop.f32.mrb[0].mxu0
    %v4100 = vadd.f32 %v3875, %v4099
    %v4101 = vpop.f32.mrb[0].mxu0
    %4102 = vmatprep.mubr.f32.mxu0 0.0
    %4103 = vmatmul.mubr.f32.gmra.mrb[0].mxu0 %v3638
    %v4104 = vpop.f32.mrb[0].mxu0
    %v4105 = vadd.f32 %v3880, %v4104
    %v4106 = vpop.f32.mrb[0].mxu0
    %4107 = vmatprep.mubr.f32.mxu0 0.0
    %4108 = vmatmul.mubr.f32.gmra.mrb[0].mxu0 %v3639
    %v4109 = vpop.f32.mrb[0].mxu0
    %v4110 = vadd.f32 %v3885, %v4109
    %v4111 = vpop.f32.mrb[0].mxu0
    %4112 = vmatprep.mubr.f32.mxu0 0.0
    %4113 = vmatmul.mubr.f32.gmra.mrb[0].mxu0 %v3640
    %v4114 = vpop.f32.mrb[0].mxu0
    %v4115 = vadd.f32 %v3890, %v4114
    %v4116 = vpop.f32.mrb[0].mxu0
    %4117 = vdwg.mxu0
    %4150 = vrot.lane.b32.xlu0 %v3960, 64
    %v4151 = vpop.permute.xlu0 %4150
    %4152 = vrot.lane.b32.xlu0 %v3965, 64
    %v4153 = vpop.permute.xlu0 %4152
    %4154 = vrot.lane.b32.xlu0 %v3970, 64
    %v4155 = vpop.permute.xlu0 %4154
    %4156 = vrot.lane.b32.xlu0 %v3975, 64
    %v4157 = vpop.permute.xlu0 %4156
    %4158 = vrot.lane.b32.xlu0 %v3980, 64
    %v4159 = vpop.permute.xlu0 %4158
    %4160 = vrot.lane.b32.xlu0 %v3985, 64
    %v4161 = vpop.permute.xlu0 %4160
    %4162 = vrot.lane.b32.xlu0 %v3990, 64
    %v4163 = vpop.permute.xlu0 %4162
    %4164 = vrot.lane.b32.xlu0 %v3995, 64
    %v4165 = vpop.permute.xlu0 %4164
    %4166 = vrot.lane.b32.xlu0 %v4000, 64
    %v4167 = vpop.permute.xlu0 %4166
    %4168 = vrot.lane.b32.xlu0 %v4005, 64
    %v4169 = vpop.permute.xlu0 %4168
    %4170 = vrot.lane.b32.xlu0 %v4010, 64
    %v4171 = vpop.permute.xlu0 %4170
    %4172 = vrot.lane.b32.xlu0 %v4015, 64
    %v4173 = vpop.permute.xlu0 %4172
    %4174 = vrot.lane.b32.xlu0 %v4020, 64
    %v4175 = vpop.permute.xlu0 %4174
    %4176 = vrot.lane.b32.xlu0 %v4025, 64
    %v4177 = vpop.permute.xlu0 %4176
    %4178 = vrot.lane.b32.xlu0 %v4030, 64
    %v4179 = vpop.permute.xlu0 %4178
    %4180 = vrot.lane.b32.xlu0 %v4035, 64
    %v4181 = vpop.permute.xlu0 %4180
    %4182 = vrot.lane.b32.xlu0 %v4040, 64
    %v4183 = vpop.permute.xlu0 %4182
    %4184 = vrot.lane.b32.xlu0 %v4045, 64
    %v4185 = vpop.permute.xlu0 %4184
    %4186 = vrot.lane.b32.xlu0 %v4050, 64
    %v4187 = vpop.permute.xlu0 %4186
    %4188 = vrot.lane.b32.xlu0 %v4055, 64
    %v4189 = vpop.permute.xlu0 %4188
    %4190 = vrot.lane.b32.xlu0 %v4060, 64
    %v4191 = vpop.permute.xlu0 %4190
    %4192 = vrot.lane.b32.xlu0 %v4065, 64
    %v4193 = vpop.permute.xlu0 %4192
    %4194 = vrot.lane.b32.xlu0 %v4070, 64
    %v4195 = vpop.permute.xlu0 %4194
    %4196 = vrot.lane.b32.xlu0 %v4075, 64
    %v4197 = vpop.permute.xlu0 %4196
    %4198 = vrot.lane.b32.xlu0 %v4080, 64
    %v4199 = vpop.permute.xlu0 %4198
    %4200 = vrot.lane.b32.xlu0 %v4085, 64
    %v4201 = vpop.permute.xlu0 %4200
    %4202 = vrot.lane.b32.xlu0 %v4090, 64
    %v4203 = vpop.permute.xlu0 %4202
    %4204 = vrot.lane.b32.xlu0 %v4095, 64
    %v4205 = vpop.permute.xlu0 %4204
    %4206 = vrot.lane.b32.xlu0 %v4100, 64
    %v4207 = vpop.permute.xlu0 %4206
    %4208 = vrot.lane.b32.xlu0 %v4105, 64
    %v4209 = vpop.permute.xlu0 %4208
    %4210 = vrot.lane.b32.xlu0 %v4110, 64
    %v4211 = vpop.permute.xlu0 %4210
    %4212 = vrot.lane.b32.xlu0 %v4115, 64
    %v4213 = vpop.permute.xlu0 %4212
    %vm4246 = vcmask 785920
    %4247 = vst.msk [vmem:[#allocation4] sm:$0xff] %vm4246, %v4151
    %4248 = vst.msk [vmem:[#allocation4 + $0x8] sm:$0xff] %vm4246, %v4153
    %4249 = vst.msk [vmem:[#allocation4 + $0x10] sm:$0xff] %vm4246, %v4155
    %4250 = vst.msk [vmem:[#allocation4 + $0x18] sm:$0xff] %vm4246, %v4157
    %4251 = vst.msk [vmem:[#allocation4 + $0x20] sm:$0xff] %vm4246, %v4159
    %4252 = vst.msk [vmem:[#allocation4 + $0x28] sm:$0xff] %vm4246, %v4161
    %4253 = vst.msk [vmem:[#allocation4 + $0x30] sm:$0xff] %vm4246, %v4163
    %4254 = vst.msk [vmem:[#allocation4 + $0x38] sm:$0xff] %vm4246, %v4165
    %4255 = vst.msk [vmem:[#allocation4 + $0x40] sm:$0xff] %vm4246, %v4167
    %4256 = vst.msk [vmem:[#allocation4 + $0x48] sm:$0xff] %vm4246, %v4169
    %4257 = vst.msk [vmem:[#allocation4 + $0x50] sm:$0xff] %vm4246, %v4171
    %4258 = vst.msk [vmem:[#allocation4 + $0x58] sm:$0xff] %vm4246, %v4173
    %4259 = vst.msk [vmem:[#allocation4 + $0x60] sm:$0xff] %vm4246, %v4175
    %4260 = vst.msk [vmem:[#allocation4 + $0x68] sm:$0xff] %vm4246, %v4177
    %4261 = vst.msk [vmem:[#allocation4 + $0x70] sm:$0xff] %vm4246, %v4179
    %4262 = vst.msk [vmem:[#allocation4 + $0x78] sm:$0xff] %vm4246, %v4181
    %4263 = vst.msk [vmem:[#allocation4 + $0x80] sm:$0xff] %vm4246, %v4183
    %4264 = vst.msk [vmem:[#allocation4 + $0x88] sm:$0xff] %vm4246, %v4185
    %4265 = vst.msk [vmem:[#allocation4 + $0x90] sm:$0xff] %vm4246, %v4187
    %4266 = vst.msk [vmem:[#allocation4 + $0x98] sm:$0xff] %vm4246, %v4189
    %4267 = vst.msk [vmem:[#allocation4 + $0xa0] sm:$0xff] %vm4246, %v4191
    %4268 = vst.msk [vmem:[#allocation4 + $0xa8] sm:$0xff] %vm4246, %v4193
    %4269 = vst.msk [vmem:[#allocation4 + $0xb0] sm:$0xff] %vm4246, %v4195
    %4270 = vst.msk [vmem:[#allocation4 + $0xb8] sm:$0xff] %vm4246, %v4197
    %4271 = vst.msk [vmem:[#allocation4 + $0xc0] sm:$0xff] %vm4246, %v4199
    %4272 = vst.msk [vmem:[#allocation4 + $0xc8] sm:$0xff] %vm4246, %v4201
    %4273 = vst.msk [vmem:[#allocation4 + $0xd0] sm:$0xff] %vm4246, %v4203
    %4274 = vst.msk [vmem:[#allocation4 + $0xd8] sm:$0xff] %vm4246, %v4205
    %4275 = vst.msk [vmem:[#allocation4 + $0xe0] sm:$0xff] %vm4246, %v4207
    %4276 = vst.msk [vmem:[#allocation4 + $0xe8] sm:$0xff] %vm4246, %v4209
    %4277 = vst.msk [vmem:[#allocation4 + $0xf0] sm:$0xff] %vm4246, %v4211
    %4278 = vst.msk [vmem:[#allocation4 + $0xf8] sm:$0xff] %vm4246, %v4213
    %s4279 = sld [smem:[#allocation3 + $0x3]]
    %p4280 = scmp.lt.s32.totalorder %s4279, 0
    %s4281 = ssub.s32 0, %s4279
    %s4282 = scalar_select %p4280, %s4281, %s4279
    %s4283 = sand.u32 %s4282, 127
    %s4284 = ssub.s32 0, %s4283
    %s4285 = scalar_select %p4280, %s4284, %s4283
    %p4286 = scmp.ne.s32.totalorder %s4285, 0
    %p4287 = scmp.lt.s32.totalorder %s4285, 0
    %p4288 = pnand %p4287, %p4286
    %p4289 = pneg %p4288
    %s4290 = sadd.s32 %s4285, 128
    %s4291 = scalar_select %p4289, %s4290, %s4285
    %v4292 = vstv %s4291
    %v4293 = vmul.u32 %v409, %v4292
    %v4294 = vmul.u32 %v410, %v4292
    %v4295 = vmul.u32 %v411, %v4292
    %v4296 = vmul.u32 %v412, %v4292
    %v4297 = vmul.u32 %v413, %v4292
    %v4298 = vmul.u32 %v414, %v4292
    %v4299 = vmul.u32 %v415, %v4292
    %v4300 = vmul.u32 %v416, %v4292
    %v4301 = vmul.u32 %v417, %v4292
    %v4302 = vmul.u32 %v418, %v4292
    %v4303 = vmul.u32 %v419, %v4292
    %v4304 = vmul.u32 %v420, %v4292
    %v4305 = vmul.u32 %v421, %v4292
    %v4306 = vmul.u32 %v422, %v4292
    %v4307 = vmul.u32 %v423, %v4292
    %v4308 = vmul.u32 %v424, %v4292
    %v4309 = vmul.u32 %v425, %v4292
    %v4310 = vmul.u32 %v426, %v4292
    %v4311 = vmul.u32 %v427, %v4292
    %v4312 = vmul.u32 %v428, %v4292
    %v4313 = vmul.u32 %v429, %v4292
    %v4314 = vmul.u32 %v430, %v4292
    %v4315 = vmul.u32 %v431, %v4292
    %v4316 = vmul.u32 %v432, %v4292
    %v4317 = vmul.u32 %v433, %v4292
    %v4318 = vmul.u32 %v434, %v4292
    %v4319 = vmul.u32 %v435, %v4292
    %v4320 = vmul.u32 %v436, %v4292
    %v4321 = vmul.u32 %v437, %v4292
    %v4322 = vmul.u32 %v438, %v4292
    %v4323 = vmul.u32 %v439, %v4292
    %v4324 = vmul.u32 %v440, %v4292
    %vm4325 = vcmp.lt.s32.totalorder %v4293, 0
    %v4326 = vsub.s32 0, %v4293
    %v4327 = vsel %vm4325, %v4326, %v4293
    %v4328 = vshrl.u32 %v4327, 7
    %v4329 = vand.u32 %v4327, 127
    %v4330 = vsub.s32 0, %v4329
    %v4331 = vsel %vm4325, %v4330, %v4329
    %vm4332 = vcmp.lt.s32.totalorder %v4294, 0
    %v4333 = vsub.s32 0, %v4294
    %v4334 = vsel %vm4332, %v4333, %v4294
    %v4335 = vshrl.u32 %v4334, 7
    %v4336 = vand.u32 %v4334, 127
    %v4337 = vsub.s32 0, %v4336
    %v4338 = vsel %vm4332, %v4337, %v4336
    %vm4339 = vcmp.lt.s32.totalorder %v4295, 0
    %v4340 = vsub.s32 0, %v4295
    %v4341 = vsel %vm4339, %v4340, %v4295
    %v4342 = vshrl.u32 %v4341, 7
    %v4343 = vand.u32 %v4341, 127
    %v4344 = vsub.s32 0, %v4343
    %v4345 = vsel %vm4339, %v4344, %v4343
    %vm4346 = vcmp.lt.s32.totalorder %v4296, 0
    %v4347 = vsub.s32 0, %v4296
    %v4348 = vsel %vm4346, %v4347, %v4296
    %v4349 = vshrl.u32 %v4348, 7
    %v4350 = vand.u32 %v4348, 127
    %v4351 = vsub.s32 0, %v4350
    %v4352 = vsel %vm4346, %v4351, %v4350
    %vm4353 = vcmp.lt.s32.totalorder %v4297, 0
    %v4354 = vsub.s32 0, %v4297
    %v4355 = vsel %vm4353, %v4354, %v4297
    %v4356 = vshrl.u32 %v4355, 7
    %v4357 = vand.u32 %v4355, 127
    %v4358 = vsub.s32 0, %v4357
    %v4359 = vsel %vm4353, %v4358, %v4357
    %vm4360 = vcmp.lt.s32.totalorder %v4298, 0
    %v4361 = vsub.s32 0, %v4298
    %v4362 = vsel %vm4360, %v4361, %v4298
    %v4363 = vshrl.u32 %v4362, 7
    %v4364 = vand.u32 %v4362, 127
    %v4365 = vsub.s32 0, %v4364
    %v4366 = vsel %vm4360, %v4365, %v4364
    %vm4367 = vcmp.lt.s32.totalorder %v4299, 0
    %v4368 = vsub.s32 0, %v4299
    %v4369 = vsel %vm4367, %v4368, %v4299
    %v4370 = vshrl.u32 %v4369, 7
    %v4371 = vand.u32 %v4369, 127
    %v4372 = vsub.s32 0, %v4371
    %v4373 = vsel %vm4367, %v4372, %v4371
    %vm4374 = vcmp.lt.s32.totalorder %v4300, 0
    %v4375 = vsub.s32 0, %v4300
    %v4376 = vsel %vm4374, %v4375, %v4300
    %v4377 = vshrl.u32 %v4376, 7
    %v4378 = vand.u32 %v4376, 127
    %v4379 = vsub.s32 0, %v4378
    %v4380 = vsel %vm4374, %v4379, %v4378
    %vm4381 = vcmp.lt.s32.totalorder %v4301, 0
    %v4382 = vsub.s32 0, %v4301
    %v4383 = vsel %vm4381, %v4382, %v4301
    %v4384 = vshrl.u32 %v4383, 7
    %v4385 = vand.u32 %v4383, 127
    %v4386 = vsub.s32 0, %v4385
    %v4387 = vsel %vm4381, %v4386, %v4385
    %vm4388 = vcmp.lt.s32.totalorder %v4302, 0
    %v4389 = vsub.s32 0, %v4302
    %v4390 = vsel %vm4388, %v4389, %v4302
    %v4391 = vshrl.u32 %v4390, 7
    %v4392 = vand.u32 %v4390, 127
    %v4393 = vsub.s32 0, %v4392
    %v4394 = vsel %vm4388, %v4393, %v4392
    %vm4395 = vcmp.lt.s32.totalorder %v4303, 0
    %v4396 = vsub.s32 0, %v4303
    %v4397 = vsel %vm4395, %v4396, %v4303
    %v4398 = vshrl.u32 %v4397, 7
    %v4399 = vand.u32 %v4397, 127
    %v4400 = vsub.s32 0, %v4399
    %v4401 = vsel %vm4395, %v4400, %v4399
    %vm4402 = vcmp.lt.s32.totalorder %v4304, 0
    %v4403 = vsub.s32 0, %v4304
    %v4404 = vsel %vm4402, %v4403, %v4304
    %v4405 = vshrl.u32 %v4404, 7
    %v4406 = vand.u32 %v4404, 127
    %v4407 = vsub.s32 0, %v4406
    %v4408 = vsel %vm4402, %v4407, %v4406
    %vm4409 = vcmp.lt.s32.totalorder %v4305, 0
    %v4410 = vsub.s32 0, %v4305
    %v4411 = vsel %vm4409, %v4410, %v4305
    %v4412 = vshrl.u32 %v4411, 7
    %v4413 = vand.u32 %v4411, 127
    %v4414 = vsub.s32 0, %v4413
    %v4415 = vsel %vm4409, %v4414, %v4413
    %vm4416 = vcmp.lt.s32.totalorder %v4306, 0
    %v4417 = vsub.s32 0, %v4306
    %v4418 = vsel %vm4416, %v4417, %v4306
    %v4419 = vshrl.u32 %v4418, 7
    %v4420 = vand.u32 %v4418, 127
    %v4421 = vsub.s32 0, %v4420
    %v4422 = vsel %vm4416, %v4421, %v4420
    %vm4423 = vcmp.lt.s32.totalorder %v4307, 0
    %v4424 = vsub.s32 0, %v4307
    %v4425 = vsel %vm4423, %v4424, %v4307
    %v4426 = vshrl.u32 %v4425, 7
    %v4427 = vand.u32 %v4425, 127
    %v4428 = vsub.s32 0, %v4427
    %v4429 = vsel %vm4423, %v4428, %v4427
    %vm4430 = vcmp.lt.s32.totalorder %v4308, 0
    %v4431 = vsub.s32 0, %v4308
    %v4432 = vsel %vm4430, %v4431, %v4308
    %v4433 = vshrl.u32 %v4432, 7
    %v4434 = vand.u32 %v4432, 127
    %v4435 = vsub.s32 0, %v4434
    %v4436 = vsel %vm4430, %v4435, %v4434
    %vm4437 = vcmp.lt.s32.totalorder %v4309, 0
    %v4438 = vsub.s32 0, %v4309
    %v4439 = vsel %vm4437, %v4438, %v4309
    %v4440 = vshrl.u32 %v4439, 7
    %v4441 = vand.u32 %v4439, 127
    %v4442 = vsub.s32 0, %v4441
    %v4443 = vsel %vm4437, %v4442, %v4441
    %vm4444 = vcmp.lt.s32.totalorder %v4310, 0
    %v4445 = vsub.s32 0, %v4310
    %v4446 = vsel %vm4444, %v4445, %v4310
    %v4447 = vshrl.u32 %v4446, 7
    %v4448 = vand.u32 %v4446, 127
    %v4449 = vsub.s32 0, %v4448
    %v4450 = vsel %vm4444, %v4449, %v4448
    %vm4451 = vcmp.lt.s32.totalorder %v4311, 0
    %v4452 = vsub.s32 0, %v4311
    %v4453 = vsel %vm4451, %v4452, %v4311
    %v4454 = vshrl.u32 %v4453, 7
    %v4455 = vand.u32 %v4453, 127
    %v4456 = vsub.s32 0, %v4455
    %v4457 = vsel %vm4451, %v4456, %v4455
    %vm4458 = vcmp.lt.s32.totalorder %v4312, 0
    %v4459 = vsub.s32 0, %v4312
    %v4460 = vsel %vm4458, %v4459, %v4312
    %v4461 = vshrl.u32 %v4460, 7
    %v4462 = vand.u32 %v4460, 127
    %v4463 = vsub.s32 0, %v4462
    %v4464 = vsel %vm4458, %v4463, %v4462
    %vm4465 = vcmp.lt.s32.totalorder %v4313, 0
    %v4466 = vsub.s32 0, %v4313
    %v4467 = vsel %vm4465, %v4466, %v4313
    %v4468 = vshrl.u32 %v4467, 7
    %v4469 = vand.u32 %v4467, 127
    %v4470 = vsub.s32 0, %v4469
    %v4471 = vsel %vm4465, %v4470, %v4469
    %vm4472 = vcmp.lt.s32.totalorder %v4314, 0
    %v4473 = vsub.s32 0, %v4314
    %v4474 = vsel %vm4472, %v4473, %v4314
    %v4475 = vshrl.u32 %v4474, 7
    %v4476 = vand.u32 %v4474, 127
    %v4477 = vsub.s32 0, %v4476
    %v4478 = vsel %vm4472, %v4477, %v4476
    %vm4479 = vcmp.lt.s32.totalorder %v4315, 0
    %v4480 = vsub.s32 0, %v4315
    %v4481 = vsel %vm4479, %v4480, %v4315
    %v4482 = vshrl.u32 %v4481, 7
    %v4483 = vand.u32 %v4481, 127
    %v4484 = vsub.s32 0, %v4483
    %v4485 = vsel %vm4479, %v4484, %v4483
    %vm4486 = vcmp.lt.s32.totalorder %v4316, 0
    %v4487 = vsub.s32 0, %v4316
    %v4488 = vsel %vm4486, %v4487, %v4316
    %v4489 = vshrl.u32 %v4488, 7
    %v4490 = vand.u32 %v4488, 127
    %v4491 = vsub.s32 0, %v4490
    %v4492 = vsel %vm4486, %v4491, %v4490
    %vm4493 = vcmp.lt.s32.totalorder %v4317, 0
    %v4494 = vsub.s32 0, %v4317
    %v4495 = vsel %vm4493, %v4494, %v4317
    %v4496 = vshrl.u32 %v4495, 7
    %v4497 = vand.u32 %v4495, 127
    %v4498 = vsub.s32 0, %v4497
    %v4499 = vsel %vm4493, %v4498, %v4497
    %vm4500 = vcmp.lt.s32.totalorder %v4318, 0
    %v4501 = vsub.s32 0, %v4318
    %v4502 = vsel %vm4500, %v4501, %v4318
    %v4503 = vshrl.u32 %v4502, 7
    %v4504 = vand.u32 %v4502, 127
    %v4505 = vsub.s32 0, %v4504
    %v4506 = vsel %vm4500, %v4505, %v4504
    %vm4507 = vcmp.lt.s32.totalorder %v4319, 0
    %v4508 = vsub.s32 0, %v4319
    %v4509 = vsel %vm4507, %v4508, %v4319
    %v4510 = vshrl.u32 %v4509, 7
    %v4511 = vand.u32 %v4509, 127
    %v4512 = vsub.s32 0, %v4511
    %v4513 = vsel %vm4507, %v4512, %v4511
    %vm4514 = vcmp.lt.s32.totalorder %v4320, 0
    %v4515 = vsub.s32 0, %v4320
    %v4516 = vsel %vm4514, %v4515, %v4320
    %v4517 = vshrl.u32 %v4516, 7
    %v4518 = vand.u32 %v4516, 127
    %v4519 = vsub.s32 0, %v4518
    %v4520 = vsel %vm4514, %v4519, %v4518
    %vm4521 = vcmp.lt.s32.totalorder %v4321, 0
    %v4522 = vsub.s32 0, %v4321
    %v4523 = vsel %vm4521, %v4522, %v4321
    %v4524 = vshrl.u32 %v4523, 7
    %v4525 = vand.u32 %v4523, 127
    %v4526 = vsub.s32 0, %v4525
    %v4527 = vsel %vm4521, %v4526, %v4525
    %vm4528 = vcmp.lt.s32.totalorder %v4322, 0
    %v4529 = vsub.s32 0, %v4322
    %v4530 = vsel %vm4528, %v4529, %v4322
    %v4531 = vshrl.u32 %v4530, 7
    %v4532 = vand.u32 %v4530, 127
    %v4533 = vsub.s32 0, %v4532
    %v4534 = vsel %vm4528, %v4533, %v4532
    %vm4535 = vcmp.lt.s32.totalorder %v4323, 0
    %v4536 = vsub.s32 0, %v4323
    %v4537 = vsel %vm4535, %v4536, %v4323
    %v4538 = vshrl.u32 %v4537, 7
    %v4539 = vand.u32 %v4537, 127
    %v4540 = vsub.s32 0, %v4539
    %v4541 = vsel %vm4535, %v4540, %v4539
    %vm4542 = vcmp.lt.s32.totalorder %v4324, 0
    %v4543 = vsub.s32 0, %v4324
    %v4544 = vsel %vm4542, %v4543, %v4324
    %v4545 = vshrl.u32 %v4544, 7
    %v4546 = vand.u32 %v4544, 127
    %v4547 = vsub.s32 0, %v4546
    %v4548 = vsel %vm4542, %v4547, %v4546
    %vm4549 = vcmp.ne.s32.totalorder %v4331, 0
    %vm4550 = vcmp.ne.s32.totalorder %v4338, 0
    %vm4551 = vcmp.ne.s32.totalorder %v4345, 0
    %vm4552 = vcmp.ne.s32.totalorder %v4352, 0
    %vm4553 = vcmp.ne.s32.totalorder %v4359, 0
    %vm4554 = vcmp.ne.s32.totalorder %v4366, 0
    %vm4555 = vcmp.ne.s32.totalorder %v4373, 0
    %vm4556 = vcmp.ne.s32.totalorder %v4380, 0
    %vm4557 = vcmp.ne.s32.totalorder %v4387, 0
    %vm4558 = vcmp.ne.s32.totalorder %v4394, 0
    %vm4559 = vcmp.ne.s32.totalorder %v4401, 0
    %vm4560 = vcmp.ne.s32.totalorder %v4408, 0
    %vm4561 = vcmp.ne.s32.totalorder %v4415, 0
    %vm4562 = vcmp.ne.s32.totalorder %v4422, 0
    %vm4563 = vcmp.ne.s32.totalorder %v4429, 0
    %vm4564 = vcmp.ne.s32.totalorder %v4436, 0
    %vm4565 = vcmp.ne.s32.totalorder %v4443, 0
    %vm4566 = vcmp.ne.s32.totalorder %v4450, 0
    %vm4567 = vcmp.ne.s32.totalorder %v4457, 0
    %vm4568 = vcmp.ne.s32.totalorder %v4464, 0
    %vm4569 = vcmp.ne.s32.totalorder %v4471, 0
    %vm4570 = vcmp.ne.s32.totalorder %v4478, 0
    %vm4571 = vcmp.ne.s32.totalorder %v4485, 0
    %vm4572 = vcmp.ne.s32.totalorder %v4492, 0
    %vm4573 = vcmp.ne.s32.totalorder %v4499, 0
    %vm4574 = vcmp.ne.s32.totalorder %v4506, 0
    %vm4575 = vcmp.ne.s32.totalorder %v4513, 0
    %vm4576 = vcmp.ne.s32.totalorder %v4520, 0
    %vm4577 = vcmp.ne.s32.totalorder %v4527, 0
    %vm4578 = vcmp.ne.s32.totalorder %v4534, 0
    %vm4579 = vcmp.ne.s32.totalorder %v4541, 0
    %vm4580 = vcmp.ne.s32.totalorder %v4548, 0
    %vm4581 = vcmp.lt.s32.totalorder %v4331, 0
    %vm4582 = vcmp.lt.s32.totalorder %v4338, 0
    %vm4583 = vcmp.lt.s32.totalorder %v4345, 0
    %vm4584 = vcmp.lt.s32.totalorder %v4352, 0
    %vm4585 = vcmp.lt.s32.totalorder %v4359, 0
    %vm4586 = vcmp.lt.s32.totalorder %v4366, 0
    %vm4587 = vcmp.lt.s32.totalorder %v4373, 0
    %vm4588 = vcmp.lt.s32.totalorder %v4380, 0
    %vm4589 = vcmp.lt.s32.totalorder %v4387, 0
    %vm4590 = vcmp.lt.s32.totalorder %v4394, 0
    %vm4591 = vcmp.lt.s32.totalorder %v4401, 0
    %vm4592 = vcmp.lt.s32.totalorder %v4408, 0
    %vm4593 = vcmp.lt.s32.totalorder %v4415, 0
    %vm4594 = vcmp.lt.s32.totalorder %v4422, 0
    %vm4595 = vcmp.lt.s32.totalorder %v4429, 0
    %vm4596 = vcmp.lt.s32.totalorder %v4436, 0
    %vm4597 = vcmp.lt.s32.totalorder %v4443, 0
    %vm4598 = vcmp.lt.s32.totalorder %v4450, 0
    %vm4599 = vcmp.lt.s32.totalorder %v4457, 0
    %vm4600 = vcmp.lt.s32.totalorder %v4464, 0
    %vm4601 = vcmp.lt.s32.totalorder %v4471, 0
    %vm4602 = vcmp.lt.s32.totalorder %v4478, 0
    %vm4603 = vcmp.lt.s32.totalorder %v4485, 0
    %vm4604 = vcmp.lt.s32.totalorder %v4492, 0
    %vm4605 = vcmp.lt.s32.totalorder %v4499, 0
    %vm4606 = vcmp.lt.s32.totalorder %v4506, 0
    %vm4607 = vcmp.lt.s32.totalorder %v4513, 0
    %vm4608 = vcmp.lt.s32.totalorder %v4520, 0
    %vm4609 = vcmp.lt.s32.totalorder %v4527, 0
    %vm4610 = vcmp.lt.s32.totalorder %v4534, 0
    %vm4611 = vcmp.lt.s32.totalorder %v4541, 0
    %vm4612 = vcmp.lt.s32.totalorder %v4548, 0
    %vm4613 = vmand %vm4581, %vm4549
    %vm4614 = vmand %vm4582, %vm4550
    %vm4615 = vmand %vm4583, %vm4551
    %vm4616 = vmand %vm4584, %vm4552
    %vm4617 = vmand %vm4585, %vm4553
    %vm4618 = vmand %vm4586, %vm4554
    %vm4619 = vmand %vm4587, %vm4555
    %vm4620 = vmand %vm4588, %vm4556
    %vm4621 = vmand %vm4589, %vm4557
    %vm4622 = vmand %vm4590, %vm4558
    %vm4623 = vmand %vm4591, %vm4559
    %vm4624 = vmand %vm4592, %vm4560
    %vm4625 = vmand %vm4593, %vm4561
    %vm4626 = vmand %vm4594, %vm4562
    %vm4627 = vmand %vm4595, %vm4563
    %vm4628 = vmand %vm4596, %vm4564
    %vm4629 = vmand %vm4597, %vm4565
    %vm4630 = vmand %vm4598, %vm4566
    %vm4631 = vmand %vm4599, %vm4567
    %vm4632 = vmand %vm4600, %vm4568
    %vm4633 = vmand %vm4601, %vm4569
    %vm4634 = vmand %vm4602, %vm4570
    %vm4635 = vmand %vm4603, %vm4571
    %vm4636 = vmand %vm4604, %vm4572
    %vm4637 = vmand %vm4605, %vm4573
    %vm4638 = vmand %vm4606, %vm4574
    %vm4639 = vmand %vm4607, %vm4575
    %vm4640 = vmand %vm4608, %vm4576
    %vm4641 = vmand %vm4609, %vm4577
    %vm4642 = vmand %vm4610, %vm4578
    %vm4643 = vmand %vm4611, %vm4579
    %vm4644 = vmand %vm4612, %vm4580
    %v4645 = vadd.s32 %v4331, 128
    %v4646 = vadd.s32 %v4338, 128
    %v4647 = vadd.s32 %v4345, 128
    %v4648 = vadd.s32 %v4352, 128
    %v4649 = vadd.s32 %v4359, 128
    %v4650 = vadd.s32 %v4366, 128
    %v4651 = vadd.s32 %v4373, 128
    %v4652 = vadd.s32 %v4380, 128
    %v4653 = vadd.s32 %v4387, 128
    %v4654 = vadd.s32 %v4394, 128
    %v4655 = vadd.s32 %v4401, 128
    %v4656 = vadd.s32 %v4408, 128
    %v4657 = vadd.s32 %v4415, 128
    %v4658 = vadd.s32 %v4422, 128
    %v4659 = vadd.s32 %v4429, 128
    %v4660 = vadd.s32 %v4436, 128
    %v4661 = vadd.s32 %v4443, 128
    %v4662 = vadd.s32 %v4450, 128
    %v4663 = vadd.s32 %v4457, 128
    %v4664 = vadd.s32 %v4464, 128
    %v4665 = vadd.s32 %v4471, 128
    %v4666 = vadd.s32 %v4478, 128
    %v4667 = vadd.s32 %v4485, 128
    %v4668 = vadd.s32 %v4492, 128
    %v4669 = vadd.s32 %v4499, 128
    %v4670 = vadd.s32 %v4506, 128
    %v4671 = vadd.s32 %v4513, 128
    %v4672 = vadd.s32 %v4520, 128
    %v4673 = vadd.s32 %v4527, 128
    %v4674 = vadd.s32 %v4534, 128
    %v4675 = vadd.s32 %v4541, 128
    %v4676 = vadd.s32 %v4548, 128
    %v4677 = vsel %vm4613, %v4645, %v4331
    %v4678 = vsel %vm4614, %v4646, %v4338
    %v4679 = vsel %vm4615, %v4647, %v4345
    %v4680 = vsel %vm4616, %v4648, %v4352
    %v4681 = vsel %vm4617, %v4649, %v4359
    %v4682 = vsel %vm4618, %v4650, %v4366
    %v4683 = vsel %vm4619, %v4651, %v4373
    %v4684 = vsel %vm4620, %v4652, %v4380
    %v4685 = vsel %vm4621, %v4653, %v4387
    %v4686 = vsel %vm4622, %v4654, %v4394
    %v4687 = vsel %vm4623, %v4655, %v4401
    %v4688 = vsel %vm4624, %v4656, %v4408
    %v4689 = vsel %vm4625, %v4657, %v4415
    %v4690 = vsel %vm4626, %v4658, %v4422
    %v4691 = vsel %vm4627, %v4659, %v4429
    %v4692 = vsel %vm4628, %v4660, %v4436
    %v4693 = vsel %vm4629, %v4661, %v4443
    %v4694 = vsel %vm4630, %v4662, %v4450
    %v4695 = vsel %vm4631, %v4663, %v4457
    %v4696 = vsel %vm4632, %v4664, %v4464
    %v4697 = vsel %vm4633, %v4665, %v4471
    %v4698 = vsel %vm4634, %v4666, %v4478
    %v4699 = vsel %vm4635, %v4667, %v4485
    %v4700 = vsel %vm4636, %v4668, %v4492
    %v4701 = vsel %vm4637, %v4669, %v4499
    %v4702 = vsel %vm4638, %v4670, %v4506
    %v4703 = vsel %vm4639, %v4671, %v4513
    %v4704 = vsel %vm4640, %v4672, %v4520
    %v4705 = vsel %vm4641, %v4673, %v4527
    %v4706 = vsel %vm4642, %v4674, %v4534
    %v4707 = vsel %vm4643, %v4675, %v4541
    %v4708 = vsel %vm4644, %v4676, %v4548
    %4709 = vset.pattern.permute.xlu0 0
    %4710 = vperm.xlu0 %4709, %v4677
    %v4711 = vpop.permute.xlu0 %4710
    %4712 = vset.pattern.permute.xlu0 0
    %4713 = vperm.xlu0 %4712, %v4678
    %v4714 = vpop.permute.xlu0 %4713
    %4715 = vset.pattern.permute.xlu0 0
    %4716 = vperm.xlu0 %4715, %v4679
    %v4717 = vpop.permute.xlu0 %4716
    %4718 = vset.pattern.permute.xlu0 0
    %4719 = vperm.xlu0 %4718, %v4680
    %v4720 = vpop.permute.xlu0 %4719
    %4721 = vset.pattern.permute.xlu0 0
    %4722 = vperm.xlu0 %4721, %v4681
    %v4723 = vpop.permute.xlu0 %4722
    %4724 = vset.pattern.permute.xlu0 0
    %4725 = vperm.xlu0 %4724, %v4682
    %v4726 = vpop.permute.xlu0 %4725
    %4727 = vset.pattern.permute.xlu0 0
    %4728 = vperm.xlu0 %4727, %v4683
    %v4729 = vpop.permute.xlu0 %4728
    %4730 = vset.pattern.permute.xlu0 0
    %4731 = vperm.xlu0 %4730, %v4684
    %v4732 = vpop.permute.xlu0 %4731
    %4733 = vset.pattern.permute.xlu0 0
    %4734 = vperm.xlu0 %4733, %v4685
    %v4735 = vpop.permute.xlu0 %4734
    %4736 = vset.pattern.permute.xlu0 0
    %4737 = vperm.xlu0 %4736, %v4686
    %v4738 = vpop.permute.xlu0 %4737
    %4739 = vset.pattern.permute.xlu0 0
    %4740 = vperm.xlu0 %4739, %v4687
    %v4741 = vpop.permute.xlu0 %4740
    %4742 = vset.pattern.permute.xlu0 0
    %4743 = vperm.xlu0 %4742, %v4688
    %v4744 = vpop.permute.xlu0 %4743
    %4745 = vset.pattern.permute.xlu0 0
    %4746 = vperm.xlu0 %4745, %v4689
    %v4747 = vpop.permute.xlu0 %4746
    %4748 = vset.pattern.permute.xlu0 0
    %4749 = vperm.xlu0 %4748, %v4690
    %v4750 = vpop.permute.xlu0 %4749
    %4751 = vset.pattern.permute.xlu0 0
    %4752 = vperm.xlu0 %4751, %v4691
    %v4753 = vpop.permute.xlu0 %4752
    %4754 = vset.pattern.permute.xlu0 0
    %4755 = vperm.xlu0 %4754, %v4692
    %v4756 = vpop.permute.xlu0 %4755
    %4757 = vset.pattern.permute.xlu0 0
    %4758 = vperm.xlu0 %4757, %v4693
    %v4759 = vpop.permute.xlu0 %4758
    %4760 = vset.pattern.permute.xlu0 0
    %4761 = vperm.xlu0 %4760, %v4694
    %v4762 = vpop.permute.xlu0 %4761
    %4763 = vset.pattern.permute.xlu0 0
    %4764 = vperm.xlu0 %4763, %v4695
    %v4765 = vpop.permute.xlu0 %4764
    %4766 = vset.pattern.permute.xlu0 0
    %4767 = vperm.xlu0 %4766, %v4696
    %v4768 = vpop.permute.xlu0 %4767
    %4769 = vset.pattern.permute.xlu0 0
    %4770 = vperm.xlu0 %4769, %v4697
    %v4771 = vpop.permute.xlu0 %4770
    %4772 = vset.pattern.permute.xlu0 0
    %4773 = vperm.xlu0 %4772, %v4698
    %v4774 = vpop.permute.xlu0 %4773
    %4775 = vset.pattern.permute.xlu0 0
    %4776 = vperm.xlu0 %4775, %v4699
    %v4777 = vpop.permute.xlu0 %4776
    %4778 = vset.pattern.permute.xlu0 0
    %4779 = vperm.xlu0 %4778, %v4700
    %v4780 = vpop.permute.xlu0 %4779
    %4781 = vset.pattern.permute.xlu0 0
    %4782 = vperm.xlu0 %4781, %v4701
    %v4783 = vpop.permute.xlu0 %4782
    %4784 = vset.pattern.permute.xlu0 0
    %4785 = vperm.xlu0 %4784, %v4702
    %v4786 = vpop.permute.xlu0 %4785
    %4787 = vset.pattern.permute.xlu0 0
    %4788 = vperm.xlu0 %4787, %v4703
    %v4789 = vpop.permute.xlu0 %4788
    %4790 = vset.pattern.permute.xlu0 0
    %4791 = vperm.xlu0 %4790, %v4704
    %v4792 = vpop.permute.xlu0 %4791
    %4793 = vset.pattern.permute.xlu0 0
    %4794 = vperm.xlu0 %4793, %v4705
    %v4795 = vpop.permute.xlu0 %4794
    %4796 = vset.pattern.permute.xlu0 0
    %4797 = vperm.xlu0 %4796, %v4706
    %v4798 = vpop.permute.xlu0 %4797
    %4799 = vset.pattern.permute.xlu0 0
    %4800 = vperm.xlu0 %4799, %v4707
    %v4801 = vpop.permute.xlu0 %4800
    %4802 = vset.pattern.permute.xlu0 0
    %4803 = vperm.xlu0 %4802, %v4708
    %v4804 = vpop.permute.xlu0 %4803
    %vm4805 = vcmp.eq.s32.totalorder %v4711, %v442
    %vm4806 = vcmp.eq.s32.totalorder %v4714, %v442
    %vm4807 = vcmp.eq.s32.totalorder %v4717, %v442
    %vm4808 = vcmp.eq.s32.totalorder %v4720, %v442
    %vm4809 = vcmp.eq.s32.totalorder %v4723, %v442
    %vm4810 = vcmp.eq.s32.totalorder %v4726, %v442
    %vm4811 = vcmp.eq.s32.totalorder %v4729, %v442
    %vm4812 = vcmp.eq.s32.totalorder %v4732, %v442
    %vm4813 = vcmp.eq.s32.totalorder %v4735, %v442
    %vm4814 = vcmp.eq.s32.totalorder %v4738, %v442
    %vm4815 = vcmp.eq.s32.totalorder %v4741, %v442
    %vm4816 = vcmp.eq.s32.totalorder %v4744, %v442
    %vm4817 = vcmp.eq.s32.totalorder %v4747, %v442
    %vm4818 = vcmp.eq.s32.totalorder %v4750, %v442
    %vm4819 = vcmp.eq.s32.totalorder %v4753, %v442
    %vm4820 = vcmp.eq.s32.totalorder %v4756, %v442
    %vm4821 = vcmp.eq.s32.totalorder %v4759, %v442
    %vm4822 = vcmp.eq.s32.totalorder %v4762, %v442
    %vm4823 = vcmp.eq.s32.totalorder %v4765, %v442
    %vm4824 = vcmp.eq.s32.totalorder %v4768, %v442
    %vm4825 = vcmp.eq.s32.totalorder %v4771, %v442
    %vm4826 = vcmp.eq.s32.totalorder %v4774, %v442
    %vm4827 = vcmp.eq.s32.totalorder %v4777, %v442
    %vm4828 = vcmp.eq.s32.totalorder %v4780, %v442
    %vm4829 = vcmp.eq.s32.totalorder %v4783, %v442
    %vm4830 = vcmp.eq.s32.totalorder %v4786, %v442
    %vm4831 = vcmp.eq.s32.totalorder %v4789, %v442
    %vm4832 = vcmp.eq.s32.totalorder %v4792, %v442
    %vm4833 = vcmp.eq.s32.totalorder %v4795, %v442
    %vm4834 = vcmp.eq.s32.totalorder %v4798, %v442
    %vm4835 = vcmp.eq.s32.totalorder %v4801, %v442
    %vm4836 = vcmp.eq.s32.totalorder %v4804, %v442
    %v4837 = vsel %vm4805, 1.0, 0.0
    %v4838 = vsel %vm4806, 1.0, 0.0
    %v4839 = vsel %vm4807, 1.0, 0.0
    %v4840 = vsel %vm4808, 1.0, 0.0
    %v4841 = vsel %vm4809, 1.0, 0.0
    %v4842 = vsel %vm4810, 1.0, 0.0
    %v4843 = vsel %vm4811, 1.0, 0.0
    %v4844 = vsel %vm4812, 1.0, 0.0
    %v4845 = vsel %vm4813, 1.0, 0.0
    %v4846 = vsel %vm4814, 1.0, 0.0
    %v4847 = vsel %vm4815, 1.0, 0.0
    %v4848 = vsel %vm4816, 1.0, 0.0
    %v4849 = vsel %vm4817, 1.0, 0.0
    %v4850 = vsel %vm4818, 1.0, 0.0
    %v4851 = vsel %vm4819, 1.0, 0.0
    %v4852 = vsel %vm4820, 1.0, 0.0
    %v4853 = vsel %vm4821, 1.0, 0.0
    %v4854 = vsel %vm4822, 1.0, 0.0
    %v4855 = vsel %vm4823, 1.0, 0.0
    %v4856 = vsel %vm4824, 1.0, 0.0
    %v4857 = vsel %vm4825, 1.0, 0.0
    %v4858 = vsel %vm4826, 1.0, 0.0
    %v4859 = vsel %vm4827, 1.0, 0.0
    %v4860 = vsel %vm4828, 1.0, 0.0
    %v4861 = vsel %vm4829, 1.0, 0.0
    %v4862 = vsel %vm4830, 1.0, 0.0
    %v4863 = vsel %vm4831, 1.0, 0.0
    %v4864 = vsel %vm4832, 1.0, 0.0
    %v4865 = vsel %vm4833, 1.0, 0.0
    %v4866 = vsel %vm4834, 1.0, 0.0
    %v4867 = vsel %vm4835, 1.0, 0.0
    %v4868 = vsel %vm4836, 1.0, 0.0
    %s4869 = scalar_lea.vmem %s3, 384
    %v4870 = vld [vmem:[%s4869] sm:$0xff]
    %v4871 = vld [vmem:[%s4869 + $0x8] sm:$0xff]
    %v4872 = vld [vmem:[%s4869 + $0x10] sm:$0xff]
    %v4873 = vld [vmem:[%s4869 + $0x18] sm:$0xff]
    %v4874 = vld [vmem:[%s4869 + $0x20] sm:$0xff]
    %v4875 = vld [vmem:[%s4869 + $0x28] sm:$0xff]
    %v4876 = vld [vmem:[%s4869 + $0x30] sm:$0xff]
    %v4877 = vld [vmem:[%s4869 + $0x38] sm:$0xff]
    %v4878 = vld [vmem:[%s4869 + $0x40] sm:$0xff]
    %v4879 = vld [vmem:[%s4869 + $0x48] sm:$0xff]
    %v4880 = vld [vmem:[%s4869 + $0x50] sm:$0xff]
    %v4881 = vld [vmem:[%s4869 + $0x58] sm:$0xff]
    %v4882 = vld [vmem:[%s4869 + $0x60] sm:$0xff]
    %v4883 = vld [vmem:[%s4869 + $0x68] sm:$0xff]
    %v4884 = vld [vmem:[%s4869 + $0x70] sm:$0xff]
    %v4885 = vld [vmem:[%s4869 + $0x78] sm:$0xff]
    %v4886 = vld [vmem:[%s4] sm:$0xff]
    %v4887 = vld [vmem:[%s4 + $0x8] sm:$0xff]
    %4890 = vrot.lane.b32.xlu0 %v4886, 32
    %v4891 = vpop.permute.xlu0 %4890
    %4892 = vrot.lane.b32.xlu0 %v4887, 32
    %v4893 = vpop.permute.xlu0 %4892
    %4896 = vmatprep.subr.mxu0 0.0
    %4897 = vmatpush1.msra.mxu0 %v4891
    %4898 = vmatprep.subr.mxu0 0.0
    %4899 = vmatpush1.msra.mxu0 %v4893
    %4900 = vmatprep.subr.mxu0 0.0
    %4901 = vmatpush1.msra.mxu0 0.0
    %4902 = vmatprep.subr.mxu0 0.0
    %4903 = vmatpush1.msra.mxu0 0.0
    %4904 = vmatprep.subr.mxu0 0.0
    %4905 = vmatpush1.msra.mxu0 0.0
    %4906 = vmatprep.subr.mxu0 0.0
    %4907 = vmatpush1.msra.mxu0 0.0
    %4908 = vmatprep.subr.mxu0 0.0
    %4909 = vmatpush1.msra.mxu0 0.0
    %4910 = vmatprep.subr.mxu0 0.0
    %4911 = vmatpush1.msra.mxu0 0.0
    %4912 = vmatprep.subr.mxu0 0.0
    %4913 = vmatpush1.msra.mxu0 0.0
    %4914 = vmatprep.subr.mxu0 0.0
    %4915 = vmatpush1.msra.mxu0 0.0
    %4916 = vmatprep.subr.mxu0 0.0
    %4917 = vmatpush1.msra.mxu0 0.0
    %4918 = vmatprep.subr.mxu0 0.0
    %4919 = vmatpush1.msra.mxu0 0.0
    %4920 = vmatprep.subr.mxu0 0.0
    %4921 = vmatpush1.msra.mxu0 0.0
    %4922 = vmatprep.subr.mxu0 0.0
    %4923 = vmatpush1.msra.mxu0 0.0
    %4924 = vmatprep.subr.mxu0 0.0
    %4925 = vmatpush1.msra.mxu0 0.0
    %4926 = vmatprep.subr.mxu0 0.0
    %4927 = vmatpush1.msra.mxu0 0.0
    %4928 = vmatprep.subr.mxu0 0.0
    %4929 = vmatpush1.msra.mxu0 0.0
    %4930 = vmatprep.subr.mxu0 0.0
    %4931 = vmatpush1.msra.mxu0 0.0
    %4932 = vmatprep.subr.mxu0 0.0
    %4933 = vmatpush1.msra.mxu0 0.0
    %4934 = vmatprep.subr.mxu0 0.0
    %4935 = vmatpush1.msra.mxu0 0.0
    %4936 = vmatprep.subr.mxu0 0.0
    %4937 = vmatpush1.msra.mxu0 0.0
    %4938 = vmatprep.subr.mxu0 0.0
    %4939 = vmatpush1.msra.mxu0 0.0
    %4940 = vmatprep.subr.mxu0 0.0
    %4941 = vmatpush1.msra.mxu0 0.0
    %4942 = vmatprep.subr.mxu0 0.0
    %4943 = vmatpush1.msra.mxu0 0.0
    %4944 = vmatprep.subr.mxu0 0.0
    %4945 = vmatpush1.msra.mxu0 0.0
    %4946 = vmatprep.subr.mxu0 0.0
    %4947 = vmatpush1.msra.mxu0 0.0
    %4948 = vmatprep.subr.mxu0 0.0
    %4949 = vmatpush1.msra.mxu0 0.0
    %4950 = vmatprep.subr.mxu0 0.0
    %4951 = vmatpush1.msra.mxu0 0.0
    %4952 = vmatprep.subr.mxu0 0.0
    %4953 = vmatpush1.msra.mxu0 0.0
    %4954 = vmatprep.subr.mxu0 0.0
    %4955 = vmatpush1.msra.mxu0 0.0
    %4956 = vmatprep.subr.mxu0 0.0
    %4957 = vmatpush1.msra.mxu0 0.0
    %4958 = vmatprep.subr.mxu0 0.0
    %4959 = vmatpush1.msra.mxu0 0.0
    %4960 = vmatprep.mubr.f32.mxu0 0.0
    %4961 = vmatmul.mubr.f32.gmra.mrb[0].mxu0 %v1245
    %v4962 = vpop.f32.mrb[0].mxu0
    %v4963 = vadd.f32 0.0, %v4962
    %v4964 = vpop.f32.mrb[0].mxu0
    %4965 = vmatprep.mubr.f32.mxu0 0.0
    %4966 = vmatmul.mubr.f32.gmra.mrb[0].mxu0 %v1248
    %v4967 = vpop.f32.mrb[0].mxu0
    %v4968 = vadd.f32 0.0, %v4967
    %v4969 = vpop.f32.mrb[0].mxu0
    %4970 = vmatprep.mubr.f32.mxu0 0.0
    %4971 = vmatmul.mubr.f32.gmra.mrb[0].mxu0 %v1251
    %v4972 = vpop.f32.mrb[0].mxu0
    %v4973 = vadd.f32 0.0, %v4972
    %v4974 = vpop.f32.mrb[0].mxu0
    %4975 = vmatprep.mubr.f32.mxu0 0.0
    %4976 = vmatmul.mubr.f32.gmra.mrb[0].mxu0 %v1254
    %v4977 = vpop.f32.mrb[0].mxu0
    %v4978 = vadd.f32 0.0, %v4977
    %v4979 = vpop.f32.mrb[0].mxu0
    %4980 = vmatprep.mubr.f32.mxu0 0.0
    %4981 = vmatmul.mubr.f32.gmra.mrb[0].mxu0 %v1257
    %v4982 = vpop.f32.mrb[0].mxu0
    %v4983 = vadd.f32 0.0, %v4982
    %v4984 = vpop.f32.mrb[0].mxu0
    %4985 = vmatprep.mubr.f32.mxu0 0.0
    %4986 = vmatmul.mubr.f32.gmra.mrb[0].mxu0 %v1260
    %v4987 = vpop.f32.mrb[0].mxu0
    %v4988 = vadd.f32 0.0, %v4987
    %v4989 = vpop.f32.mrb[0].mxu0
    %4990 = vmatprep.mubr.f32.mxu0 0.0
    %4991 = vmatmul.mubr.f32.gmra.mrb[0].mxu0 %v1263
    %v4992 = vpop.f32.mrb[0].mxu0
    %v4993 = vadd.f32 0.0, %v4992
    %v4994 = vpop.f32.mrb[0].mxu0
    %4995 = vmatprep.mubr.f32.mxu0 0.0
    %4996 = vmatmul.mubr.f32.gmra.mrb[0].mxu0 %v1266
    %v4997 = vpop.f32.mrb[0].mxu0
    %v4998 = vadd.f32 0.0, %v4997
    %v4999 = vpop.f32.mrb[0].mxu0
    %5000 = vmatprep.mubr.f32.mxu0 0.0
    %5001 = vmatmul.mubr.f32.gmra.mrb[0].mxu0 %v1269
    %v5002 = vpop.f32.mrb[0].mxu0
    %v5003 = vadd.f32 0.0, %v5002
    %v5004 = vpop.f32.mrb[0].mxu0
    %5005 = vmatprep.mubr.f32.mxu0 0.0
    %5006 = vmatmul.mubr.f32.gmra.mrb[0].mxu0 %v1272
    %v5007 = vpop.f32.mrb[0].mxu0
    %v5008 = vadd.f32 0.0, %v5007
    %v5009 = vpop.f32.mrb[0].mxu0
    %5010 = vmatprep.mubr.f32.mxu0 0.0
    %5011 = vmatmul.mubr.f32.gmra.mrb[0].mxu0 %v1275
    %v5012 = vpop.f32.mrb[0].mxu0
    %v5013 = vadd.f32 0.0, %v5012
    %v5014 = vpop.f32.mrb[0].mxu0
    %5015 = vmatprep.mubr.f32.mxu0 0.0
    %5016 = vmatmul.mubr.f32.gmra.mrb[0].mxu0 %v1278
    %v5017 = vpop.f32.mrb[0].mxu0
    %v5018 = vadd.f32 0.0, %v5017
    %v5019 = vpop.f32.mrb[0].mxu0
    %5020 = vmatprep.mubr.f32.mxu0 0.0
    %5021 = vmatmul.mubr.f32.gmra.mrb[0].mxu0 %v1281
    %v5022 = vpop.f32.mrb[0].mxu0
    %v5023 = vadd.f32 0.0, %v5022
    %v5024 = vpop.f32.mrb[0].mxu0
    %5025 = vmatprep.mubr.f32.mxu0 0.0
    %5026 = vmatmul.mubr.f32.gmra.mrb[0].mxu0 %v1284
    %v5027 = vpop.f32.mrb[0].mxu0
    %v5028 = vadd.f32 0.0, %v5027
    %v5029 = vpop.f32.mrb[0].mxu0
    %5030 = vmatprep.mubr.f32.mxu0 0.0
    %5031 = vmatmul.mubr.f32.gmra.mrb[0].mxu0 %v1287
    %v5032 = vpop.f32.mrb[0].mxu0
    %v5033 = vadd.f32 0.0, %v5032
    %v5034 = vpop.f32.mrb[0].mxu0
    %5035 = vmatprep.mubr.f32.mxu0 0.0
    %5036 = vmatmul.mubr.f32.gmra.mrb[0].mxu0 %v1290
    %v5037 = vpop.f32.mrb[0].mxu0
    %v5038 = vadd.f32 0.0, %v5037
    %v5039 = vpop.f32.mrb[0].mxu0
    %5040 = vmatprep.mubr.f32.mxu0 0.0
    %5041 = vmatmul.mubr.f32.gmra.mrb[0].mxu0 %v1293
    %v5042 = vpop.f32.mrb[0].mxu0
    %v5043 = vadd.f32 0.0, %v5042
    %v5044 = vpop.f32.mrb[0].mxu0
    %5045 = vmatprep.mubr.f32.mxu0 0.0
    %5046 = vmatmul.mubr.f32.gmra.mrb[0].mxu0 %v1296
    %v5047 = vpop.f32.mrb[0].mxu0
    %v5048 = vadd.f32 0.0, %v5047
    %v5049 = vpop.f32.mrb[0].mxu0
    %5050 = vmatprep.mubr.f32.mxu0 0.0
    %5051 = vmatmul.mubr.f32.gmra.mrb[0].mxu0 %v1299
    %v5052 = vpop.f32.mrb[0].mxu0
    %v5053 = vadd.f32 0.0, %v5052
    %v5054 = vpop.f32.mrb[0].mxu0
    %5055 = vmatprep.mubr.f32.mxu0 0.0
    %5056 = vmatmul.mubr.f32.gmra.mrb[0].mxu0 %v1302
    %v5057 = vpop.f32.mrb[0].mxu0
    %v5058 = vadd.f32 0.0, %v5057
    %v5059 = vpop.f32.mrb[0].mxu0
    %5060 = vmatprep.mubr.f32.mxu0 0.0
    %5061 = vmatmul.mubr.f32.gmra.mrb[0].mxu0 %v1305
    %v5062 = vpop.f32.mrb[0].mxu0
    %v5063 = vadd.f32 0.0, %v5062
    %v5064 = vpop.f32.mrb[0].mxu0
    %5065 = vmatprep.mubr.f32.mxu0 0.0
    %5066 = vmatmul.mubr.f32.gmra.mrb[0].mxu0 %v1308
    %v5067 = vpop.f32.mrb[0].mxu0
    %v5068 = vadd.f32 0.0, %v5067
    %v5069 = vpop.f32.mrb[0].mxu0
    %5070 = vmatprep.mubr.f32.mxu0 0.0
    %5071 = vmatmul.mubr.f32.gmra.mrb[0].mxu0 %v1311
    %v5072 = vpop.f32.mrb[0].mxu0
    %v5073 = vadd.f32 0.0, %v5072
    %v5074 = vpop.f32.mrb[0].mxu0
    %5075 = vmatprep.mubr.f32.mxu0 0.0
    %5076 = vmatmul.mubr.f32.gmra.mrb[0].mxu0 %v1314
    %v5077 = vpop.f32.mrb[0].mxu0
    %v5078 = vadd.f32 0.0, %v5077
    %v5079 = vpop.f32.mrb[0].mxu0
    %5080 = vmatprep.mubr.f32.mxu0 0.0
    %5081 = vmatmul.mubr.f32.gmra.mrb[0].mxu0 %v1317
    %v5082 = vpop.f32.mrb[0].mxu0
    %v5083 = vadd.f32 0.0, %v5082
    %v5084 = vpop.f32.mrb[0].mxu0
    %5085 = vmatprep.mubr.f32.mxu0 0.0
    %5086 = vmatmul.mubr.f32.gmra.mrb[0].mxu0 %v1320
    %v5087 = vpop.f32.mrb[0].mxu0
    %v5088 = vadd.f32 0.0, %v5087
    %v5089 = vpop.f32.mrb[0].mxu0
    %5090 = vmatprep.mubr.f32.mxu0 0.0
    %5091 = vmatmul.mubr.f32.gmra.mrb[0].mxu0 %v1323
    %v5092 = vpop.f32.mrb[0].mxu0
    %v5093 = vadd.f32 0.0, %v5092
    %v5094 = vpop.f32.mrb[0].mxu0
    %5095 = vmatprep.mubr.f32.mxu0 0.0
    %5096 = vmatmul.mubr.f32.gmra.mrb[0].mxu0 %v1326
    %v5097 = vpop.f32.mrb[0].mxu0
    %v5098 = vadd.f32 0.0, %v5097
    %v5099 = vpop.f32.mrb[0].mxu0
    %5100 = vmatprep.mubr.f32.mxu0 0.0
    %5101 = vmatmul.mubr.f32.gmra.mrb[0].mxu0 %v1329
    %v5102 = vpop.f32.mrb[0].mxu0
    %v5103 = vadd.f32 0.0, %v5102
    %v5104 = vpop.f32.mrb[0].mxu0
    %5105 = vmatprep.mubr.f32.mxu0 0.0
    %5106 = vmatmul.mubr.f32.gmra.mrb[0].mxu0 %v1332
    %v5107 = vpop.f32.mrb[0].mxu0
    %v5108 = vadd.f32 0.0, %v5107
    %v5109 = vpop.f32.mrb[0].mxu0
    %5110 = vmatprep.mubr.f32.mxu0 0.0
    %5111 = vmatmul.mubr.f32.gmra.mrb[0].mxu0 %v1335
    %v5112 = vpop.f32.mrb[0].mxu0
    %v5113 = vadd.f32 0.0, %v5112
    %v5114 = vpop.f32.mrb[0].mxu0
    %5115 = vmatprep.mubr.f32.mxu0 0.0
    %5116 = vmatmul.mubr.f32.gmra.mrb[0].mxu0 %v1338
    %v5117 = vpop.f32.mrb[0].mxu0
    %v5118 = vadd.f32 0.0, %v5117
    %v5119 = vpop.f32.mrb[0].mxu0
    %5120 = vdwg.mxu0
    %5121 = vmatprep.subr.mxu0 0.0
    %5122 = vmatpush1.msra.mxu0 %v4870
    %5123 = vmatprep.subr.mxu0 0.0
    %5124 = vmatpush1.msra.mxu0 %v4871
    %5125 = vmatprep.subr.mxu0 0.0
    %5126 = vmatpush1.msra.mxu0 %v4872
    %5127 = vmatprep.subr.mxu0 0.0
    %5128 = vmatpush1.msra.mxu0 %v4873
    %5129 = vmatprep.subr.mxu0 0.0
    %5130 = vmatpush1.msra.mxu0 %v4874
    %5131 = vmatprep.subr.mxu0 0.0
    %5132 = vmatpush1.msra.mxu0 %v4875
    %5133 = vmatprep.subr.mxu0 0.0
    %5134 = vmatpush1.msra.mxu0 %v4876
    %5135 = vmatprep.subr.mxu0 0.0
    %5136 = vmatpush1.msra.mxu0 %v4877
    %5137 = vmatprep.subr.mxu0 0.0
    %5138 = vmatpush1.msra.mxu0 %v4878
    %5139 = vmatprep.subr.mxu0 0.0
    %5140 = vmatpush1.msra.mxu0 %v4879
    %5141 = vmatprep.subr.mxu0 0.0
    %5142 = vmatpush1.msra.mxu0 %v4880
    %5143 = vmatprep.subr.mxu0 0.0
    %5144 = vmatpush1.msra.mxu0 %v4881
    %5145 = vmatprep.subr.mxu0 0.0
    %5146 = vmatpush1.msra.mxu0 %v4882
    %5147 = vmatprep.subr.mxu0 0.0
    %5148 = vmatpush1.msra.mxu0 %v4883
    %5149 = vmatprep.subr.mxu0 0.0
    %5150 = vmatpush1.msra.mxu0 %v4884
    %5151 = vmatprep.subr.mxu0 0.0
    %5152 = vmatpush1.msra.mxu0 %v4885
    %5153 = vmatprep.subr.mxu0 0.0
    %5154 = vmatpush1.msra.mxu0 0.0
    %5155 = vmatprep.subr.mxu0 0.0
    %5156 = vmatpush1.msra.mxu0 0.0
    %5157 = vmatprep.subr.mxu0 0.0
    %5158 = vmatpush1.msra.mxu0 0.0
    %5159 = vmatprep.subr.mxu0 0.0
    %5160 = vmatpush1.msra.mxu0 0.0
    %5161 = vmatprep.subr.mxu0 0.0
    %5162 = vmatpush1.msra.mxu0 0.0
    %5163 = vmatprep.subr.mxu0 0.0
    %5164 = vmatpush1.msra.mxu0 0.0
    %5165 = vmatprep.subr.mxu0 0.0
    %5166 = vmatpush1.msra.mxu0 0.0
    %5167 = vmatprep.subr.mxu0 0.0
    %5168 = vmatpush1.msra.mxu0 0.0
    %5169 = vmatprep.subr.mxu0 0.0
    %5170 = vmatpush1.msra.mxu0 0.0
    %5171 = vmatprep.subr.mxu0 0.0
    %5172 = vmatpush1.msra.mxu0 0.0
    %5173 = vmatprep.subr.mxu0 0.0
    %5174 = vmatpush1.msra.mxu0 0.0
    %5175 = vmatprep.subr.mxu0 0.0
    %5176 = vmatpush1.msra.mxu0 0.0
    %5177 = vmatprep.subr.mxu0 0.0
    %5178 = vmatpush1.msra.mxu0 0.0
    %5179 = vmatprep.subr.mxu0 0.0
    %5180 = vmatpush1.msra.mxu0 0.0
    %5181 = vmatprep.subr.mxu0 0.0
    %5182 = vmatpush1.msra.mxu0 0.0
    %5183 = vmatprep.subr.mxu0 0.0
    %5184 = vmatpush1.msra.mxu0 0.0
    %5185 = vmatprep.mubr.f32.mxu0 0.0
    %5186 = vmatmul.mubr.f32.gmra.mrb[0].mxu0 %v4837
    %v5187 = vpop.f32.mrb[0].mxu0
    %v5188 = vadd.f32 %v4963, %v5187
    %v5189 = vpop.f32.mrb[0].mxu0
    %5190 = vmatprep.mubr.f32.mxu0 0.0
    %5191 = vmatmul.mubr.f32.gmra.mrb[0].mxu0 %v4838
    %v5192 = vpop.f32.mrb[0].mxu0
    %v5193 = vadd.f32 %v4968, %v5192
    %v5194 = vpop.f32.mrb[0].mxu0
    %5195 = vmatprep.mubr.f32.mxu0 0.0
    %5196 = vmatmul.mubr.f32.gmra.mrb[0].mxu0 %v4839
    %v5197 = vpop.f32.mrb[0].mxu0
    %v5198 = vadd.f32 %v4973, %v5197
    %v5199 = vpop.f32.mrb[0].mxu0
    %5200 = vmatprep.mubr.f32.mxu0 0.0
    %5201 = vmatmul.mubr.f32.gmra.mrb[0].mxu0 %v4840
    %v5202 = vpop.f32.mrb[0].mxu0
    %v5203 = vadd.f32 %v4978, %v5202
    %v5204 = vpop.f32.mrb[0].mxu0
    %5205 = vmatprep.mubr.f32.mxu0 0.0
    %5206 = vmatmul.mubr.f32.gmra.mrb[0].mxu0 %v4841
    %v5207 = vpop.f32.mrb[0].mxu0
    %v5208 = vadd.f32 %v4983, %v5207
    %v5209 = vpop.f32.mrb[0].mxu0
    %5210 = vmatprep.mubr.f32.mxu0 0.0
    %5211 = vmatmul.mubr.f32.gmra.mrb[0].mxu0 %v4842
    %v5212 = vpop.f32.mrb[0].mxu0
    %v5213 = vadd.f32 %v4988, %v5212
    %v5214 = vpop.f32.mrb[0].mxu0
    %5215 = vmatprep.mubr.f32.mxu0 0.0
    %5216 = vmatmul.mubr.f32.gmra.mrb[0].mxu0 %v4843
    %v5217 = vpop.f32.mrb[0].mxu0
    %v5218 = vadd.f32 %v4993, %v5217
    %v5219 = vpop.f32.mrb[0].mxu0
    %5220 = vmatprep.mubr.f32.mxu0 0.0
    %5221 = vmatmul.mubr.f32.gmra.mrb[0].mxu0 %v4844
    %v5222 = vpop.f32.mrb[0].mxu0
    %v5223 = vadd.f32 %v4998, %v5222
    %v5224 = vpop.f32.mrb[0].mxu0
    %5225 = vmatprep.mubr.f32.mxu0 0.0
    %5226 = vmatmul.mubr.f32.gmra.mrb[0].mxu0 %v4845
    %v5227 = vpop.f32.mrb[0].mxu0
    %v5228 = vadd.f32 %v5003, %v5227
    %v5229 = vpop.f32.mrb[0].mxu0
    %5230 = vmatprep.mubr.f32.mxu0 0.0
    %5231 = vmatmul.mubr.f32.gmra.mrb[0].mxu0 %v4846
    %v5232 = vpop.f32.mrb[0].mxu0
    %v5233 = vadd.f32 %v5008, %v5232
    %v5234 = vpop.f32.mrb[0].mxu0
    %5235 = vmatprep.mubr.f32.mxu0 0.0
    %5236 = vmatmul.mubr.f32.gmra.mrb[0].mxu0 %v4847
    %v5237 = vpop.f32.mrb[0].mxu0
    %v5238 = vadd.f32 %v5013, %v5237
    %v5239 = vpop.f32.mrb[0].mxu0
    %5240 = vmatprep.mubr.f32.mxu0 0.0
    %5241 = vmatmul.mubr.f32.gmra.mrb[0].mxu0 %v4848
    %v5242 = vpop.f32.mrb[0].mxu0
    %v5243 = vadd.f32 %v5018, %v5242
    %v5244 = vpop.f32.mrb[0].mxu0
    %5245 = vmatprep.mubr.f32.mxu0 0.0
    %5246 = vmatmul.mubr.f32.gmra.mrb[0].mxu0 %v4849
    %v5247 = vpop.f32.mrb[0].mxu0
    %v5248 = vadd.f32 %v5023, %v5247
    %v5249 = vpop.f32.mrb[0].mxu0
    %5250 = vmatprep.mubr.f32.mxu0 0.0
    %5251 = vmatmul.mubr.f32.gmra.mrb[0].mxu0 %v4850
    %v5252 = vpop.f32.mrb[0].mxu0
    %v5253 = vadd.f32 %v5028, %v5252
    %v5254 = vpop.f32.mrb[0].mxu0
    %5255 = vmatprep.mubr.f32.mxu0 0.0
    %5256 = vmatmul.mubr.f32.gmra.mrb[0].mxu0 %v4851
    %v5257 = vpop.f32.mrb[0].mxu0
    %v5258 = vadd.f32 %v5033, %v5257
    %v5259 = vpop.f32.mrb[0].mxu0
    %5260 = vmatprep.mubr.f32.mxu0 0.0
    %5261 = vmatmul.mubr.f32.gmra.mrb[0].mxu0 %v4852
    %v5262 = vpop.f32.mrb[0].mxu0
    %v5263 = vadd.f32 %v5038, %v5262
    %v5264 = vpop.f32.mrb[0].mxu0
    %5265 = vmatprep.mubr.f32.mxu0 0.0
    %5266 = vmatmul.mubr.f32.gmra.mrb[0].mxu0 %v4853
    %v5267 = vpop.f32.mrb[0].mxu0
    %v5268 = vadd.f32 %v5043, %v5267
    %v5269 = vpop.f32.mrb[0].mxu0
    %5270 = vmatprep.mubr.f32.mxu0 0.0
    %5271 = vmatmul.mubr.f32.gmra.mrb[0].mxu0 %v4854
    %v5272 = vpop.f32.mrb[0].mxu0
    %v5273 = vadd.f32 %v5048, %v5272
    %v5274 = vpop.f32.mrb[0].mxu0
    %5275 = vmatprep.mubr.f32.mxu0 0.0
    %5276 = vmatmul.mubr.f32.gmra.mrb[0].mxu0 %v4855
    %v5277 = vpop.f32.mrb[0].mxu0
    %v5278 = vadd.f32 %v5053, %v5277
    %v5279 = vpop.f32.mrb[0].mxu0
    %5280 = vmatprep.mubr.f32.mxu0 0.0
    %5281 = vmatmul.mubr.f32.gmra.mrb[0].mxu0 %v4856
    %v5282 = vpop.f32.mrb[0].mxu0
    %v5283 = vadd.f32 %v5058, %v5282
    %v5284 = vpop.f32.mrb[0].mxu0
    %5285 = vmatprep.mubr.f32.mxu0 0.0
    %5286 = vmatmul.mubr.f32.gmra.mrb[0].mxu0 %v4857
    %v5287 = vpop.f32.mrb[0].mxu0
    %v5288 = vadd.f32 %v5063, %v5287
    %v5289 = vpop.f32.mrb[0].mxu0
    %5290 = vmatprep.mubr.f32.mxu0 0.0
    %5291 = vmatmul.mubr.f32.gmra.mrb[0].mxu0 %v4858
    %v5292 = vpop.f32.mrb[0].mxu0
    %v5293 = vadd.f32 %v5068, %v5292
    %v5294 = vpop.f32.mrb[0].mxu0
    %5295 = vmatprep.mubr.f32.mxu0 0.0
    %5296 = vmatmul.mubr.f32.gmra.mrb[0].mxu0 %v4859
    %v5297 = vpop.f32.mrb[0].mxu0
    %v5298 = vadd.f32 %v5073, %v5297
    %v5299 = vpop.f32.mrb[0].mxu0
    %5300 = vmatprep.mubr.f32.mxu0 0.0
    %5301 = vmatmul.mubr.f32.gmra.mrb[0].mxu0 %v4860
    %v5302 = vpop.f32.mrb[0].mxu0
    %v5303 = vadd.f32 %v5078, %v5302
    %v5304 = vpop.f32.mrb[0].mxu0
    %5305 = vmatprep.mubr.f32.mxu0 0.0
    %5306 = vmatmul.mubr.f32.gmra.mrb[0].mxu0 %v4861
    %v5307 = vpop.f32.mrb[0].mxu0
    %v5308 = vadd.f32 %v5083, %v5307
    %v5309 = vpop.f32.mrb[0].mxu0
    %5310 = vmatprep.mubr.f32.mxu0 0.0
    %5311 = vmatmul.mubr.f32.gmra.mrb[0].mxu0 %v4862
    %v5312 = vpop.f32.mrb[0].mxu0
    %v5313 = vadd.f32 %v5088, %v5312
    %v5314 = vpop.f32.mrb[0].mxu0
    %5315 = vmatprep.mubr.f32.mxu0 0.0
    %5316 = vmatmul.mubr.f32.gmra.mrb[0].mxu0 %v4863
    %v5317 = vpop.f32.mrb[0].mxu0
    %v5318 = vadd.f32 %v5093, %v5317
    %v5319 = vpop.f32.mrb[0].mxu0
    %5320 = vmatprep.mubr.f32.mxu0 0.0
    %5321 = vmatmul.mubr.f32.gmra.mrb[0].mxu0 %v4864
    %v5322 = vpop.f32.mrb[0].mxu0
    %v5323 = vadd.f32 %v5098, %v5322
    %v5324 = vpop.f32.mrb[0].mxu0
    %5325 = vmatprep.mubr.f32.mxu0 0.0
    %5326 = vmatmul.mubr.f32.gmra.mrb[0].mxu0 %v4865
    %v5327 = vpop.f32.mrb[0].mxu0
    %v5328 = vadd.f32 %v5103, %v5327
    %v5329 = vpop.f32.mrb[0].mxu0
    %5330 = vmatprep.mubr.f32.mxu0 0.0
    %5331 = vmatmul.mubr.f32.gmra.mrb[0].mxu0 %v4866
    %v5332 = vpop.f32.mrb[0].mxu0
    %v5333 = vadd.f32 %v5108, %v5332
    %v5334 = vpop.f32.mrb[0].mxu0
    %5335 = vmatprep.mubr.f32.mxu0 0.0
    %5336 = vmatmul.mubr.f32.gmra.mrb[0].mxu0 %v4867
    %v5337 = vpop.f32.mrb[0].mxu0
    %v5338 = vadd.f32 %v5113, %v5337
    %v5339 = vpop.f32.mrb[0].mxu0
    %5340 = vmatprep.mubr.f32.mxu0 0.0
    %5341 = vmatmul.mubr.f32.gmra.mrb[0].mxu0 %v4868
    %v5342 = vpop.f32.mrb[0].mxu0
    %v5343 = vadd.f32 %v5118, %v5342
    %v5344 = vpop.f32.mrb[0].mxu0
    %5345 = vdwg.mxu0
    %5378 = vrot.lane.b32.xlu0 %v5188, 96
    %v5379 = vpop.permute.xlu0 %5378
    %5380 = vrot.lane.b32.xlu0 %v5193, 96
    %v5381 = vpop.permute.xlu0 %5380
    %5382 = vrot.lane.b32.xlu0 %v5198, 96
    %v5383 = vpop.permute.xlu0 %5382
    %5384 = vrot.lane.b32.xlu0 %v5203, 96
    %v5385 = vpop.permute.xlu0 %5384
    %5386 = vrot.lane.b32.xlu0 %v5208, 96
    %v5387 = vpop.permute.xlu0 %5386
    %5388 = vrot.lane.b32.xlu0 %v5213, 96
    %v5389 = vpop.permute.xlu0 %5388
    %5390 = vrot.lane.b32.xlu0 %v5218, 96
    %v5391 = vpop.permute.xlu0 %5390
    %5392 = vrot.lane.b32.xlu0 %v5223, 96
    %v5393 = vpop.permute.xlu0 %5392
    %5394 = vrot.lane.b32.xlu0 %v5228, 96
    %v5395 = vpop.permute.xlu0 %5394
    %5396 = vrot.lane.b32.xlu0 %v5233, 96
    %v5397 = vpop.permute.xlu0 %5396
    %5398 = vrot.lane.b32.xlu0 %v5238, 96
    %v5399 = vpop.permute.xlu0 %5398
    %5400 = vrot.lane.b32.xlu0 %v5243, 96
    %v5401 = vpop.permute.xlu0 %5400
    %5402 = vrot.lane.b32.xlu0 %v5248, 96
    %v5403 = vpop.permute.xlu0 %5402
    %5404 = vrot.lane.b32.xlu0 %v5253, 96
    %v5405 = vpop.permute.xlu0 %5404
    %5406 = vrot.lane.b32.xlu0 %v5258, 96
    %v5407 = vpop.permute.xlu0 %5406
    %5408 = vrot.lane.b32.xlu0 %v5263, 96
    %v5409 = vpop.permute.xlu0 %5408
    %5410 = vrot.lane.b32.xlu0 %v5268, 96
    %v5411 = vpop.permute.xlu0 %5410
    %5412 = vrot.lane.b32.xlu0 %v5273, 96
    %v5413 = vpop.permute.xlu0 %5412
    %5414 = vrot.lane.b32.xlu0 %v5278, 96
    %v5415 = vpop.permute.xlu0 %5414
    %5416 = vrot.lane.b32.xlu0 %v5283, 96
    %v5417 = vpop.permute.xlu0 %5416
    %5418 = vrot.lane.b32.xlu0 %v5288, 96
    %v5419 = vpop.permute.xlu0 %5418
    %5420 = vrot.lane.b32.xlu0 %v5293, 96
    %v5421 = vpop.permute.xlu0 %5420
    %5422 = vrot.lane.b32.xlu0 %v5298, 96
    %v5423 = vpop.permute.xlu0 %5422
    %5424 = vrot.lane.b32.xlu0 %v5303, 96
    %v5425 = vpop.permute.xlu0 %5424
    %5426 = vrot.lane.b32.xlu0 %v5308, 96
    %v5427 = vpop.permute.xlu0 %5426
    %5428 = vrot.lane.b32.xlu0 %v5313, 96
    %v5429 = vpop.permute.xlu0 %5428
    %5430 = vrot.lane.b32.xlu0 %v5318, 96
    %v5431 = vpop.permute.xlu0 %5430
    %5432 = vrot.lane.b32.xlu0 %v5323, 96
    %v5433 = vpop.permute.xlu0 %5432
    %5434 = vrot.lane.b32.xlu0 %v5328, 96
    %v5435 = vpop.permute.xlu0 %5434
    %5436 = vrot.lane.b32.xlu0 %v5333, 96
    %v5437 = vpop.permute.xlu0 %5436
    %5438 = vrot.lane.b32.xlu0 %v5338, 96
    %v5439 = vpop.permute.xlu0 %5438
    %5440 = vrot.lane.b32.xlu0 %v5343, 96
    %v5441 = vpop.permute.xlu0 %5440
    %vm5474 = vcmask 1048320
    %5475 = vst.msk [vmem:[#allocation4] sm:$0xff] %vm5474, %v5379
    %5476 = vst.msk [vmem:[#allocation4 + $0x8] sm:$0xff] %vm5474, %v5381
    %5477 = vst.msk [vmem:[#allocation4 + $0x10] sm:$0xff] %vm5474, %v5383
    %5478 = vst.msk [vmem:[#allocation4 + $0x18] sm:$0xff] %vm5474, %v5385
    %5479 = vst.msk [vmem:[#allocation4 + $0x20] sm:$0xff] %vm5474, %v5387
    %5480 = vst.msk [vmem:[#allocation4 + $0x28] sm:$0xff] %vm5474, %v5389
    %5481 = vst.msk [vmem:[#allocation4 + $0x30] sm:$0xff] %vm5474, %v5391
    %5482 = vst.msk [vmem:[#allocation4 + $0x38] sm:$0xff] %vm5474, %v5393
    %5483 = vst.msk [vmem:[#allocation4 + $0x40] sm:$0xff] %vm5474, %v5395
    %5484 = vst.msk [vmem:[#allocation4 + $0x48] sm:$0xff] %vm5474, %v5397
    %5485 = vst.msk [vmem:[#allocation4 + $0x50] sm:$0xff] %vm5474, %v5399
    %5486 = vst.msk [vmem:[#allocation4 + $0x58] sm:$0xff] %vm5474, %v5401
    %5487 = vst.msk [vmem:[#allocation4 + $0x60] sm:$0xff] %vm5474, %v5403
    %5488 = vst.msk [vmem:[#allocation4 + $0x68] sm:$0xff] %vm5474, %v5405
    %5489 = vst.msk [vmem:[#allocation4 + $0x70] sm:$0xff] %vm5474, %v5407
    %5490 = vst.msk [vmem:[#allocation4 + $0x78] sm:$0xff] %vm5474, %v5409
    %5491 = vst.msk [vmem:[#allocation4 + $0x80] sm:$0xff] %vm5474, %v5411
    %5492 = vst.msk [vmem:[#allocation4 + $0x88] sm:$0xff] %vm5474, %v5413
    %5493 = vst.msk [vmem:[#allocation4 + $0x90] sm:$0xff] %vm5474, %v5415
    %5494 = vst.msk [vmem:[#allocation4 + $0x98] sm:$0xff] %vm5474, %v5417
    %5495 = vst.msk [vmem:[#allocation4 + $0xa0] sm:$0xff] %vm5474, %v5419
    %5496 = vst.msk [vmem:[#allocation4 + $0xa8] sm:$0xff] %vm5474, %v5421
    %5497 = vst.msk [vmem:[#allocation4 + $0xb0] sm:$0xff] %vm5474, %v5423
    %5498 = vst.msk [vmem:[#allocation4 + $0xb8] sm:$0xff] %vm5474, %v5425
    %5499 = vst.msk [vmem:[#allocation4 + $0xc0] sm:$0xff] %vm5474, %v5427
    %5500 = vst.msk [vmem:[#allocation4 + $0xc8] sm:$0xff] %vm5474, %v5429
    %5501 = vst.msk [vmem:[#allocation4 + $0xd0] sm:$0xff] %vm5474, %v5431
    %5502 = vst.msk [vmem:[#allocation4 + $0xd8] sm:$0xff] %vm5474, %v5433
    %5503 = vst.msk [vmem:[#allocation4 + $0xe0] sm:$0xff] %vm5474, %v5435
    %5504 = vst.msk [vmem:[#allocation4 + $0xe8] sm:$0xff] %vm5474, %v5437
    %5505 = vst.msk [vmem:[#allocation4 + $0xf0] sm:$0xff] %vm5474, %v5439
    %5506 = vst.msk [vmem:[#allocation4 + $0xf8] sm:$0xff] %vm5474, %v5441
    // Predicated region
    $region18: #{tpu_custom_call.1} parent=1 // pred_check
      _
    $region19: #{tpu_custom_call.1} parent=1 // pred_check_branch
      %5508 = sbr.rel (0) target = $region21
    $region20: #{tpu_custom_call.1} parent=1 // pred_region
      %s5510 = ssub.s32 4096, 4096
      %5511 = vsyncadd [#allocation5], %s5510
      %s5512 = sshll.u32 [#allocation4], 4
      %s5513 = int_to_ptr.vmem [resolvable:$true] %s5512
      %5518 = dma.vmem_to_hbm [thread:$0]  %s5513, 4096, %s5, [#allocation5], 128, 128, 8
    $region21: #{tpu_custom_call.1} parent=1 // pred_fallthru
      _
    // Predicated region
    $region22: #{tpu_custom_call.1} parent=1 // pred_check
      _
    $region23: #{tpu_custom_call.1} parent=1 // pred_check_branch
      %5520 = sbr.rel (0) target = $region25
    $region24: #{tpu_custom_call.1} parent=1 // pred_region
      %5521 = dma.done [#allocation5], 4096
    $region25: #{tpu_custom_call.1} parent=1 // pred_fallthru
      _
    %5522 = vsyncpa [#allocation5], 1

</llo_original>
